<compile_context>
chip_gen: v7x
topology: tpu7x:2x2x1
jax: 0.10.0
libtpu: 0.0.40
codegen_flags: <defaults>
</compile_context>

<pallas_src>
import functools
import math
import numpy as np

import jax
import jax.numpy as jnp
from jax import lax
from jax.experimental import pallas as pl
from jax.experimental.pallas import tpu as pltpu


SB = 8                       # scan sub-block size (tokens); sublane-aligned
EXP_DTYPE = jnp.bfloat16     # bf16 EUP exp (v6e/v7x); set jnp.float32 on v5e / for bit-closeness
MM_DTYPE = jnp.bfloat16      # matmul operand dtype (accumulation stays f32)


def _round_up(n, m):
    return ((n + m - 1) // m) * m


# ----------------------------------------------------------------------------- #
# Pallas kernel: one (batch, token-chunk) tile of the MambaLayer forward
# ----------------------------------------------------------------------------- #
def mamba_layer_kernel(
    x_ref,        # (1, TC, C_pad)              input tokens (zero-padded)
    gamma_ref,    # (1, C_pad)                  LayerNorm weight (zero in padding)
    beta_ref,     # (1, C_pad)                  LayerNorm bias   (zero in padding)
    win_ref,      # (C_pad, 2*d_inner)  bf16    in_proj weight, [x | z] fused
    convw_ref,    # (d_conv, d_inner)   f32     depthwise conv weight (tap-major)
    convb_ref,    # (1, d_inner)        f32     conv bias
    wx_ref,       # (d_inner, d_inner+2*d_state) bf16  [wdelta | wB | wC] fused
    dtb_ref,      # (1, d_inner)        f32     dt_proj bias
    At_ref,       # (d_state, d_inner)  f32     A.T  (A = -exp(A_log))
    D_ref,        # (1, d_inner)        f32
    outw_ref,     # (d_inner, C_pad)    bf16    out_proj weight (zero padded cols)
    o_ref,        # (1, TC, C_pad)              output tokens
    xext_scr,     # VMEM (halo + TC, d_inner)   conv halo buffer (carried)
    state_scr,    # VMEM (d_state, d_inner)     SSM state (carried across chunks)
    dl_scr,       # VMEM (TC, d_inner)          delta
    du_scr,       # VMEM (TC, d_inner)          delta * xc
    bc_scr,       # VMEM (TC, 2*d_state)        [B | C] lane-dense
    y_scr,        # VMEM (TC, d_inner)          scan output rows
    *,
    c_real,       # real channel count (int)
    halo,         # sublane-aligned halo size (>= d_conv - 1)
):
    chunk = pl.program_id(1)
    d_state, d_inner = At_ref.shape
    K = convw_ref.shape[0]
    TC = x_ref.shape[1]

    # ---- carried state init / conv-tail handoff --------------------------------
    @pl.when(chunk == 0)
    def _():
        state_scr[...] = jnp.zeros_like(state_scr)
        if K > 1:
            xext_scr[halo - (K - 1):halo, :] = jnp.zeros((K - 1, d_inner), jnp.float32)

    if K > 1:
        @pl.when(chunk != 0)
        def _():
            # tail = last (K-1) pre-conv rows of the previous chunk
            xext_scr[halo - (K - 1):halo, :] = xext_scr[halo + TC - (K - 1):halo + TC, :]

    # ---- LayerNorm (two-pass form; padded lanes masked out) --------------------
    x = x_ref[0]                                              # (TC, C_pad) f32
    inv_c = 1.0 / float(c_real)
    mu = jnp.sum(x, axis=-1, keepdims=True) * inv_c
    lane = lax.broadcasted_iota(jnp.int32, x.shape, 1)
    xm = jnp.where(lane < c_real, x - mu, 0.0)
    var = jnp.sum(xm * xm, axis=-1, keepdims=True) * inv_c
    xn = xm * lax.rsqrt(var + 1e-5) * gamma_ref[...] + beta_ref[...]

    # ---- fused in_proj (bias=False): one matmul, [x | z] columns ----------------
    xz = jnp.dot(xn.astype(MM_DTYPE), win_ref[...],
                 preferred_element_type=jnp.float32)          # (TC, 2*d_inner) f32
    xpart = xz[:, :d_inner]
    z = xz[:, d_inner:]

    # ---- causal depthwise conv1d + SiLU via halo scratch ------------------------
    xext_scr[halo:halo + TC, :] = xpart
    cw = convw_ref[...]                                       # (K, d_inner) f32
    acc = cw[K - 1:K, :] * xpart                              # current-tap term
    for j in range(K - 1):                                    # older taps via halo
        off = halo - (K - 1) + j
        acc = acc + cw[j:j + 1, :] * xext_scr[off:off + TC, :]
    xc = acc + convb_ref[...]
    xc = xc * jax.nn.sigmoid(xc)                              # SiLU, f32

    # ---- fused x_proj: one matmul -> [delta_pre | B | C] ------------------------
    P = jnp.dot(xc.astype(MM_DTYPE), wx_ref[...],
                preferred_element_type=jnp.float32)           # (TC, d_inner+2*d_state)
    delta = jax.nn.softplus(P[:, :d_inner] + dtb_ref[...])    # (TC, d_inner) f32
    dl_scr[...] = delta
    du_scr[...] = delta * xc
    bc_scr[...] = P[:, d_inner:]                              # (TC, 2*d_state)

    # ---- fused sub-block scan: dA/dBu/C computed per SB tokens, interleaved -----
    At = At_ref[...]                                          # (d_state, d_inner) f32

    def sub_body(s, h):
        t0 = pl.multiple_of(s * SB, SB)
        d_blk = dl_scr[pl.ds(t0, SB), :]                      # (SB, d_inner)
        u_blk = du_scr[pl.ds(t0, SB), :]                      # (SB, d_inner)
        bc_blk = bc_scr[pl.ds(t0, SB), :]                     # (SB, 2*d_state)
        # dA in EXP_DTYPE (bf16 EUP path on v6e/v7x); promoted to f32 in the FMA.
        dA_blk = jnp.exp((d_blk[:, None, :] * At[None, :, :]).astype(EXP_DTYPE))
        # Broadcast B / C across lanes once per sub-block (not per step).
        Bb = jnp.broadcast_to(bc_blk[:, :d_state, None], (SB, d_state, d_inner))
        Cb = jnp.broadcast_to(bc_blk[:, d_state:, None], (SB, d_state, d_inner))
        dBu_blk = u_blk[:, None, :] * Bb                      # (SB, d_state, d_inner)
        ys = []
        for j in range(SB):                                   # unrolled 8-step chain
            h = dA_blk[j] * h + dBu_blk[j]                    # (d_state, d_inner) f32
            ys.append(jnp.sum(h * Cb[j], axis=0, keepdims=True))
        # One aligned (SB, d_inner) store per sub-block instead of masked row stores.
        y_scr[pl.ds(t0, SB), :] = jnp.concatenate(ys, axis=0)
        return h

    n_sub = TC // SB
    h_fin = lax.fori_loop(0, n_sub, sub_body, state_scr[...])
    state_scr[...] = h_fin                                    # carry to next chunk

    # ---- skip connection, SiLU gate, out_proj (lane-dense store) ----------------
    y = y_scr[...] + xc * D_ref[...]
    y = y * (z * jax.nn.sigmoid(z))
    o_ref[0] = jnp.dot(y.astype(MM_DTYPE), outw_ref[...],
                       preferred_element_type=jnp.float32).astype(o_ref.dtype)


# ----------------------------------------------------------------------------- #
# Wrapper
# ----------------------------------------------------------------------------- #
def mamba_layer_forward(x, params):
    """x: (B, C, H, W) float32 (NCHW, as in the PyTorch module)."""
    x = x.astype(jnp.float32)
    B, C, H, W = x.shape
    L = H * W

    d_inner = params["D"].shape[0]
    d_state = params["A_log"].shape[1]
    K = params["conv_w"].shape[2]
    dt_rank = params["dt_proj_w"].shape[1]

    # Token-chunk size: always sublane-aligned; pad L up to a multiple of TC.
    # Padded tokens sit after all real tokens, so causality keeps real outputs exact.
    TC = min(128, _round_up(L, SB))
    L_pad = _round_up(L, TC)
    NC = L_pad // TC

    C_pad = _round_up(C, 128)                       # lane-dense kernel I/O
    halo = max(8, _round_up(max(K - 1, 1), 8))      # sublane-aligned conv halo

    # ---- layout / parameter plumbing (plain JAX, trace-time) --------------------
    x_flat = jnp.transpose(x.reshape(B, C, L), (0, 2, 1))               # (B, L, C)
    x_flat = jnp.pad(x_flat, ((0, 0), (0, L_pad - L), (0, C_pad - C)))  # (B, L_pad, C_pad)

    gamma = jnp.pad(params["ln_gamma"], (0, C_pad - C)).reshape(1, C_pad)
    beta = jnp.pad(params["ln_beta"], (0, C_pad - C)).reshape(1, C_pad)

    in_w = params["in_proj_w"]                                          # (2*d_inner, C)
    w_in = jnp.pad(in_w.T, ((0, C_pad - C), (0, 0))).astype(MM_DTYPE)   # (C_pad, 2*d_inner)

    conv_w = params["conv_w"][:, 0, :].T                                # (K, d_inner)
    conv_b = params["conv_b"].reshape(1, d_inner)

    xp = params["x_proj_w"]                                             # (dt_rank+2*d_state, d_inner)
    w_delta = xp[:dt_rank, :].T @ params["dt_proj_w"].T                 # folded dt_proj
    w_B = xp[dt_rank:dt_rank + d_state, :].T                            # (d_inner, d_state)
    w_C = xp[dt_rank + d_state:, :].T                                   # (d_inner, d_state)
    w_x = jnp.concatenate([w_delta, w_B, w_C], axis=1).astype(MM_DTYPE) # (d_inner, d_inner+2*d_state)
    dt_b = params["dt_proj_b"].reshape(1, d_inner)

    A_t = (-jnp.exp(params["A_log"])).T                                 # (d_state, d_inner)
    D2d = params["D"].reshape(1, d_inner)
    out_w = jnp.pad(params["out_proj_w"].T,
                    ((0, 0), (0, C_pad - C))).astype(MM_DTYPE)          # (d_inner, C_pad)

    def w_spec(arr):
        nd = arr.ndim
        return pl.BlockSpec(arr.shape, lambda b, c, nd=nd: (0,) * nd)

    kernel_fn = functools.partial(mamba_layer_kernel, c_real=int(C), halo=halo)

    # Advisory cost estimate for XLA scheduling around the custom call.
    flops = B * L_pad * (
        2 * C_pad * 2 * d_inner                # fused in_proj
        + 2 * d_inner * K                      # depthwise conv
        + 2 * d_inner * (d_inner + 2 * d_state)  # fused x_proj
        + 10 * d_state * d_inner               # dA/dBu build + scan + y reduce
        + 2 * d_inner * C_pad                  # out_proj
    )
    transc = B * L_pad * (d_state * d_inner + 4 * d_inner)
    bytes_acc = (
        4 * 2 * B * L_pad * C_pad
        + 2 * (w_in.size + w_x.size + out_w.size)
        + 4 * (conv_w.size + A_t.size + 2 * C_pad + 4 * d_inner)
    )
    cost = pl.CostEstimate(flops=int(flops), transcendentals=int(transc),
                           bytes_accessed=int(bytes_acc))

    out_flat = pl.pallas_call(
        kernel_fn,
        out_shape=jax.ShapeDtypeStruct((B, L_pad, C_pad), jnp.float32),
        grid_spec=pltpu.PrefetchScalarGridSpec(
            num_scalar_prefetch=0,
            grid=(B, NC),
            in_specs=[
                pl.BlockSpec((1, TC, C_pad), lambda b, c: (b, c, 0)),
                w_spec(gamma), w_spec(beta), w_spec(w_in), w_spec(conv_w),
                w_spec(conv_b), w_spec(w_x), w_spec(dt_b), w_spec(A_t),
                w_spec(D2d), w_spec(out_w),
            ],
            out_specs=pl.BlockSpec((1, TC, C_pad), lambda b, c: (b, c, 0)),
            scratch_shapes=[
                pltpu.VMEM((halo + TC, d_inner), jnp.float32),   # conv halo buffer
                pltpu.VMEM((d_state, d_inner), jnp.float32),     # carried SSM state
                pltpu.VMEM((TC, d_inner), jnp.float32),          # delta
                pltpu.VMEM((TC, d_inner), jnp.float32),          # delta * xc
                pltpu.VMEM((TC, 2 * d_state), jnp.float32),      # [B | C] lane-dense
                pltpu.VMEM((TC, d_inner), jnp.float32),          # scan y rows
            ],
        ),
        compiler_params=pltpu.CompilerParams(
            dimension_semantics=("parallel", "arbitrary"),
            vmem_limit_bytes=32 * 1024 * 1024,   # small scratch -> fits v7x 64 MiB/TC too
        ),
        cost_estimate=cost,
    )(x_flat, gamma, beta, w_in, conv_w, conv_b, w_x, dt_b, A_t, D2d, out_w)

    out = out_flat[:, :L, :C]
    return jnp.transpose(out, (0, 2, 1)).reshape(B, C, H, W)


# ----------------------------------------------------------------------------- #
# Deterministic parameter init (shapes match MambaLayer(dim, 16, 4, 2).__init__)
# ----------------------------------------------------------------------------- #
def init_params(key, dim, d_state=16, d_conv=4, expand=2):
    d_inner = expand * dim
    dt_rank = math.ceil(dim / 16)
    ks = jax.random.split(key, 8)
    p = {}
    p["ln_gamma"] = jnp.ones((dim,), jnp.float32)
    p["ln_beta"] = jnp.zeros((dim,), jnp.float32)
    p["in_proj_w"] = jax.random.normal(ks[0], (2 * d_inner, dim), jnp.float32) / math.sqrt(dim)
    p["conv_w"] = jax.random.normal(ks[1], (d_inner, 1, d_conv), jnp.float32) / math.sqrt(d_conv)
    p["conv_b"] = 0.1 * jax.random.normal(ks[2], (d_inner,), jnp.float32)
    p["x_proj_w"] = jax.random.normal(ks[3], (dt_rank + 2 * d_state, d_inner), jnp.float32) / math.sqrt(d_inner)
    p["dt_proj_w"] = jax.random.normal(ks[4], (d_inner, dt_rank), jnp.float32) / math.sqrt(max(dt_rank, 1))
    p["dt_proj_b"] = 0.1 * jax.random.normal(ks[5], (d_inner,), jnp.float32)
    A = jnp.tile(jnp.arange(1, d_state + 1, dtype=jnp.float32)[None, :], (d_inner, 1))
    p["A_log"] = jnp.log(A)                                              # Mamba's A_log init
    p["D"] = jnp.ones((d_inner,), jnp.float32)
    p["out_proj_w"] = jax.random.normal(ks[6], (dim, d_inner), jnp.float32) / math.sqrt(d_inner)
    return p


# ----------------------------------------------------------------------------- #
# Pure-JAX f32 reference (unfolded dt_proj, standard LayerNorm) for a sanity check
# ----------------------------------------------------------------------------- #
def mamba_layer_ref(x, p):
    B, C, H, W = x.shape
    L = H * W
    xf = jnp.transpose(x.reshape(B, C, L), (0, 2, 1))                    # (B, L, C)
    mu = xf.mean(-1, keepdims=True)
    var = ((xf - mu) ** 2).mean(-1, keepdims=True)
    xn = (xf - mu) / jnp.sqrt(var + 1e-5) * p["ln_gamma"] + p["ln_beta"]
    xz = xn @ p["in_proj_w"].T
    d_inner = p["D"].shape[0]
    d_state = p["A_log"].shape[1]
    dt_rank = p["dt_proj_w"].shape[1]
    xp, z = xz[..., :d_inner], xz[..., d_inner:]
    w = p["conv_w"][:, 0, :]                                             # (d_inner, d_conv)
    d_conv = w.shape[1]
    xc = jnp.zeros_like(xp)
    for s in range(d_conv):
        shifted = jnp.pad(xp, ((0, 0), (s, 0), (0, 0)))[:, :L, :]
        xc = xc + shifted * w[:, d_conv - 1 - s]
    xc = xc + p["conv_b"]
    xc = xc * jax.nn.sigmoid(xc)
    xdbl = xc @ p["x_proj_w"].T
    dt = xdbl[..., :dt_rank]
    Bm = xdbl[..., dt_rank:dt_rank + d_state]
    Cm = xdbl[..., dt_rank + d_state:]
    delta = jax.nn.softplus(dt @ p["dt_proj_w"].T + p["dt_proj_b"])
    A = -jnp.exp(p["A_log"])                                             # (d_inner, d_state)
    dA = jnp.exp(jnp.einsum("bld,dn->bldn", delta, A))
    dBu = jnp.einsum("bld,bln,bld->bldn", delta, Bm, xc)

    def step(st, inp):
        dA_t, dBu_t, C_t = inp
        st = dA_t * st + dBu_t
        y_t = jnp.einsum("bdn,bn->bd", st, C_t)
        return st, y_t

    st0 = jnp.zeros((B, d_inner, d_state), jnp.float32)
    _, ys = lax.scan(step, st0, (dA.transpose(1, 0, 2, 3), dBu.transpose(1, 0, 2, 3),
                                 Cm.transpose(1, 0, 2)))
    y = ys.transpose(1, 0, 2)                                            # (B, L, d_inner)
    y = y + xc * p["D"]
    y = y * (z * jax.nn.sigmoid(z))
    out = y @ p["out_proj_w"].T
    return jnp.transpose(out, (0, 2, 1)).reshape(B, C, H, W)


# ----------------------------------------------------------------------------- #
if __name__ == "__main__":
    # dim=64 -> d_inner=128 (lane-aligned), dt_rank=4; H=W=16 -> L=256 = 2 chunks of 128
    B, dim, H, W = 2, 64, 16, 16
    key = jax.random.PRNGKey(0)
    kx, kp = jax.random.split(key)
    x = jax.random.normal(kx, (B, dim, H, W), jnp.float32)
    params = init_params(kp, dim, d_state=16, d_conv=4, expand=2)

    fwd = jax.jit(lambda xi: mamba_layer_forward(xi, params))
    out = jax.block_until_ready(fwd(x))

    ref = jax.block_until_ready(mamba_layer_ref(x, params))
    assert out.shape == (B, dim, H, W)
    # bf16 matmuls / bf16 exp in the kernel vs. the f32 reference: tolerance widened.
    np.testing.assert_allclose(np.asarray(out), np.asarray(ref), rtol=5e-2, atol=5e-2)

    print("KERNEL_OK")
</pallas_src>

<mosaic_0001>
module attributes {stable_mosaic.version = 11 : i64} {
  func.func @mamba_layer_kernel(%arg0: i32, %arg1: i32, %arg2: memref<1x128x128xf32, #tpu.memory_space<vmem>>, %arg3: memref<1x128xf32, #tpu.memory_space<vmem>>, %arg4: memref<1x128xf32, #tpu.memory_space<vmem>>, %arg5: memref<128x256xbf16, #tpu.memory_space<vmem>>, %arg6: memref<4x128xf32, #tpu.memory_space<vmem>>, %arg7: memref<1x128xf32, #tpu.memory_space<vmem>>, %arg8: memref<128x160xbf16, #tpu.memory_space<vmem>>, %arg9: memref<1x128xf32, #tpu.memory_space<vmem>>, %arg10: memref<16x128xf32, #tpu.memory_space<vmem>>, %arg11: memref<1x128xf32, #tpu.memory_space<vmem>>, %arg12: memref<128x128xbf16, #tpu.memory_space<vmem>>, %arg13: memref<1x128x128xf32, #tpu.memory_space<vmem>>, %arg14: memref<136x128xf32, #tpu.memory_space<vmem>>, %arg15: memref<16x128xf32, #tpu.memory_space<vmem>>, %arg16: memref<128x128xf32, #tpu.memory_space<vmem>>, %arg17: memref<128x128xf32, #tpu.memory_space<vmem>>, %arg18: memref<128x32xf32, #tpu.memory_space<vmem>>, %arg19: memref<128x128xf32, #tpu.memory_space<vmem>>) attributes {dimension_semantics = [#tpu.dimension_semantics<parallel>, #tpu.dimension_semantics<arbitrary>], iteration_bounds = array<i64: 2, 2>, scalar_prefetch = 0 : i64, scratch_operands = 6 : i64, tpu.core_type = #tpu.core_type<tc>, window_params = [{transform_indices = @transform_0, window_bounds = array<i64: 1, 128, 128>}, {pipeline_mode = #tpu.pipeline_mode<synchronous>, transform_indices = @transform_1, window_bounds = array<i64: 1, 128>}, {pipeline_mode = #tpu.pipeline_mode<synchronous>, transform_indices = @transform_2, window_bounds = array<i64: 1, 128>}, {pipeline_mode = #tpu.pipeline_mode<synchronous>, transform_indices = @transform_3, window_bounds = array<i64: 128, 256>}, {pipeline_mode = #tpu.pipeline_mode<synchronous>, transform_indices = @transform_4, window_bounds = array<i64: 4, 128>}, {pipeline_mode = #tpu.pipeline_mode<synchronous>, transform_indices = @transform_5, window_bounds = array<i64: 1, 128>}, {pipeline_mode = #tpu.pipeline_mode<synchronous>, transform_indices = @transform_6, window_bounds = array<i64: 128, 160>}, {pipeline_mode = #tpu.pipeline_mode<synchronous>, transform_indices = @transform_7, window_bounds = array<i64: 1, 128>}, {pipeline_mode = #tpu.pipeline_mode<synchronous>, transform_indices = @transform_8, window_bounds = array<i64: 16, 128>}, {pipeline_mode = #tpu.pipeline_mode<synchronous>, transform_indices = @transform_9, window_bounds = array<i64: 1, 128>}, {pipeline_mode = #tpu.pipeline_mode<synchronous>, transform_indices = @transform_10, window_bounds = array<i64: 128, 128>}, {transform_indices = @transform_11, window_bounds = array<i64: 1, 128, 128>}]} {
    %c0_i32 = arith.constant 0 : i32
    %0 = arith.cmpi eq, %arg1, %c0_i32 : i32
    %1 = arith.extui %0 : i1 to i32
    %c0_i32_0 = arith.constant 0 : i32
    %2 = arith.cmpi ne, %1, %c0_i32_0 : i32
    scf.if %2 {
      %cst_58 = arith.constant 0.000000e+00 : f32
      %118 = vector.broadcast %cst_58 : f32 to vector<16x128xf32>
      %c0_59 = arith.constant 0 : index
      %c0_60 = arith.constant 0 : index
      %119 = vector.load %arg15[%c0_59, %c0_60] : memref<16x128xf32, #tpu.memory_space<vmem>>, vector<16x128xf32>
      tpu.vector_store %arg15[%c0_59, %c0_60], %118 {strides = array<i32>} : memref<16x128xf32, #tpu.memory_space<vmem>>, vector<16x128xf32>,
      %cst_61 = arith.constant 0.000000e+00 : f32
      %120 = vector.broadcast %cst_61 : f32 to vector<3x128xf32>
      %c5_62 = arith.constant 5 : index
      %c0_63 = arith.constant 0 : index
      %121 = vector.load %arg14[%c5_62, %c0_63] : memref<136x128xf32, #tpu.memory_space<vmem>>, vector<3x128xf32>
      tpu.vector_store %arg14[%c5_62, %c0_63], %120 {strides = array<i32>} : memref<136x128xf32, #tpu.memory_space<vmem>>, vector<3x128xf32>,
    } else {
    }
    %c0_i32_1 = arith.constant 0 : i32
    %3 = arith.cmpi ne, %arg1, %c0_i32_1 : i32
    %4 = arith.extui %3 : i1 to i32
    %c0_i32_2 = arith.constant 0 : i32
    %5 = arith.cmpi ne, %4, %c0_i32_2 : i32
    scf.if %5 {
      %c133 = arith.constant 133 : index
      %c0_58 = arith.constant 0 : index
      %118 = vector.load %arg14[%c133, %c0_58] : memref<136x128xf32, #tpu.memory_space<vmem>>, vector<3x128xf32>
      %c5_59 = arith.constant 5 : index
      %c0_60 = arith.constant 0 : index
      %119 = vector.load %arg14[%c5_59, %c0_60] : memref<136x128xf32, #tpu.memory_space<vmem>>, vector<3x128xf32>
      tpu.vector_store %arg14[%c5_59, %c0_60], %118 {strides = array<i32>} : memref<136x128xf32, #tpu.memory_space<vmem>>, vector<3x128xf32>,
    } else {
    }
    %c0 = arith.constant 0 : index
    %c0_3 = arith.constant 0 : index
    %c0_4 = arith.constant 0 : index
    %6 = vector.load %arg2[%c0, %c0_3, %c0_4] : memref<1x128x128xf32, #tpu.memory_space<vmem>>, vector<1x128x128xf32>
    %7 = vector.shape_cast %6 : vector<1x128x128xf32> to vector<128x128xf32>
    %cst = arith.constant dense<0.000000e+00> : vector<128xf32>
    %8 = vector.multi_reduction <add>, %7, %cst [1] : vector<128x128xf32> to vector<128xf32>
    %9 = vector.shape_cast %8 : vector<128xf32> to vector<128x1xf32>
    %cst_5 = arith.constant 1.562500e-02 : f32
    %10 = vector.broadcast %cst_5 : f32 to vector<128x1xf32>
    %11 = arith.mulf %9, %10 : vector<128x1xf32>
    %12 = tpu.iota {dimensions = array<i32: 1>} : vector<128x128xi32>
    %c64_i32 = arith.constant 64 : i32
    %13 = vector.broadcast %c64_i32 : i32 to vector<128x128xi32>
    %14 = arith.cmpi slt, %12, %13 : vector<128x128xi32>
    %15 = vector.broadcast %11 : vector<128x1xf32> to vector<128x128xf32>
    %16 = arith.subf %7, %15 : vector<128x128xf32>
    %cst_6 = arith.constant 0.000000e+00 : f32
    %17 = vector.broadcast %cst_6 : f32 to vector<128x128xf32>
    %18 = arith.select %14, %16, %17 : vector<128x128xi1>, vector<128x128xf32>
    %19 = arith.mulf %18, %18 : vector<128x128xf32>
    %cst_7 = arith.constant dense<0.000000e+00> : vector<128xf32>
    %20 = vector.multi_reduction <add>, %19, %cst_7 [1] : vector<128x128xf32> to vector<128xf32>
    %21 = vector.shape_cast %20 : vector<128xf32> to vector<128x1xf32>
    %cst_8 = arith.constant 1.562500e-02 : f32
    %22 = vector.broadcast %cst_8 : f32 to vector<128x1xf32>
    %23 = arith.mulf %21, %22 : vector<128x1xf32>
    %cst_9 = arith.constant 9.99999974E-6 : f32
    %24 = vector.broadcast %cst_9 : f32 to vector<128x1xf32>
    %25 = arith.addf %23, %24 : vector<128x1xf32>
    %26 = math.rsqrt %25 : vector<128x1xf32>
    %27 = vector.broadcast %26 : vector<128x1xf32> to vector<128x128xf32>
    %28 = arith.mulf %18, %27 : vector<128x128xf32>
    %c0_10 = arith.constant 0 : index
    %c0_11 = arith.constant 0 : index
    %29 = vector.load %arg3[%c0_10, %c0_11] : memref<1x128xf32, #tpu.memory_space<vmem>>, vector<1x128xf32>
    %30 = vector.broadcast %29 : vector<1x128xf32> to vector<128x128xf32>
    %31 = arith.mulf %28, %30 : vector<128x128xf32>
    %c0_12 = arith.constant 0 : index
    %c0_13 = arith.constant 0 : index
    %32 = vector.load %arg4[%c0_12, %c0_13] : memref<1x128xf32, #tpu.memory_space<vmem>>, vector<1x128xf32>
    %33 = vector.broadcast %32 : vector<1x128xf32> to vector<128x128xf32>
    %34 = arith.addf %31, %33 : vector<128x128xf32>
    %35 = arith.truncf %34 : vector<128x128xf32> to vector<128x128xbf16>
    %c0_14 = arith.constant 0 : index
    %c0_15 = arith.constant 0 : index
    %36 = vector.load %arg5[%c0_14, %c0_15] : memref<128x256xbf16, #tpu.memory_space<vmem>>, vector<128x256xbf16>
    %cst_16 = arith.constant dense<0.000000e+00> : vector<128x256xf32>
    %37 = tpu.matmul %35, %36, %cst_16 {dimension_numbers = #tpu.dot_dimension_numbers<[1], [0], [0], [1], [0, 0, 1, 1], [], []>} : vector<128x128xbf16>, vector<128x256xbf16>, vector<128x256xf32> -> vector<128x256xf32>
    %38 = vector.extract_strided_slice %37 {offsets = [0, 0], sizes = [128, 128], strides = [1, 1]} : vector<128x256xf32> to vector<128x128xf32>
    %39 = vector.extract_strided_slice %37 {offsets = [0, 128], sizes = [128, 128], strides = [1, 1]} : vector<128x256xf32> to vector<128x128xf32>
    %c8 = arith.constant 8 : index
    %c0_17 = arith.constant 0 : index
    %40 = vector.load %arg14[%c8, %c0_17] : memref<136x128xf32, #tpu.memory_space<vmem>>, vector<128x128xf32>
    tpu.vector_store %arg14[%c8, %c0_17], %38 {strides = array<i32>} : memref<136x128xf32, #tpu.memory_space<vmem>>, vector<128x128xf32>,
    %c0_18 = arith.constant 0 : index
    %c0_19 = arith.constant 0 : index
    %41 = vector.load %arg6[%c0_18, %c0_19] : memref<4x128xf32, #tpu.memory_space<vmem>>, vector<4x128xf32>
    %42 = vector.extract_strided_slice %41 {offsets = [3, 0], sizes = [1, 128], strides = [1, 1]} : vector<4x128xf32> to vector<1x128xf32>
    %43 = vector.broadcast %42 : vector<1x128xf32> to vector<128x128xf32>
    %44 = arith.mulf %43, %38 : vector<128x128xf32>
    %45 = vector.extract_strided_slice %41 {offsets = [0, 0], sizes = [1, 128], strides = [1, 1]} : vector<4x128xf32> to vector<1x128xf32>
    %c5 = arith.constant 5 : index
    %c0_20 = arith.constant 0 : index
    %46 = vector.load %arg14[%c5, %c0_20] : memref<136x128xf32, #tpu.memory_space<vmem>>, vector<128x128xf32>
    %47 = vector.broadcast %45 : vector<1x128xf32> to vector<128x128xf32>
    %48 = arith.mulf %47, %46 : vector<128x128xf32>
    %49 = arith.addf %44, %48 : vector<128x128xf32>
    %50 = vector.extract_strided_slice %41 {offsets = [1, 0], sizes = [1, 128], strides = [1, 1]} : vector<4x128xf32> to vector<1x128xf32>
    %c6 = arith.constant 6 : index
    %c0_21 = arith.constant 0 : index
    %51 = vector.load %arg14[%c6, %c0_21] : memref<136x128xf32, #tpu.memory_space<vmem>>, vector<128x128xf32>
    %52 = vector.broadcast %50 : vector<1x128xf32> to vector<128x128xf32>
    %53 = arith.mulf %52, %51 : vector<128x128xf32>
    %54 = arith.addf %49, %53 : vector<128x128xf32>
    %55 = vector.extract_strided_slice %41 {offsets = [2, 0], sizes = [1, 128], strides = [1, 1]} : vector<4x128xf32> to vector<1x128xf32>
    %c7 = arith.constant 7 : index
    %c0_22 = arith.constant 0 : index
    %56 = vector.load %arg14[%c7, %c0_22] : memref<136x128xf32, #tpu.memory_space<vmem>>, vector<128x128xf32>
    %57 = vector.broadcast %55 : vector<1x128xf32> to vector<128x128xf32>
    %58 = arith.mulf %57, %56 : vector<128x128xf32>
    %59 = arith.addf %54, %58 : vector<128x128xf32>
    %c0_23 = arith.constant 0 : index
    %c0_24 = arith.constant 0 : index
    %60 = vector.load %arg7[%c0_23, %c0_24] : memref<1x128xf32, #tpu.memory_space<vmem>>, vector<1x128xf32>
    %61 = vector.broadcast %60 : vector<1x128xf32> to vector<128x128xf32>
    %62 = arith.addf %59, %61 : vector<128x128xf32>
    %63 = arith.negf %62 : vector<128x128xf32>
    %64 = math.exp %63 : vector<128x128xf32>
    %cst_25 = arith.constant 1.000000e+00 : f32
    %65 = vector.broadcast %cst_25 : f32 to vector<128x128xf32>
    %66 = arith.addf %65, %64 : vector<128x128xf32>
    %67 = arith.divf %65, %66 : vector<128x128xf32>
    %68 = arith.mulf %62, %67 : vector<128x128xf32>
    %69 = arith.truncf %68 : vector<128x128xf32> to vector<128x128xbf16>
    %c0_26 = arith.constant 0 : index
    %c0_27 = arith.constant 0 : index
    %70 = vector.load %arg8[%c0_26, %c0_27] : memref<128x160xbf16, #tpu.memory_space<vmem>>, vector<128x160xbf16>
    %cst_28 = arith.constant dense<0.000000e+00> : vector<128x160xf32>
    %71 = tpu.matmul %69, %70, %cst_28 {dimension_numbers = #tpu.dot_dimension_numbers<[1], [0], [0], [1], [0, 0, 1, 1], [], []>} : vector<128x128xbf16>, vector<128x160xbf16>, vector<128x160xf32> -> vector<128x160xf32>
    %72 = vector.extract_strided_slice %71 {offsets = [0, 0], sizes = [128, 128], strides = [1, 1]} : vector<128x160xf32> to vector<128x128xf32>
    %c0_29 = arith.constant 0 : index
    %c0_30 = arith.constant 0 : index
    %73 = vector.load %arg9[%c0_29, %c0_30] : memref<1x128xf32, #tpu.memory_space<vmem>>, vector<1x128xf32>
    %74 = vector.broadcast %73 : vector<1x128xf32> to vector<128x128xf32>
    %75 = arith.addf %72, %74 : vector<128x128xf32>
    %cst_31 = arith.constant 0.000000e+00 : f32
    %76 = vector.broadcast %cst_31 : f32 to vector<128x128xf32>
    %77 = arith.maximumf %75, %76 : vector<128x128xf32>
    %78 = vector.broadcast %cst_31 : f32 to vector<128x128xf32>
    %79 = arith.subf %75, %78 : vector<128x128xf32>
    %80 = arith.cmpf one, %79, %79 : vector<128x128xf32>
    %81 = vector.broadcast %cst_31 : f32 to vector<128x128xf32>
    %82 = arith.addf %75, %81 : vector<128x128xf32>
    %83 = math.absf %79 : vector<128x128xf32>
    %cst_32 = arith.constant 0.000000e+00 : f32
    %84 = vector.broadcast %cst_32 : f32 to vector<128x128xf32>
    %85 = arith.subf %84, %83 : vector<128x128xf32>
    %86 = math.exp %85 : vector<128x128xf32>
    %87 = math.log1p %86 : vector<128x128xf32>
    %88 = arith.addf %77, %87 : vector<128x128xf32>
    %89 = arith.select %80, %82, %88 : vector<128x128xi1>, vector<128x128xf32>
    %c0_33 = arith.constant 0 : index
    %c0_34 = arith.constant 0 : index
    %90 = vector.load %arg16[%c0_33, %c0_34] : memref<128x128xf32, #tpu.memory_space<vmem>>, vector<128x128xf32>
    tpu.vector_store %arg16[%c0_33, %c0_34], %89 {strides = array<i32>} : memref<128x128xf32, #tpu.memory_space<vmem>>, vector<128x128xf32>,
    %91 = arith.mulf %89, %68 : vector<128x128xf32>
    %c0_35 = arith.constant 0 : index
    %c0_36 = arith.constant 0 : index
    %92 = vector.load %arg17[%c0_35, %c0_36] : memref<128x128xf32, #tpu.memory_space<vmem>>, vector<128x128xf32>
    tpu.vector_store %arg17[%c0_35, %c0_36], %91 {strides = array<i32>} : memref<128x128xf32, #tpu.memory_space<vmem>>, vector<128x128xf32>,
    %93 = vector.extract_strided_slice %71 {offsets = [0, 128], sizes = [128, 32], strides = [1, 1]} : vector<128x160xf32> to vector<128x32xf32>
    %c0_37 = arith.constant 0 : index
    %c0_38 = arith.constant 0 : index
    %94 = vector.load %arg18[%c0_37, %c0_38] : memref<128x32xf32, #tpu.memory_space<vmem>>, vector<128x32xf32>
    tpu.vector_store %arg18[%c0_37, %c0_38], %93 {strides = array<i32>} : memref<128x32xf32, #tpu.memory_space<vmem>>, vector<128x32xf32>,
    %c0_39 = arith.constant 0 : index
    %c0_40 = arith.constant 0 : index
    %95 = vector.load %arg10[%c0_39, %c0_40] : memref<16x128xf32, #tpu.memory_space<vmem>>, vector<16x128xf32>
    %c0_41 = arith.constant 0 : index
    %c0_42 = arith.constant 0 : index
    %96 = vector.load %arg15[%c0_41, %c0_42] : memref<16x128xf32, #tpu.memory_space<vmem>>, vector<16x128xf32>
    %c0_i32_43 = arith.constant 0 : i32
    %c16_i32 = arith.constant 16 : i32
    %97 = arith.addi %c0_i32_43, %c16_i32 : i32
    %c1_i32 = arith.constant 1 : i32
    %98 = scf.for %arg20 = %c0_i32_43 to %97 step %c1_i32 iter_args(%arg21 = %96) -> (vector<16x128xf32>)  : i32 {
      %c8_i32 = arith.constant 8 : i32
      %118 = arith.muli %arg20, %c8_i32 : i32
      %119 = tpu.assume_multiple %118, 8 : i32
      %120 = arith.index_cast %119 : i32 to index
      %c0_58 = arith.constant 0 : index
      %121 = vector.load %arg16[%120, %c0_58] : memref<128x128xf32, #tpu.memory_space<vmem>>, vector<8x128xf32>
      %122 = arith.index_cast %119 : i32 to index
      %c0_59 = arith.constant 0 : index
      %123 = vector.load %arg17[%122, %c0_59] : memref<128x128xf32, #tpu.memory_space<vmem>>, vector<8x128xf32>
      %124 = arith.index_cast %119 : i32 to index
      %c0_60 = arith.constant 0 : index
      %125 = vector.load %arg18[%124, %c0_60] : memref<128x32xf32, #tpu.memory_space<vmem>>, vector<8x32xf32>
      %126 = vector.shape_cast %121 : vector<8x128xf32> to vector<8x1x128xf32>
      %127 = vector.shape_cast %95 : vector<16x128xf32> to vector<1x16x128xf32>
      %128 = vector.broadcast %126 : vector<8x1x128xf32> to vector<8x16x128xf32>
      %129 = vector.broadcast %127 : vector<1x16x128xf32> to vector<8x16x128xf32>
      %130 = arith.mulf %128, %129 : vector<8x16x128xf32>
      %131 = arith.truncf %130 : vector<8x16x128xf32> to vector<8x16x128xbf16>
      %132 = math.exp %131 : vector<8x16x128xbf16>
      %133 = vector.extract_strided_slice %125 {offsets = [0, 0], sizes = [8, 16], strides = [1, 1]} : vector<8x32xf32> to vector<8x16xf32>
      %134 = vector.shape_cast %133 : vector<8x16xf32> to vector<8x16x1xf32>
      %135 = vector.shape_cast %134 : vector<8x16x1xf32> to vector<8x16x1xf32>
      %136 = vector.broadcast %135 : vector<8x16x1xf32> to vector<8x16x128xf32>
      %137 = vector.extract_strided_slice %125 {offsets = [0, 16], sizes = [8, 16], strides = [1, 1]} : vector<8x32xf32> to vector<8x16xf32>
      %138 = vector.shape_cast %137 : vector<8x16xf32> to vector<8x16x1xf32>
      %139 = vector.shape_cast %138 : vector<8x16x1xf32> to vector<8x16x1xf32>
      %140 = vector.broadcast %139 : vector<8x16x1xf32> to vector<8x16x128xf32>
      %141 = vector.shape_cast %123 : vector<8x128xf32> to vector<8x1x128xf32>
      %142 = vector.broadcast %141 : vector<8x1x128xf32> to vector<8x16x128xf32>
      %143 = arith.mulf %142, %136 : vector<8x16x128xf32>
      %144 = vector.extract_strided_slice %132 {offsets = [0, 0, 0], sizes = [1, 16, 128], strides = [1, 1, 1]} : vector<8x16x128xbf16> to vector<1x16x128xbf16>
      %145 = vector.shape_cast %144 : vector<1x16x128xbf16> to vector<16x128xbf16>
      %146 = arith.extf %145 : vector<16x128xbf16> to vector<16x128xf32>
      %147 = arith.mulf %146, %arg21 : vector<16x128xf32>
      %148 = vector.extract_strided_slice %143 {offsets = [0, 0, 0], sizes = [1, 16, 128], strides = [1, 1, 1]} : vector<8x16x128xf32> to vector<1x16x128xf32>
      %149 = vector.shape_cast %148 : vector<1x16x128xf32> to vector<16x128xf32>
      %150 = arith.addf %147, %149 : vector<16x128xf32>
      %151 = vector.extract_strided_slice %140 {offsets = [0, 0, 0], sizes = [1, 16, 128], strides = [1, 1, 1]} : vector<8x16x128xf32> to vector<1x16x128xf32>
      %152 = vector.shape_cast %151 : vector<1x16x128xf32> to vector<16x128xf32>
      %153 = arith.mulf %150, %152 : vector<16x128xf32>
      %cst_61 = arith.constant dense<0.000000e+00> : vector<128xf32>
      %154 = vector.multi_reduction <add>, %153, %cst_61 [0] : vector<16x128xf32> to vector<128xf32>
      %155 = vector.shape_cast %154 : vector<128xf32> to vector<1x128xf32>
      %156 = vector.extract_strided_slice %132 {offsets = [1, 0, 0], sizes = [1, 16, 128], strides = [1, 1, 1]} : vector<8x16x128xbf16> to vector<1x16x128xbf16>
      %157 = vector.shape_cast %156 : vector<1x16x128xbf16> to vector<16x128xbf16>
      %158 = arith.extf %157 : vector<16x128xbf16> to vector<16x128xf32>
      %159 = arith.mulf %158, %150 : vector<16x128xf32>
      %160 = vector.extract_strided_slice %143 {offsets = [1, 0, 0], sizes = [1, 16, 128], strides = [1, 1, 1]} : vector<8x16x128xf32> to vector<1x16x128xf32>
      %161 = vector.shape_cast %160 : vector<1x16x128xf32> to vector<16x128xf32>
      %162 = arith.addf %159, %161 : vector<16x128xf32>
      %163 = vector.extract_strided_slice %140 {offsets = [1, 0, 0], sizes = [1, 16, 128], strides = [1, 1, 1]} : vector<8x16x128xf32> to vector<1x16x128xf32>
      %164 = vector.shape_cast %163 : vector<1x16x128xf32> to vector<16x128xf32>
      %165 = arith.mulf %162, %164 : vector<16x128xf32>
      %cst_62 = arith.constant dense<0.000000e+00> : vector<128xf32>
      %166 = vector.multi_reduction <add>, %165, %cst_62 [0] : vector<16x128xf32> to vector<128xf32>
      %167 = vector.shape_cast %166 : vector<128xf32> to vector<1x128xf32>
      %168 = vector.extract_strided_slice %132 {offsets = [2, 0, 0], sizes = [1, 16, 128], strides = [1, 1, 1]} : vector<8x16x128xbf16> to vector<1x16x128xbf16>
      %169 = vector.shape_cast %168 : vector<1x16x128xbf16> to vector<16x128xbf16>
      %170 = arith.extf %169 : vector<16x128xbf16> to vector<16x128xf32>
      %171 = arith.mulf %170, %162 : vector<16x128xf32>
      %172 = vector.extract_strided_slice %143 {offsets = [2, 0, 0], sizes = [1, 16, 128], strides = [1, 1, 1]} : vector<8x16x128xf32> to vector<1x16x128xf32>
      %173 = vector.shape_cast %172 : vector<1x16x128xf32> to vector<16x128xf32>
      %174 = arith.addf %171, %173 : vector<16x128xf32>
      %175 = vector.extract_strided_slice %140 {offsets = [2, 0, 0], sizes = [1, 16, 128], strides = [1, 1, 1]} : vector<8x16x128xf32> to vector<1x16x128xf32>
      %176 = vector.shape_cast %175 : vector<1x16x128xf32> to vector<16x128xf32>
      %177 = arith.mulf %174, %176 : vector<16x128xf32>
      %cst_63 = arith.constant dense<0.000000e+00> : vector<128xf32>
      %178 = vector.multi_reduction <add>, %177, %cst_63 [0] : vector<16x128xf32> to vector<128xf32>
      %179 = vector.shape_cast %178 : vector<128xf32> to vector<1x128xf32>
      %180 = vector.extract_strided_slice %132 {offsets = [3, 0, 0], sizes = [1, 16, 128], strides = [1, 1, 1]} : vector<8x16x128xbf16> to vector<1x16x128xbf16>
      %181 = vector.shape_cast %180 : vector<1x16x128xbf16> to vector<16x128xbf16>
      %182 = arith.extf %181 : vector<16x128xbf16> to vector<16x128xf32>
      %183 = arith.mulf %182, %174 : vector<16x128xf32>
      %184 = vector.extract_strided_slice %143 {offsets = [3, 0, 0], sizes = [1, 16, 128], strides = [1, 1, 1]} : vector<8x16x128xf32> to vector<1x16x128xf32>
      %185 = vector.shape_cast %184 : vector<1x16x128xf32> to vector<16x128xf32>
      %186 = arith.addf %183, %185 : vector<16x128xf32>
      %187 = vector.extract_strided_slice %140 {offsets = [3, 0, 0], sizes = [1, 16, 128], strides = [1, 1, 1]} : vector<8x16x128xf32> to vector<1x16x128xf32>
      %188 = vector.shape_cast %187 : vector<1x16x128xf32> to vector<16x128xf32>
      %189 = arith.mulf %186, %188 : vector<16x128xf32>
      %cst_64 = arith.constant dense<0.000000e+00> : vector<128xf32>
      %190 = vector.multi_reduction <add>, %189, %cst_64 [0] : vector<16x128xf32> to vector<128xf32>
      %191 = vector.shape_cast %190 : vector<128xf32> to vector<1x128xf32>
      %192 = vector.extract_strided_slice %132 {offsets = [4, 0, 0], sizes = [1, 16, 128], strides = [1, 1, 1]} : vector<8x16x128xbf16> to vector<1x16x128xbf16>
      %193 = vector.shape_cast %192 : vector<1x16x128xbf16> to vector<16x128xbf16>
      %194 = arith.extf %193 : vector<16x128xbf16> to vector<16x128xf32>
      %195 = arith.mulf %194, %186 : vector<16x128xf32>
      %196 = vector.extract_strided_slice %143 {offsets = [4, 0, 0], sizes = [1, 16, 128], strides = [1, 1, 1]} : vector<8x16x128xf32> to vector<1x16x128xf32>
      %197 = vector.shape_cast %196 : vector<1x16x128xf32> to vector<16x128xf32>
      %198 = arith.addf %195, %197 : vector<16x128xf32>
      %199 = vector.extract_strided_slice %140 {offsets = [4, 0, 0], sizes = [1, 16, 128], strides = [1, 1, 1]} : vector<8x16x128xf32> to vector<1x16x128xf32>
      %200 = vector.shape_cast %199 : vector<1x16x128xf32> to vector<16x128xf32>
      %201 = arith.mulf %198, %200 : vector<16x128xf32>
      %cst_65 = arith.constant dense<0.000000e+00> : vector<128xf32>
      %202 = vector.multi_reduction <add>, %201, %cst_65 [0] : vector<16x128xf32> to vector<128xf32>
      %203 = vector.shape_cast %202 : vector<128xf32> to vector<1x128xf32>
      %204 = vector.extract_strided_slice %132 {offsets = [5, 0, 0], sizes = [1, 16, 128], strides = [1, 1, 1]} : vector<8x16x128xbf16> to vector<1x16x128xbf16>
      %205 = vector.shape_cast %204 : vector<1x16x128xbf16> to vector<16x128xbf16>
      %206 = arith.extf %205 : vector<16x128xbf16> to vector<16x128xf32>
      %207 = arith.mulf %206, %198 : vector<16x128xf32>
      %208 = vector.extract_strided_slice %143 {offsets = [5, 0, 0], sizes = [1, 16, 128], strides = [1, 1, 1]} : vector<8x16x128xf32> to vector<1x16x128xf32>
      %209 = vector.shape_cast %208 : vector<1x16x128xf32> to vector<16x128xf32>
      %210 = arith.addf %207, %209 : vector<16x128xf32>
      %211 = vector.extract_strided_slice %140 {offsets = [5, 0, 0], sizes = [1, 16, 128], strides = [1, 1, 1]} : vector<8x16x128xf32> to vector<1x16x128xf32>
      %212 = vector.shape_cast %211 : vector<1x16x128xf32> to vector<16x128xf32>
      %213 = arith.mulf %210, %212 : vector<16x128xf32>
      %cst_66 = arith.constant dense<0.000000e+00> : vector<128xf32>
      %214 = vector.multi_reduction <add>, %213, %cst_66 [0] : vector<16x128xf32> to vector<128xf32>
      %215 = vector.shape_cast %214 : vector<128xf32> to vector<1x128xf32>
      %216 = vector.extract_strided_slice %132 {offsets = [6, 0, 0], sizes = [1, 16, 128], strides = [1, 1, 1]} : vector<8x16x128xbf16> to vector<1x16x128xbf16>
      %217 = vector.shape_cast %216 : vector<1x16x128xbf16> to vector<16x128xbf16>
      %218 = arith.extf %217 : vector<16x128xbf16> to vector<16x128xf32>
      %219 = arith.mulf %218, %210 : vector<16x128xf32>
      %220 = vector.extract_strided_slice %143 {offsets = [6, 0, 0], sizes = [1, 16, 128], strides = [1, 1, 1]} : vector<8x16x128xf32> to vector<1x16x128xf32>
      %221 = vector.shape_cast %220 : vector<1x16x128xf32> to vector<16x128xf32>
      %222 = arith.addf %219, %221 : vector<16x128xf32>
      %223 = vector.extract_strided_slice %140 {offsets = [6, 0, 0], sizes = [1, 16, 128], strides = [1, 1, 1]} : vector<8x16x128xf32> to vector<1x16x128xf32>
      %224 = vector.shape_cast %223 : vector<1x16x128xf32> to vector<16x128xf32>
      %225 = arith.mulf %222, %224 : vector<16x128xf32>
      %cst_67 = arith.constant dense<0.000000e+00> : vector<128xf32>
      %226 = vector.multi_reduction <add>, %225, %cst_67 [0] : vector<16x128xf32> to vector<128xf32>
      %227 = vector.shape_cast %226 : vector<128xf32> to vector<1x128xf32>
      %228 = vector.extract_strided_slice %132 {offsets = [7, 0, 0], sizes = [1, 16, 128], strides = [1, 1, 1]} : vector<8x16x128xbf16> to vector<1x16x128xbf16>
      %229 = vector.shape_cast %228 : vector<1x16x128xbf16> to vector<16x128xbf16>
      %230 = arith.extf %229 : vector<16x128xbf16> to vector<16x128xf32>
      %231 = arith.mulf %230, %222 : vector<16x128xf32>
      %232 = vector.extract_strided_slice %143 {offsets = [7, 0, 0], sizes = [1, 16, 128], strides = [1, 1, 1]} : vector<8x16x128xf32> to vector<1x16x128xf32>
      %233 = vector.shape_cast %232 : vector<1x16x128xf32> to vector<16x128xf32>
      %234 = arith.addf %231, %233 : vector<16x128xf32>
      %235 = vector.extract_strided_slice %140 {offsets = [7, 0, 0], sizes = [1, 16, 128], strides = [1, 1, 1]} : vector<8x16x128xf32> to vector<1x16x128xf32>
      %236 = vector.shape_cast %235 : vector<1x16x128xf32> to vector<16x128xf32>
      %237 = arith.mulf %234, %236 : vector<16x128xf32>
      %cst_68 = arith.constant dense<0.000000e+00> : vector<128xf32>
      %238 = vector.multi_reduction <add>, %237, %cst_68 [0] : vector<16x128xf32> to vector<128xf32>
      %239 = vector.shape_cast %238 : vector<128xf32> to vector<1x128xf32>
      %240 = tpu.concatenate %155, %167, %179, %191, %203, %215, %227, %239 in 0 : vector<1x128xf32>, vector<1x128xf32>, vector<1x128xf32>, vector<1x128xf32>, vector<1x128xf32>, vector<1x128xf32>, vector<1x128xf32>, vector<1x128xf32> -> vector<8x128xf32>
      %241 = arith.index_cast %119 : i32 to index
      %c0_69 = arith.constant 0 : index
      %242 = vector.load %arg19[%241, %c0_69] : memref<128x128xf32, #tpu.memory_space<vmem>>, vector<8x128xf32>
      tpu.vector_store %arg19[%241, %c0_69], %240 {strides = array<i32>} : memref<128x128xf32, #tpu.memory_space<vmem>>, vector<8x128xf32>,
      scf.yield %234 : vector<16x128xf32>
    }
    %c16_i32_44 = arith.constant 16 : i32
    %c0_45 = arith.constant 0 : index
    %c0_46 = arith.constant 0 : index
    %99 = vector.load %arg15[%c0_45, %c0_46] : memref<16x128xf32, #tpu.memory_space<vmem>>, vector<16x128xf32>
    tpu.vector_store %arg15[%c0_45, %c0_46], %98 {strides = array<i32>} : memref<16x128xf32, #tpu.memory_space<vmem>>, vector<16x128xf32>,
    %c0_47 = arith.constant 0 : index
    %c0_48 = arith.constant 0 : index
    %100 = vector.load %arg19[%c0_47, %c0_48] : memref<128x128xf32, #tpu.memory_space<vmem>>, vector<128x128xf32>
    %c0_49 = arith.constant 0 : index
    %c0_50 = arith.constant 0 : index
    %101 = vector.load %arg11[%c0_49, %c0_50] : memref<1x128xf32, #tpu.memory_space<vmem>>, vector<1x128xf32>
    %102 = vector.broadcast %101 : vector<1x128xf32> to vector<128x128xf32>
    %103 = arith.mulf %68, %102 : vector<128x128xf32>
    %104 = arith.addf %100, %103 : vector<128x128xf32>
    %105 = arith.negf %39 : vector<128x128xf32>
    %106 = math.exp %105 : vector<128x128xf32>
    %cst_51 = arith.constant 1.000000e+00 : f32
    %107 = vector.broadcast %cst_51 : f32 to vector<128x128xf32>
    %108 = arith.addf %107, %106 : vector<128x128xf32>
    %109 = arith.divf %107, %108 : vector<128x128xf32>
    %110 = arith.mulf %39, %109 : vector<128x128xf32>
    %111 = arith.mulf %104, %110 : vector<128x128xf32>
    %112 = arith.truncf %111 : vector<128x128xf32> to vector<128x128xbf16>
    %c0_52 = arith.constant 0 : index
    %c0_53 = arith.constant 0 : index
    %113 = vector.load %arg12[%c0_52, %c0_53] : memref<128x128xbf16, #tpu.memory_space<vmem>>, vector<128x128xbf16>
    %cst_54 = arith.constant dense<0.000000e+00> : vector<128x128xf32>
    %114 = tpu.matmul %112, %113, %cst_54 {dimension_numbers = #tpu.dot_dimension_numbers<[1], [0], [0], [1], [0, 0, 1, 1], [], []>} : vector<128x128xbf16>, vector<128x128xbf16>, vector<128x128xf32> -> vector<128x128xf32>
    %c0_55 = arith.constant 0 : index
    %c0_56 = arith.constant 0 : index
    %c0_57 = arith.constant 0 : index
    %115 = vector.load %arg13[%c0_55, %c0_56, %c0_57] : memref<1x128x128xf32, #tpu.memory_space<vmem>>, vector<1x128x128xf32>
    %116 = vector.shape_cast %115 : vector<1x128x128xf32> to vector<128x128xf32>
    %117 = vector.shape_cast %114 : vector<128x128xf32> to vector<1x128x128xf32>
    tpu.vector_store %arg13[%c0_55, %c0_56, %c0_57], %117 {strides = array<i32>} : memref<1x128x128xf32, #tpu.memory_space<vmem>>, vector<1x128x128xf32>,
    return
  }
  func.func @transform_0(%arg0: i32, %arg1: i32) -> (i32, i32, i32) {
    %c0_i32 = arith.constant 0 : i32
    %c0_i32_0 = arith.constant 0 : i32
    return %arg0, %arg1, %c0_i32 : i32, i32, i32
  }
  func.func @transform_1(%arg0: i32, %arg1: i32) -> (i32, i32) {
    %c0_i32 = arith.constant 0 : i32
    %c0_i32_0 = arith.constant 0 : i32
    %c0_i32_1 = arith.constant 0 : i32
    return %c0_i32, %c0_i32_0 : i32, i32
  }
  func.func @transform_2(%arg0: i32, %arg1: i32) -> (i32, i32) {
    %c0_i32 = arith.constant 0 : i32
    %c0_i32_0 = arith.constant 0 : i32
    %c0_i32_1 = arith.constant 0 : i32
    return %c0_i32, %c0_i32_0 : i32, i32
  }
  func.func @transform_3(%arg0: i32, %arg1: i32) -> (i32, i32) {
    %c0_i32 = arith.constant 0 : i32
    %c0_i32_0 = arith.constant 0 : i32
    %c0_i32_1 = arith.constant 0 : i32
    return %c0_i32, %c0_i32_0 : i32, i32
  }
  func.func @transform_4(%arg0: i32, %arg1: i32) -> (i32, i32) {
    %c0_i32 = arith.constant 0 : i32
    %c0_i32_0 = arith.constant 0 : i32
    %c0_i32_1 = arith.constant 0 : i32
    return %c0_i32, %c0_i32_0 : i32, i32
  }
  func.func @transform_5(%arg0: i32, %arg1: i32) -> (i32, i32) {
    %c0_i32 = arith.constant 0 : i32
    %c0_i32_0 = arith.constant 0 : i32
    %c0_i32_1 = arith.constant 0 : i32
    return %c0_i32, %c0_i32_0 : i32, i32
  }
  func.func @transform_6(%arg0: i32, %arg1: i32) -> (i32, i32) {
    %c0_i32 = arith.constant 0 : i32
    %c0_i32_0 = arith.constant 0 : i32
    %c0_i32_1 = arith.constant 0 : i32
    return %c0_i32, %c0_i32_0 : i32, i32
  }
  func.func @transform_7(%arg0: i32, %arg1: i32) -> (i32, i32) {
    %c0_i32 = arith.constant 0 : i32
    %c0_i32_0 = arith.constant 0 : i32
    %c0_i32_1 = arith.constant 0 : i32
    return %c0_i32, %c0_i32_0 : i32, i32
  }
  func.func @transform_8(%arg0: i32, %arg1: i32) -> (i32, i32) {
    %c0_i32 = arith.constant 0 : i32
    %c0_i32_0 = arith.constant 0 : i32
    %c0_i32_1 = arith.constant 0 : i32
    return %c0_i32, %c0_i32_0 : i32, i32
  }
  func.func @transform_9(%arg0: i32, %arg1: i32) -> (i32, i32) {
    %c0_i32 = arith.constant 0 : i32
    %c0_i32_0 = arith.constant 0 : i32
    %c0_i32_1 = arith.constant 0 : i32
    return %c0_i32, %c0_i32_0 : i32, i32
  }
  func.func @transform_10(%arg0: i32, %arg1: i32) -> (i32, i32) {
    %c0_i32 = arith.constant 0 : i32
    %c0_i32_0 = arith.constant 0 : i32
    %c0_i32_1 = arith.constant 0 : i32
    return %c0_i32, %c0_i32_0 : i32, i32
  }
  func.func @transform_11(%arg0: i32, %arg1: i32) -> (i32, i32, i32) {
    %c0_i32 = arith.constant 0 : i32
    %c0_i32_0 = arith.constant 0 : i32
    return %arg0, %arg1, %c0_i32 : i32, i32, i32
  }
}

</mosaic_0001>

<llo_original>
// kernel: _lambda_.1
$region0: #{_lambda_.1}
  #allocation0 [shape = 'u32[]', space=smem, size = 0x4, offset = 0x4, fixed_abs, tag = 'smem constant byte address 0x4 - core index']
  #allocation1 [shape = 'u32[144,128]{1,0:T(1,128)}', space=vmem, size = 0x12000, scoped, tag = 'internal scratch']
  #allocation2 [shape = 'f32[136,128]{1,0:T(8,128)}', space=vmem, size = 0x11000, scoped, tag = 'scratch operand']
  #allocation3 [shape = 'f32[16,128]{1,0:T(8,128)}', space=vmem, size = 0x2000, scoped, tag = 'scratch operand']
  #allocation4 [shape = 'f32[128,128]{1,0:T(8,128)}', space=vmem, size = 0x10000, scoped, tag = 'scratch operand']
  #allocation5 [shape = 'f32[128,128]{1,0:T(8,128)}', space=vmem, size = 0x10000, scoped, tag = 'scratch operand']
  #allocation6 [shape = 'f32[128,32]{1,0:T(8,128)}', space=vmem, size = 0x10000, scoped, tag = 'scratch operand']
  #allocation7 [shape = 'f32[128,128]{1,0:T(8,128)}', space=vmem, size = 0x10000, scoped, tag = 'scratch operand']
  %s0 = inlined_call_operand.vmem [shape: f32[2,256,128], index: 0, kind: input, shape index: {}]
  %s1 = inlined_call_operand.vmem [shape: f32[1,128], index: 1, kind: input, shape index: {}]
  %s2 = inlined_call_operand.vmem [shape: f32[1,128], index: 2, kind: input, shape index: {}]
  %s3 = inlined_call_operand.vmem [shape: bf16[128,256], index: 3, kind: input, shape index: {}]
  %s4 = inlined_call_operand.vmem [shape: f32[4,128], index: 4, kind: input, shape index: {}]
  %s5 = inlined_call_operand.vmem [shape: f32[1,128], index: 5, kind: input, shape index: {}]
  %s6 = inlined_call_operand.vmem [shape: bf16[128,160], index: 6, kind: input, shape index: {}]
  %s7 = inlined_call_operand.vmem [shape: f32[1,128], index: 7, kind: input, shape index: {}]
  %s8 = inlined_call_operand.vmem [shape: f32[16,128], index: 8, kind: input, shape index: {}]
  %s9 = inlined_call_operand.vmem [shape: f32[1,128], index: 9, kind: input, shape index: {}]
  %s10 = inlined_call_operand.vmem [shape: bf16[128,128], index: 10, kind: input, shape index: {}]
  %s11 = inlined_call_operand.hbm [shape: f32[2,256,128], index: 11, kind: output, shape index: {}]
  %s12 = sld [smem:[#allocation0]]
  $region92: #{_lambda_.1} parent=0
    _
  %s14 = ssub.s32 1, %s12
  %s15 = scalar_select 0, %s14, %s12
  $region1: #{_lambda_.1} parent=0
    #allocation8 [shape = 'u8[131072]{0}', space=vmem, size = 0x20000, scoped, tag = 'output window, operand 0']
    #allocation9 [shape = 's32[2]{0}', space=sflag, size = 0x8, scoped, tag = 'scoped memory for _lambda_.1']
    %16 = vsyncpa [#allocation9], 0
    %s17 = scalar_lea.sflag [#allocation9], 1
    %18 = vsyncpa %s17, 0
    loop: start=0, step=1, limit=6
    $region2: #{_lambda_.1} parent=1 // loop_pre_header
      _
    $region3: #{_lambda_.1} parent=1 // loop_header
      %s20 = sphi 0, %s24
      %p21 = scmp.ge.s32.totalorder %s20, 6
      %s27 = sphi 0, %s39
      %s28 = sphi 0, %s35
      %s29 = sphi 0, %s27
      %s30 = sphi 0, %s28
      %s31 = sphi 0, %s29
      %s32 = sphi 0, %s30
      %s44 = sphi 0, %s46
      %s47 = sphi 0, %s44
      %s48 = sphi 0, %s47
      %s64 = sphi 0, %s48
      %s68 = sphi 0, %s68
      %s70 = sphi 0, %s68
      %s71 = sphi 0, %s70
      %s85 = sphi 0, %s71
      %s89 = sphi 0, %s89
      %s91 = sphi 0, %s89
      %s92 = sphi 0, %s91
      %s106 = sphi 0, %s92
      %s110 = sphi 0, %s110
      %s112 = sphi 0, %s110
      %s113 = sphi 0, %s112
      %s127 = sphi 0, %s113
      %s131 = sphi 0, %s131
      %s133 = sphi 0, %s131
      %s134 = sphi 0, %s133
      %s148 = sphi 0, %s134
      %s152 = sphi 0, %s152
      %s154 = sphi 0, %s152
      %s155 = sphi 0, %s154
      %s169 = sphi 0, %s155
      %s173 = sphi 0, %s173
      %s175 = sphi 0, %s173
      %s176 = sphi 0, %s175
      %s190 = sphi 0, %s176
      %s194 = sphi 0, %s194
      %s196 = sphi 0, %s194
      %s197 = sphi 0, %s196
      %s211 = sphi 0, %s197
      %s215 = sphi 0, %s215
      %s217 = sphi 0, %s215
      %s218 = sphi 0, %s217
      %s232 = sphi 0, %s218
      %s236 = sphi 0, %s236
      %s238 = sphi 0, %s236
      %s239 = sphi 0, %s238
      %s253 = sphi 0, %s239
      %s257 = sphi 0, %s257
      %s259 = sphi 0, %s257
      %s260 = sphi 0, %s259
      %s274 = sphi 0, %s260
      %s282 = sphi 0, %s284
      %s285 = sphi 0, %s282
      %s286 = sphi 0, %s285
      %s302 = sphi 0, %s286
    $region4: #{_lambda_.1} parent=1 // loop_header_branch
      %23 = sbr.rel (%p21) target = $region8
    $region5: #{_lambda_.1} parent=1 // loop_body
      %s25 = ssub.s32 %s20, 1
      %s26 = ssub.s32 %s20, 2
      %s33 = sadd.s32 1, %s28
      %p34 = scmp.ge.s32.totalorder %s33, 2
      %s35 = scalar_select %p34, 0, %s33
      %s36 = sadd.s32 1, %s27
      %s37 = scalar_select %p34, %s36, %s27
      %p38 = scmp.ge.s32.totalorder %s37, 2
      %s39 = scalar_select %p38, 0, %s37
      %s40 = ssub.s32 %s27, %s39
      %s41 = ssub.s32 %s28, %s35
      %s42 = sor.u32 %s40, %s41
      %p43 = scmp.eq.s32.totalorder %s42, 0
      %s45 = sadd.s32 %s44, 1
      %s46 = scalar_select %p43, %s44, %s45
      %p49 = pneg %p43
      %p50 = scmp.eq.s32.totalorder %s20, 3
      %p51 = por %p49, %p50
      %p52 = scmp.ne.s32.totalorder %s44, %s47
      %p53 = scmp.eq.s32.totalorder %s20, 0
      %p54 = por %p52, %p53
      %p55 = scmp.ne.s32.totalorder %s44, %s47
      %p56 = scmp.eq.s32.totalorder %s25, 3
      %p57 = por %p55, %p56
      %p58 = scmp.ne.s32.totalorder %s47, %s48
      %p59 = scmp.eq.s32.totalorder %s25, 0
      %p60 = por %p58, %p59
      %p61 = scmp.ne.s32.totalorder %s47, %s48
      %p62 = scmp.eq.s32.totalorder %s26, 3
      %p63 = por %p61, %p62
      %p65 = scmp.ne.s32.totalorder %s48, %s64
      %p66 = scmp.eq.s32.totalorder %s26, 0
      %p67 = por %p65, %p66
      %s69 = sadd.s32 %s68, 1
      %p72 = scmp.eq.s32.totalorder %s20, 3
      %p73 = scmp.ne.s32.totalorder %s68, %s70
      %p74 = scmp.eq.s32.totalorder %s20, 0
      %p75 = por %p73, %p74
      %p76 = scmp.ne.s32.totalorder %s68, %s70
      %p77 = scmp.eq.s32.totalorder %s25, 3
      %p78 = por %p76, %p77
      %p79 = scmp.ne.s32.totalorder %s70, %s71
      %p80 = scmp.eq.s32.totalorder %s25, 0
      %p81 = por %p79, %p80
      %p82 = scmp.ne.s32.totalorder %s70, %s71
      %p83 = scmp.eq.s32.totalorder %s26, 3
      %p84 = por %p82, %p83
      %p86 = scmp.ne.s32.totalorder %s71, %s85
      %p87 = scmp.eq.s32.totalorder %s26, 0
      %p88 = por %p86, %p87
      %s90 = sadd.s32 %s89, 1
      %p93 = scmp.eq.s32.totalorder %s20, 3
      %p94 = scmp.ne.s32.totalorder %s89, %s91
      %p95 = scmp.eq.s32.totalorder %s20, 0
      %p96 = por %p94, %p95
      %p97 = scmp.ne.s32.totalorder %s89, %s91
      %p98 = scmp.eq.s32.totalorder %s25, 3
      %p99 = por %p97, %p98
      %p100 = scmp.ne.s32.totalorder %s91, %s92
      %p101 = scmp.eq.s32.totalorder %s25, 0
      %p102 = por %p100, %p101
      %p103 = scmp.ne.s32.totalorder %s91, %s92
      %p104 = scmp.eq.s32.totalorder %s26, 3
      %p105 = por %p103, %p104
      %p107 = scmp.ne.s32.totalorder %s92, %s106
      %p108 = scmp.eq.s32.totalorder %s26, 0
      %p109 = por %p107, %p108
      %s111 = sadd.s32 %s110, 1
      %p114 = scmp.eq.s32.totalorder %s20, 3
      %p115 = scmp.ne.s32.totalorder %s110, %s112
      %p116 = scmp.eq.s32.totalorder %s20, 0
      %p117 = por %p115, %p116
      %p118 = scmp.ne.s32.totalorder %s110, %s112
      %p119 = scmp.eq.s32.totalorder %s25, 3
      %p120 = por %p118, %p119
      %p121 = scmp.ne.s32.totalorder %s112, %s113
      %p122 = scmp.eq.s32.totalorder %s25, 0
      %p123 = por %p121, %p122
      %p124 = scmp.ne.s32.totalorder %s112, %s113
      %p125 = scmp.eq.s32.totalorder %s26, 3
      %p126 = por %p124, %p125
      %p128 = scmp.ne.s32.totalorder %s113, %s127
      %p129 = scmp.eq.s32.totalorder %s26, 0
      %p130 = por %p128, %p129
      %s132 = sadd.s32 %s131, 1
      %p135 = scmp.eq.s32.totalorder %s20, 3
      %p136 = scmp.ne.s32.totalorder %s131, %s133
      %p137 = scmp.eq.s32.totalorder %s20, 0
      %p138 = por %p136, %p137
      %p139 = scmp.ne.s32.totalorder %s131, %s133
      %p140 = scmp.eq.s32.totalorder %s25, 3
      %p141 = por %p139, %p140
      %p142 = scmp.ne.s32.totalorder %s133, %s134
      %p143 = scmp.eq.s32.totalorder %s25, 0
      %p144 = por %p142, %p143
      %p145 = scmp.ne.s32.totalorder %s133, %s134
      %p146 = scmp.eq.s32.totalorder %s26, 3
      %p147 = por %p145, %p146
      %p149 = scmp.ne.s32.totalorder %s134, %s148
      %p150 = scmp.eq.s32.totalorder %s26, 0
      %p151 = por %p149, %p150
      %s153 = sadd.s32 %s152, 1
      %p156 = scmp.eq.s32.totalorder %s20, 3
      %p157 = scmp.ne.s32.totalorder %s152, %s154
      %p158 = scmp.eq.s32.totalorder %s20, 0
      %p159 = por %p157, %p158
      %p160 = scmp.ne.s32.totalorder %s152, %s154
      %p161 = scmp.eq.s32.totalorder %s25, 3
      %p162 = por %p160, %p161
      %p163 = scmp.ne.s32.totalorder %s154, %s155
      %p164 = scmp.eq.s32.totalorder %s25, 0
      %p165 = por %p163, %p164
      %p166 = scmp.ne.s32.totalorder %s154, %s155
      %p167 = scmp.eq.s32.totalorder %s26, 3
      %p168 = por %p166, %p167
      %p170 = scmp.ne.s32.totalorder %s155, %s169
      %p171 = scmp.eq.s32.totalorder %s26, 0
      %p172 = por %p170, %p171
      %s174 = sadd.s32 %s173, 1
      %p177 = scmp.eq.s32.totalorder %s20, 3
      %p178 = scmp.ne.s32.totalorder %s173, %s175
      %p179 = scmp.eq.s32.totalorder %s20, 0
      %p180 = por %p178, %p179
      %p181 = scmp.ne.s32.totalorder %s173, %s175
      %p182 = scmp.eq.s32.totalorder %s25, 3
      %p183 = por %p181, %p182
      %p184 = scmp.ne.s32.totalorder %s175, %s176
      %p185 = scmp.eq.s32.totalorder %s25, 0
      %p186 = por %p184, %p185
      %p187 = scmp.ne.s32.totalorder %s175, %s176
      %p188 = scmp.eq.s32.totalorder %s26, 3
      %p189 = por %p187, %p188
      %p191 = scmp.ne.s32.totalorder %s176, %s190
      %p192 = scmp.eq.s32.totalorder %s26, 0
      %p193 = por %p191, %p192
      %s195 = sadd.s32 %s194, 1
      %p198 = scmp.eq.s32.totalorder %s20, 3
      %p199 = scmp.ne.s32.totalorder %s194, %s196
      %p200 = scmp.eq.s32.totalorder %s20, 0
      %p201 = por %p199, %p200
      %p202 = scmp.ne.s32.totalorder %s194, %s196
      %p203 = scmp.eq.s32.totalorder %s25, 3
      %p204 = por %p202, %p203
      %p205 = scmp.ne.s32.totalorder %s196, %s197
      %p206 = scmp.eq.s32.totalorder %s25, 0
      %p207 = por %p205, %p206
      %p208 = scmp.ne.s32.totalorder %s196, %s197
      %p209 = scmp.eq.s32.totalorder %s26, 3
      %p210 = por %p208, %p209
      %p212 = scmp.ne.s32.totalorder %s197, %s211
      %p213 = scmp.eq.s32.totalorder %s26, 0
      %p214 = por %p212, %p213
      %s216 = sadd.s32 %s215, 1
      %p219 = scmp.eq.s32.totalorder %s20, 3
      %p220 = scmp.ne.s32.totalorder %s215, %s217
      %p221 = scmp.eq.s32.totalorder %s20, 0
      %p222 = por %p220, %p221
      %p223 = scmp.ne.s32.totalorder %s215, %s217
      %p224 = scmp.eq.s32.totalorder %s25, 3
      %p225 = por %p223, %p224
      %p226 = scmp.ne.s32.totalorder %s217, %s218
      %p227 = scmp.eq.s32.totalorder %s25, 0
      %p228 = por %p226, %p227
      %p229 = scmp.ne.s32.totalorder %s217, %s218
      %p230 = scmp.eq.s32.totalorder %s26, 3
      %p231 = por %p229, %p230
      %p233 = scmp.ne.s32.totalorder %s218, %s232
      %p234 = scmp.eq.s32.totalorder %s26, 0
      %p235 = por %p233, %p234
      %s237 = sadd.s32 %s236, 1
      %p240 = scmp.eq.s32.totalorder %s20, 3
      %p241 = scmp.ne.s32.totalorder %s236, %s238
      %p242 = scmp.eq.s32.totalorder %s20, 0
      %p243 = por %p241, %p242
      %p244 = scmp.ne.s32.totalorder %s236, %s238
      %p245 = scmp.eq.s32.totalorder %s25, 3
      %p246 = por %p244, %p245
      %p247 = scmp.ne.s32.totalorder %s238, %s239
      %p248 = scmp.eq.s32.totalorder %s25, 0
      %p249 = por %p247, %p248
      %p250 = scmp.ne.s32.totalorder %s238, %s239
      %p251 = scmp.eq.s32.totalorder %s26, 3
      %p252 = por %p250, %p251
      %p254 = scmp.ne.s32.totalorder %s239, %s253
      %p255 = scmp.eq.s32.totalorder %s26, 0
      %p256 = por %p254, %p255
      %s258 = sadd.s32 %s257, 1
      %p261 = scmp.eq.s32.totalorder %s20, 3
      %p262 = scmp.ne.s32.totalorder %s257, %s259
      %p263 = scmp.eq.s32.totalorder %s20, 0
      %p264 = por %p262, %p263
      %p265 = scmp.ne.s32.totalorder %s257, %s259
      %p266 = scmp.eq.s32.totalorder %s25, 3
      %p267 = por %p265, %p266
      %p268 = scmp.ne.s32.totalorder %s259, %s260
      %p269 = scmp.eq.s32.totalorder %s25, 0
      %p270 = por %p268, %p269
      %p271 = scmp.ne.s32.totalorder %s259, %s260
      %p272 = scmp.eq.s32.totalorder %s26, 3
      %p273 = por %p271, %p272
      %p275 = scmp.ne.s32.totalorder %s260, %s274
      %p276 = scmp.eq.s32.totalorder %s26, 0
      %p277 = por %p275, %p276
      %s278 = ssub.s32 %s27, %s39
      %s279 = ssub.s32 %s28, %s35
      %s280 = sor.u32 %s278, %s279
      %p281 = scmp.eq.s32.totalorder %s280, 0
      %s283 = sadd.s32 %s282, 1
      %s284 = scalar_select %p281, %s282, %s283
      %p287 = pneg %p281
      %p288 = scmp.eq.s32.totalorder %s20, 3
      %p289 = por %p287, %p288
      %p290 = scmp.ne.s32.totalorder %s282, %s285
      %p291 = scmp.eq.s32.totalorder %s20, 0
      %p292 = por %p290, %p291
      %p293 = scmp.ne.s32.totalorder %s282, %s285
      %p294 = scmp.eq.s32.totalorder %s25, 3
      %p295 = por %p293, %p294
      %p296 = scmp.ne.s32.totalorder %s285, %s286
      %p297 = scmp.eq.s32.totalorder %s25, 0
      %p298 = por %p296, %p297
      %p299 = scmp.ne.s32.totalorder %s285, %s286
      %p300 = scmp.eq.s32.totalorder %s26, 3
      %p301 = por %p299, %p300
      %p303 = scmp.ne.s32.totalorder %s286, %s302
      %p304 = scmp.eq.s32.totalorder %s26, 0
      %p305 = por %p303, %p304
      %p306 = scmp.le.s32.totalorder 1, %s20
      %p307 = scmp.lt.s32.totalorder %s20, 5
      %p308 = pnand %p306, %p307
      %p309 = pneg %p308
      // Predicated region
      $region9: #{_lambda_.1} parent=5 // pred_check
        _
      $region10: #{_lambda_.1} parent=5 // pred_check_branch
        %311 = sbr.rel (%p308) target = $region12
      $region11: #{_lambda_.1} parent=5 // pred_region
        %s312 = ssub.s32 %s20, 1
        // Predicated region
        $region13: #{_lambda_.1} parent=11 // pred_check
          %p313 = pneg %p81
        $region14: #{_lambda_.1} parent=11 // pred_check_branch
          %315 = sbr.rel (%p313) target = $region16
        $region15: #{_lambda_.1} parent=11 // pred_region
          _
        $region16: #{_lambda_.1} parent=11 // pred_fallthru
          _
        // Predicated region
        $region17: #{_lambda_.1} parent=11 // pred_check
          %p316 = pneg %p102
        $region18: #{_lambda_.1} parent=11 // pred_check_branch
          %318 = sbr.rel (%p316) target = $region20
        $region19: #{_lambda_.1} parent=11 // pred_region
          _
        $region20: #{_lambda_.1} parent=11 // pred_fallthru
          _
        // Predicated region
        $region21: #{_lambda_.1} parent=11 // pred_check
          %p319 = pneg %p123
        $region22: #{_lambda_.1} parent=11 // pred_check_branch
          %321 = sbr.rel (%p319) target = $region24
        $region23: #{_lambda_.1} parent=11 // pred_region
          _
        $region24: #{_lambda_.1} parent=11 // pred_fallthru
          _
        // Predicated region
        $region25: #{_lambda_.1} parent=11 // pred_check
          %p322 = pneg %p144
        $region26: #{_lambda_.1} parent=11 // pred_check_branch
          %324 = sbr.rel (%p322) target = $region28
        $region27: #{_lambda_.1} parent=11 // pred_region
          _
        $region28: #{_lambda_.1} parent=11 // pred_fallthru
          _
        // Predicated region
        $region29: #{_lambda_.1} parent=11 // pred_check
          %p325 = pneg %p165
        $region30: #{_lambda_.1} parent=11 // pred_check_branch
          %327 = sbr.rel (%p325) target = $region32
        $region31: #{_lambda_.1} parent=11 // pred_region
          _
        $region32: #{_lambda_.1} parent=11 // pred_fallthru
          _
        // Predicated region
        $region33: #{_lambda_.1} parent=11 // pred_check
          %p328 = pneg %p186
        $region34: #{_lambda_.1} parent=11 // pred_check_branch
          %330 = sbr.rel (%p328) target = $region36
        $region35: #{_lambda_.1} parent=11 // pred_region
          _
        $region36: #{_lambda_.1} parent=11 // pred_fallthru
          _
        // Predicated region
        $region37: #{_lambda_.1} parent=11 // pred_check
          %p331 = pneg %p207
        $region38: #{_lambda_.1} parent=11 // pred_check_branch
          %333 = sbr.rel (%p331) target = $region40
        $region39: #{_lambda_.1} parent=11 // pred_region
          _
        $region40: #{_lambda_.1} parent=11 // pred_fallthru
          _
        // Predicated region
        $region41: #{_lambda_.1} parent=11 // pred_check
          %p334 = pneg %p228
        $region42: #{_lambda_.1} parent=11 // pred_check_branch
          %336 = sbr.rel (%p334) target = $region44
        $region43: #{_lambda_.1} parent=11 // pred_region
          _
        $region44: #{_lambda_.1} parent=11 // pred_fallthru
          _
        // Predicated region
        $region45: #{_lambda_.1} parent=11 // pred_check
          %p337 = pneg %p249
        $region46: #{_lambda_.1} parent=11 // pred_check_branch
          %339 = sbr.rel (%p337) target = $region48
        $region47: #{_lambda_.1} parent=11 // pred_region
          _
        $region48: #{_lambda_.1} parent=11 // pred_fallthru
          _
        // Predicated region
        $region49: #{_lambda_.1} parent=11 // pred_check
          %p340 = pneg %p270
        $region50: #{_lambda_.1} parent=11 // pred_check_branch
          %342 = sbr.rel (%p340) target = $region52
        $region51: #{_lambda_.1} parent=11 // pred_region
          _
        $region52: #{_lambda_.1} parent=11 // pred_fallthru
          _
      $region12: #{_lambda_.1} parent=5 // pred_fallthru
        _
      %p343 = scmp.lt.s32.totalorder %s20, 4
      // Predicated region
      $region53: #{_lambda_.1} parent=5 // pred_check
        %p344 = pneg %p343
      $region54: #{_lambda_.1} parent=5 // pred_check_branch
        %346 = sbr.rel (%p344) target = $region56
      $region55: #{_lambda_.1} parent=5 // pred_region
        // Predicated region
        $region57: #{_lambda_.1} parent=55 // pred_check
          %p347 = pneg %p54
        $region58: #{_lambda_.1} parent=55 // pred_check_branch
          %349 = sbr.rel (%p347) target = $region60
        $region59: #{_lambda_.1} parent=55 // pred_region
          %s350 = smul.u32 16, %s28
          %p351 = scmp.lt.s32.totalorder %s27, 1
          %s352 = scalar_select %p351, %s27, 1
          %p353 = scmp.lt.s32.totalorder %s350, 31
          %s354 = scalar_select %p353, %s350, 31
          %s355 = smul.addr %s352, 32
          %s356 = sadd.s32 %s354, %s355
          %s357 = smul.addr %s356, 8
          %s358 = scalar_lea.vmem %s0, %s357
          %s359 = smul.u32 16, %s28
        $region60: #{_lambda_.1} parent=55 // pred_fallthru
          _
      $region56: #{_lambda_.1} parent=5 // pred_fallthru
        _
      %p360 = scmp.le.s32.totalorder 1, %s20
      %p361 = scmp.lt.s32.totalorder %s20, 5
      %p362 = pnand %p360, %p361
      %p363 = pneg %p362
      // Predicated region
      $region61: #{_lambda_.1} parent=5 // pred_check
        _
      $region62: #{_lambda_.1} parent=5 // pred_check_branch
        %365 = sbr.rel (%p362) target = $region64
      $region63: #{_lambda_.1} parent=5 // pred_region
        %s366 = ssub.s32 %s20, 1
        %s367 = smul.u32 16, %s30
        %p368 = scmp.lt.s32.totalorder %s29, 1
        %s369 = scalar_select %p368, %s29, 1
        %p370 = scmp.lt.s32.totalorder %s367, 31
        %s371 = scalar_select %p370, %s367, 31
        %s372 = smul.addr %s369, 32
        %s373 = sadd.s32 %s371, %s372
        %s374 = smul.addr %s373, 8
        %s375 = scalar_lea.vmem %s0, %s374
        %p376 = pneg %p60
        %p377 = pneg %p57
        %p378 = pneg %p81
        %p379 = pneg %p78
        %p380 = pneg %p102
        %p381 = pneg %p99
        %p382 = pneg %p123
        %p383 = pneg %p120
        %p384 = pneg %p144
        %p385 = pneg %p141
        %p386 = pneg %p165
        %p387 = pneg %p162
        %p388 = pneg %p186
        %p389 = pneg %p183
        %p390 = pneg %p207
        %p391 = pneg %p204
        %p392 = pneg %p228
        %p393 = pneg %p225
        %p394 = pneg %p249
        %p395 = pneg %p246
        %p396 = pneg %p270
        %p397 = pneg %p267
        %p398 = pneg %p298
        %p399 = pneg %p295
        %s400 = sand.u32 %s285, 1
        %s401 = scalar_lea.sflag [#allocation9], %s400
        %s402 = sand.u32 %s285, 1
        %s403 = smul.addr %s402, 128
        %s404 = scalar_lea.vmem [#allocation8], %s403
        %s405 = smul.u32 16, %s30
        %p406 = scmp.lt.s32.totalorder %s29, 1
        %s407 = scalar_select %p406, %s29, 1
        %p408 = scmp.lt.s32.totalorder %s405, 31
        %s409 = scalar_select %p408, %s405, 31
        %s410 = smul.addr %s407, 32
        %s411 = sadd.s32 %s409, %s410
        %s412 = smul.addr %s411, 8
        %s413 = scalar_lea.vmem %s0, %s412
        %s414 = smul.u32 16, %s30
        %s415 = smul.u32 16, %s30
        %p417 = scmp.eq.s32.totalorder %s30, 0
        // Predicated region
        $region65: #{_lambda_.1} parent=63 // pred_check
          %p418 = pneg %p417
        $region66: #{_lambda_.1} parent=63 // pred_check_branch
          %420 = sbr.rel (%p418) target = $region68
        $region67: #{_lambda_.1} parent=63 // pred_region
          %421 = vst [vmem:[#allocation3] sm:$0xff] 0.0
          %422 = vst [vmem:[#allocation3 + $0x8] sm:$0xff] 0.0
          %423 = vst [vmem:[#allocation2 + $0x5] sm:$0x7] 0.0
        $region68: #{_lambda_.1} parent=63 // pred_fallthru
          _
        %p424 = scmp.ne.s32.totalorder %s30, 0
        // Predicated region
        $region69: #{_lambda_.1} parent=63 // pred_check
          %p425 = pneg %p424
        $region70: #{_lambda_.1} parent=63 // pred_check_branch
          %427 = sbr.rel (%p425) target = $region72
        $region71: #{_lambda_.1} parent=63 // pred_region
          %v428 = vld [vmem:[#allocation2 + $0x85] sm:$0x7]
          %429 = vst [vmem:[#allocation2 + $0x5] sm:$0x7] %v428
        $region72: #{_lambda_.1} parent=63 // pred_fallthru
          _
        %v430 = vld [vmem:[%s413] sm:$0xff]
        %v431 = vld [vmem:[%s413 + $0x8] sm:$0xff]
        %v432 = vld [vmem:[%s413 + $0x10] sm:$0xff]
        %v433 = vld [vmem:[%s413 + $0x18] sm:$0xff]
        %v434 = vld [vmem:[%s413 + $0x20] sm:$0xff]
        %v435 = vld [vmem:[%s413 + $0x28] sm:$0xff]
        %v436 = vld [vmem:[%s413 + $0x30] sm:$0xff]
        %v437 = vld [vmem:[%s413 + $0x38] sm:$0xff]
        %v438 = vld [vmem:[%s413 + $0x40] sm:$0xff]
        %v439 = vld [vmem:[%s413 + $0x48] sm:$0xff]
        %v440 = vld [vmem:[%s413 + $0x50] sm:$0xff]
        %v441 = vld [vmem:[%s413 + $0x58] sm:$0xff]
        %v442 = vld [vmem:[%s413 + $0x60] sm:$0xff]
        %v443 = vld [vmem:[%s413 + $0x68] sm:$0xff]
        %v444 = vld [vmem:[%s413 + $0x70] sm:$0xff]
        %v445 = vld [vmem:[%s413 + $0x78] sm:$0xff]
        %446 = vadd.xlane.f32.xlu0 %v430
        %v447 = vpop.xlane.xlu0 %446
        %448 = vadd.xlane.f32.xlu0 %v431
        %v449 = vpop.xlane.xlu0 %448
        %450 = vadd.xlane.f32.xlu0 %v432
        %v451 = vpop.xlane.xlu0 %450
        %452 = vadd.xlane.f32.xlu0 %v433
        %v453 = vpop.xlane.xlu0 %452
        %454 = vadd.xlane.f32.xlu0 %v434
        %v455 = vpop.xlane.xlu0 %454
        %456 = vadd.xlane.f32.xlu0 %v435
        %v457 = vpop.xlane.xlu0 %456
        %458 = vadd.xlane.f32.xlu0 %v436
        %v459 = vpop.xlane.xlu0 %458
        %460 = vadd.xlane.f32.xlu0 %v437
        %v461 = vpop.xlane.xlu0 %460
        %462 = vadd.xlane.f32.xlu0 %v438
        %v463 = vpop.xlane.xlu0 %462
        %464 = vadd.xlane.f32.xlu0 %v439
        %v465 = vpop.xlane.xlu0 %464
        %466 = vadd.xlane.f32.xlu0 %v440
        %v467 = vpop.xlane.xlu0 %466
        %468 = vadd.xlane.f32.xlu0 %v441
        %v469 = vpop.xlane.xlu0 %468
        %470 = vadd.xlane.f32.xlu0 %v442
        %v471 = vpop.xlane.xlu0 %470
        %472 = vadd.xlane.f32.xlu0 %v443
        %v473 = vpop.xlane.xlu0 %472
        %474 = vadd.xlane.f32.xlu0 %v444
        %v475 = vpop.xlane.xlu0 %474
        %476 = vadd.xlane.f32.xlu0 %v445
        %v477 = vpop.xlane.xlu0 %476
        %v478 = vmul.f32 %v447, 0.015625
        %v479 = vmul.f32 %v449, 0.015625
        %v480 = vmul.f32 %v451, 0.015625
        %v481 = vmul.f32 %v453, 0.015625
        %v482 = vmul.f32 %v455, 0.015625
        %v483 = vmul.f32 %v457, 0.015625
        %v484 = vmul.f32 %v459, 0.015625
        %v485 = vmul.f32 %v461, 0.015625
        %v486 = vmul.f32 %v463, 0.015625
        %v487 = vmul.f32 %v465, 0.015625
        %v488 = vmul.f32 %v467, 0.015625
        %v489 = vmul.f32 %v469, 0.015625
        %v490 = vmul.f32 %v471, 0.015625
        %v491 = vmul.f32 %v473, 0.015625
        %v492 = vmul.f32 %v475, 0.015625
        %v493 = vmul.f32 %v477, 0.015625
        %v494 = vlaneseq
        %v495 = vand.u32 %v494, 127
        %vm496 = vcmp.lt.s32.totalorder %v495, 64
        %v497 = vsub.f32 %v430, %v478
        %v498 = vsub.f32 %v431, %v479
        %v499 = vsub.f32 %v432, %v480
        %v500 = vsub.f32 %v433, %v481
        %v501 = vsub.f32 %v434, %v482
        %v502 = vsub.f32 %v435, %v483
        %v503 = vsub.f32 %v436, %v484
        %v504 = vsub.f32 %v437, %v485
        %v505 = vsub.f32 %v438, %v486
        %v506 = vsub.f32 %v439, %v487
        %v507 = vsub.f32 %v440, %v488
        %v508 = vsub.f32 %v441, %v489
        %v509 = vsub.f32 %v442, %v490
        %v510 = vsub.f32 %v443, %v491
        %v511 = vsub.f32 %v444, %v492
        %v512 = vsub.f32 %v445, %v493
        %v513 = vsel %vm496, %v497, 0.0
        %v514 = vsel %vm496, %v498, 0.0
        %v515 = vsel %vm496, %v499, 0.0
        %v516 = vsel %vm496, %v500, 0.0
        %v517 = vsel %vm496, %v501, 0.0
        %v518 = vsel %vm496, %v502, 0.0
        %v519 = vsel %vm496, %v503, 0.0
        %v520 = vsel %vm496, %v504, 0.0
        %v521 = vsel %vm496, %v505, 0.0
        %v522 = vsel %vm496, %v506, 0.0
        %v523 = vsel %vm496, %v507, 0.0
        %v524 = vsel %vm496, %v508, 0.0
        %v525 = vsel %vm496, %v509, 0.0
        %v526 = vsel %vm496, %v510, 0.0
        %v527 = vsel %vm496, %v511, 0.0
        %v528 = vsel %vm496, %v512, 0.0
        %v529 = vmul.f32 %v513, %v513
        %v530 = vmul.f32 %v514, %v514
        %v531 = vmul.f32 %v515, %v515
        %v532 = vmul.f32 %v516, %v516
        %v533 = vmul.f32 %v517, %v517
        %v534 = vmul.f32 %v518, %v518
        %v535 = vmul.f32 %v519, %v519
        %v536 = vmul.f32 %v520, %v520
        %v537 = vmul.f32 %v521, %v521
        %v538 = vmul.f32 %v522, %v522
        %v539 = vmul.f32 %v523, %v523
        %v540 = vmul.f32 %v524, %v524
        %v541 = vmul.f32 %v525, %v525
        %v542 = vmul.f32 %v526, %v526
        %v543 = vmul.f32 %v527, %v527
        %v544 = vmul.f32 %v528, %v528
        %545 = vadd.xlane.f32.xlu0 %v529
        %v546 = vpop.xlane.xlu0 %545
        %547 = vadd.xlane.f32.xlu0 %v530
        %v548 = vpop.xlane.xlu0 %547
        %549 = vadd.xlane.f32.xlu0 %v531
        %v550 = vpop.xlane.xlu0 %549
        %551 = vadd.xlane.f32.xlu0 %v532
        %v552 = vpop.xlane.xlu0 %551
        %553 = vadd.xlane.f32.xlu0 %v533
        %v554 = vpop.xlane.xlu0 %553
        %555 = vadd.xlane.f32.xlu0 %v534
        %v556 = vpop.xlane.xlu0 %555
        %557 = vadd.xlane.f32.xlu0 %v535
        %v558 = vpop.xlane.xlu0 %557
        %559 = vadd.xlane.f32.xlu0 %v536
        %v560 = vpop.xlane.xlu0 %559
        %561 = vadd.xlane.f32.xlu0 %v537
        %v562 = vpop.xlane.xlu0 %561
        %563 = vadd.xlane.f32.xlu0 %v538
        %v564 = vpop.xlane.xlu0 %563
        %565 = vadd.xlane.f32.xlu0 %v539
        %v566 = vpop.xlane.xlu0 %565
        %567 = vadd.xlane.f32.xlu0 %v540
        %v568 = vpop.xlane.xlu0 %567
        %569 = vadd.xlane.f32.xlu0 %v541
        %v570 = vpop.xlane.xlu0 %569
        %571 = vadd.xlane.f32.xlu0 %v542
        %v572 = vpop.xlane.xlu0 %571
        %573 = vadd.xlane.f32.xlu0 %v543
        %v574 = vpop.xlane.xlu0 %573
        %575 = vadd.xlane.f32.xlu0 %v544
        %v576 = vpop.xlane.xlu0 %575
        %v577 = vmul.f32 %v546, 0.015625
        %v578 = vmul.f32 %v548, 0.015625
        %v579 = vmul.f32 %v550, 0.015625
        %v580 = vmul.f32 %v552, 0.015625
        %v581 = vmul.f32 %v554, 0.015625
        %v582 = vmul.f32 %v556, 0.015625
        %v583 = vmul.f32 %v558, 0.015625
        %v584 = vmul.f32 %v560, 0.015625
        %v585 = vmul.f32 %v562, 0.015625
        %v586 = vmul.f32 %v564, 0.015625
        %v587 = vmul.f32 %v566, 0.015625
        %v588 = vmul.f32 %v568, 0.015625
        %v589 = vmul.f32 %v570, 0.015625
        %v590 = vmul.f32 %v572, 0.015625
        %v591 = vmul.f32 %v574, 0.015625
        %v592 = vmul.f32 %v576, 0.015625
        %v593 = vadd.f32 %v577, 1e-05
        %v594 = vadd.f32 %v578, 1e-05
        %v595 = vadd.f32 %v579, 1e-05
        %v596 = vadd.f32 %v580, 1e-05
        %v597 = vadd.f32 %v581, 1e-05
        %v598 = vadd.f32 %v582, 1e-05
        %v599 = vadd.f32 %v583, 1e-05
        %v600 = vadd.f32 %v584, 1e-05
        %v601 = vadd.f32 %v585, 1e-05
        %v602 = vadd.f32 %v586, 1e-05
        %v603 = vadd.f32 %v587, 1e-05
        %v604 = vadd.f32 %v588, 1e-05
        %v605 = vadd.f32 %v589, 1e-05
        %v606 = vadd.f32 %v590, 1e-05
        %v607 = vadd.f32 %v591, 1e-05
        %v608 = vadd.f32 %v592, 1e-05
        %v609 = vrsqrt.pop %v593
        %v610 = vrsqrt.pop %v594
        %v611 = vrsqrt.pop %v595
        %v612 = vrsqrt.pop %v596
        %v613 = vrsqrt.pop %v597
        %v614 = vrsqrt.pop %v598
        %v615 = vrsqrt.pop %v599
        %v616 = vrsqrt.pop %v600
        %v617 = vrsqrt.pop %v601
        %v618 = vrsqrt.pop %v602
        %v619 = vrsqrt.pop %v603
        %v620 = vrsqrt.pop %v604
        %v621 = vrsqrt.pop %v605
        %v622 = vrsqrt.pop %v606
        %v623 = vrsqrt.pop %v607
        %v624 = vrsqrt.pop %v608
        %v625 = vmul.f32 %v513, %v609
        %v626 = vmul.f32 %v514, %v610
        %v627 = vmul.f32 %v515, %v611
        %v628 = vmul.f32 %v516, %v612
        %v629 = vmul.f32 %v517, %v613
        %v630 = vmul.f32 %v518, %v614
        %v631 = vmul.f32 %v519, %v615
        %v632 = vmul.f32 %v520, %v616
        %v633 = vmul.f32 %v521, %v617
        %v634 = vmul.f32 %v522, %v618
        %v635 = vmul.f32 %v523, %v619
        %v636 = vmul.f32 %v524, %v620
        %v637 = vmul.f32 %v525, %v621
        %v638 = vmul.f32 %v526, %v622
        %v639 = vmul.f32 %v527, %v623
        %v640 = vmul.f32 %v528, %v624
        %v641 = vld [vmem:[%s1] sm:$0x1]
        %v643 = vlaneseq
        %v644 = vshrl.u32 %v643, 7
        %v645 = vsub.s32 0, %v644
        %v646 = vrot.slane %v641, %v645
        %v648 = vmul.f32 %v625, %v646
        %v649 = vmul.f32 %v626, %v646
        %v650 = vmul.f32 %v627, %v646
        %v651 = vmul.f32 %v628, %v646
        %v652 = vmul.f32 %v629, %v646
        %v653 = vmul.f32 %v630, %v646
        %v654 = vmul.f32 %v631, %v646
        %v655 = vmul.f32 %v632, %v646
        %v656 = vmul.f32 %v633, %v646
        %v657 = vmul.f32 %v634, %v646
        %v658 = vmul.f32 %v635, %v646
        %v659 = vmul.f32 %v636, %v646
        %v660 = vmul.f32 %v637, %v646
        %v661 = vmul.f32 %v638, %v646
        %v662 = vmul.f32 %v639, %v646
        %v663 = vmul.f32 %v640, %v646
        %v664 = vld [vmem:[%s2] sm:$0x1]
        %v666 = vlaneseq
        %v667 = vshrl.u32 %v666, 7
        %v668 = vsub.s32 0, %v667
        %v669 = vrot.slane %v664, %v668
        %v671 = vadd.f32 %v648, %v669
        %v672 = vadd.f32 %v649, %v669
        %v673 = vadd.f32 %v650, %v669
        %v674 = vadd.f32 %v651, %v669
        %v675 = vadd.f32 %v652, %v669
        %v676 = vadd.f32 %v653, %v669
        %v677 = vadd.f32 %v654, %v669
        %v678 = vadd.f32 %v655, %v669
        %v679 = vadd.f32 %v656, %v669
        %v680 = vadd.f32 %v657, %v669
        %v681 = vadd.f32 %v658, %v669
        %v682 = vadd.f32 %v659, %v669
        %v683 = vadd.f32 %v660, %v669
        %v684 = vadd.f32 %v661, %v669
        %v685 = vadd.f32 %v662, %v669
        %v686 = vadd.f32 %v663, %v669
        %v687 = vpack.c.bf16 %v672, %v671
        %v688 = vpack.c.bf16 %v674, %v673
        %v689 = vpack.c.bf16 %v676, %v675
        %v690 = vpack.c.bf16 %v678, %v677
        %v691 = vpack.c.bf16 %v680, %v679
        %v692 = vpack.c.bf16 %v682, %v681
        %v693 = vpack.c.bf16 %v684, %v683
        %v694 = vpack.c.bf16 %v686, %v685
        %v695 = vld [vmem:[%s3] sm:$0xff]
        %v696 = vld [vmem:[%s3 + $0x8] sm:$0xff]
        %v697 = vld [vmem:[%s3 + $0x10] sm:$0xff]
        %v698 = vld [vmem:[%s3 + $0x18] sm:$0xff]
        %v699 = vld [vmem:[%s3 + $0x20] sm:$0xff]
        %v700 = vld [vmem:[%s3 + $0x28] sm:$0xff]
        %v701 = vld [vmem:[%s3 + $0x30] sm:$0xff]
        %v702 = vld [vmem:[%s3 + $0x38] sm:$0xff]
        %v703 = vld [vmem:[%s3 + $0x40] sm:$0xff]
        %v704 = vld [vmem:[%s3 + $0x48] sm:$0xff]
        %v705 = vld [vmem:[%s3 + $0x50] sm:$0xff]
        %v706 = vld [vmem:[%s3 + $0x58] sm:$0xff]
        %v707 = vld [vmem:[%s3 + $0x60] sm:$0xff]
        %v708 = vld [vmem:[%s3 + $0x68] sm:$0xff]
        %v709 = vld [vmem:[%s3 + $0x70] sm:$0xff]
        %v710 = vld [vmem:[%s3 + $0x78] sm:$0xff]
        %v727 = vunpack.c.l.b16 %v695
        %v728 = vunpack.c.h.b16 %v695
        %v729 = vunpack.c.l.b16 %v696
        %v730 = vunpack.c.h.b16 %v696
        %v731 = vunpack.c.l.b16 %v697
        %v732 = vunpack.c.h.b16 %v697
        %v733 = vunpack.c.l.b16 %v698
        %v734 = vunpack.c.h.b16 %v698
        %v735 = vunpack.c.l.b16 %v699
        %v736 = vunpack.c.h.b16 %v699
        %v737 = vunpack.c.l.b16 %v700
        %v738 = vunpack.c.h.b16 %v700
        %v739 = vunpack.c.l.b16 %v701
        %v740 = vunpack.c.h.b16 %v701
        %v741 = vunpack.c.l.b16 %v702
        %v742 = vunpack.c.h.b16 %v702
        %v743 = vunpack.c.l.b16 %v703
        %v744 = vunpack.c.h.b16 %v703
        %v745 = vunpack.c.l.b16 %v704
        %v746 = vunpack.c.h.b16 %v704
        %v747 = vunpack.c.l.b16 %v705
        %v748 = vunpack.c.h.b16 %v705
        %v749 = vunpack.c.l.b16 %v706
        %v750 = vunpack.c.h.b16 %v706
        %v751 = vunpack.c.l.b16 %v707
        %v752 = vunpack.c.h.b16 %v707
        %v753 = vunpack.c.l.b16 %v708
        %v754 = vunpack.c.h.b16 %v708
        %v755 = vunpack.c.l.b16 %v709
        %v756 = vunpack.c.h.b16 %v709
        %v757 = vunpack.c.l.b16 %v710
        %v758 = vunpack.c.h.b16 %v710
        %v759 = vpack.c.b16 %v729, %v727
        %v760 = vpack.c.b16 %v730, %v728
        %v761 = vpack.c.b16 %v733, %v731
        %v762 = vpack.c.b16 %v734, %v732
        %v763 = vpack.c.b16 %v737, %v735
        %v764 = vpack.c.b16 %v738, %v736
        %v765 = vpack.c.b16 %v741, %v739
        %v766 = vpack.c.b16 %v742, %v740
        %v767 = vpack.c.b16 %v745, %v743
        %v768 = vpack.c.b16 %v746, %v744
        %v769 = vpack.c.b16 %v749, %v747
        %v770 = vpack.c.b16 %v750, %v748
        %v771 = vpack.c.b16 %v753, %v751
        %v772 = vpack.c.b16 %v754, %v752
        %v773 = vpack.c.b16 %v757, %v755
        %v774 = vpack.c.b16 %v758, %v756
        %791 = vmatprep.subr.bf16.mxu0 %v760
        %792 = vmatpush1.bf16.msra.mxu0 %v759
        %793 = vmatprep.subr.bf16.mxu0 %v762
        %794 = vmatpush1.bf16.msra.mxu0 %v761
        %795 = vmatprep.subr.bf16.mxu0 %v764
        %796 = vmatpush1.bf16.msra.mxu0 %v763
        %797 = vmatprep.subr.bf16.mxu0 %v766
        %798 = vmatpush1.bf16.msra.mxu0 %v765
        %799 = vmatprep.subr.bf16.mxu0 %v768
        %800 = vmatpush1.bf16.msra.mxu0 %v767
        %801 = vmatprep.subr.bf16.mxu0 %v770
        %802 = vmatpush1.bf16.msra.mxu0 %v769
        %803 = vmatprep.subr.bf16.mxu0 %v772
        %804 = vmatpush1.bf16.msra.mxu0 %v771
        %805 = vmatprep.subr.bf16.mxu0 %v774
        %806 = vmatpush1.bf16.msra.mxu0 %v773
        %807 = vmatprep.subr.bf16.mxu0 0
        %808 = vmatpush1.bf16.msra.mxu0 0
        %809 = vmatprep.subr.bf16.mxu0 0
        %810 = vmatpush1.bf16.msra.mxu0 0
        %811 = vmatprep.subr.bf16.mxu0 0
        %812 = vmatpush1.bf16.msra.mxu0 0
        %813 = vmatprep.subr.bf16.mxu0 0
        %814 = vmatpush1.bf16.msra.mxu0 0
        %815 = vmatprep.subr.bf16.mxu0 0
        %816 = vmatpush1.bf16.msra.mxu0 0
        %817 = vmatprep.subr.bf16.mxu0 0
        %818 = vmatpush1.bf16.msra.mxu0 0
        %819 = vmatprep.subr.bf16.mxu0 0
        %820 = vmatpush1.bf16.msra.mxu0 0
        %821 = vmatprep.subr.bf16.mxu0 0
        %822 = vmatpush1.bf16.msra.mxu0 0
        %823 = vmatprep.mubr.bf16.mxu0 0
        %824 = vmatmul.mubr.bf16.gmra.mrb[0].mxu0 %v687
        %v825 = vpop.f32.mrb[0].mxu0
        %v826 = vadd.f32 0.0, %v825
        %v827 = vpop.f32.mrb[0].mxu0
        %v828 = vadd.f32 0.0, %v827
        %v829 = vpop.f32.mrb[0].mxu0
        %v830 = vadd.f32 0.0, %v829
        %v831 = vpop.f32.mrb[0].mxu0
        %v832 = vadd.f32 0.0, %v831
        %833 = vmatprep.mubr.bf16.mxu0 0
        %834 = vmatmul.mubr.bf16.gmra.mrb[0].mxu0 %v688
        %v835 = vpop.f32.mrb[0].mxu0
        %v836 = vadd.f32 0.0, %v835
        %v837 = vpop.f32.mrb[0].mxu0
        %v838 = vadd.f32 0.0, %v837
        %v839 = vpop.f32.mrb[0].mxu0
        %v840 = vadd.f32 0.0, %v839
        %v841 = vpop.f32.mrb[0].mxu0
        %v842 = vadd.f32 0.0, %v841
        %843 = vmatprep.mubr.bf16.mxu0 0
        %844 = vmatmul.mubr.bf16.gmra.mrb[0].mxu0 %v689
        %v845 = vpop.f32.mrb[0].mxu0
        %v846 = vadd.f32 0.0, %v845
        %v847 = vpop.f32.mrb[0].mxu0
        %v848 = vadd.f32 0.0, %v847
        %v849 = vpop.f32.mrb[0].mxu0
        %v850 = vadd.f32 0.0, %v849
        %v851 = vpop.f32.mrb[0].mxu0
        %v852 = vadd.f32 0.0, %v851
        %853 = vmatprep.mubr.bf16.mxu0 0
        %854 = vmatmul.mubr.bf16.gmra.mrb[0].mxu0 %v690
        %v855 = vpop.f32.mrb[0].mxu0
        %v856 = vadd.f32 0.0, %v855
        %v857 = vpop.f32.mrb[0].mxu0
        %v858 = vadd.f32 0.0, %v857
        %v859 = vpop.f32.mrb[0].mxu0
        %v860 = vadd.f32 0.0, %v859
        %v861 = vpop.f32.mrb[0].mxu0
        %v862 = vadd.f32 0.0, %v861
        %863 = vmatprep.mubr.bf16.mxu0 0
        %864 = vmatmul.mubr.bf16.gmra.mrb[0].mxu0 %v691
        %v865 = vpop.f32.mrb[0].mxu0
        %v866 = vadd.f32 0.0, %v865
        %v867 = vpop.f32.mrb[0].mxu0
        %v868 = vadd.f32 0.0, %v867
        %v869 = vpop.f32.mrb[0].mxu0
        %v870 = vadd.f32 0.0, %v869
        %v871 = vpop.f32.mrb[0].mxu0
        %v872 = vadd.f32 0.0, %v871
        %873 = vmatprep.mubr.bf16.mxu0 0
        %874 = vmatmul.mubr.bf16.gmra.mrb[0].mxu0 %v692
        %v875 = vpop.f32.mrb[0].mxu0
        %v876 = vadd.f32 0.0, %v875
        %v877 = vpop.f32.mrb[0].mxu0
        %v878 = vadd.f32 0.0, %v877
        %v879 = vpop.f32.mrb[0].mxu0
        %v880 = vadd.f32 0.0, %v879
        %v881 = vpop.f32.mrb[0].mxu0
        %v882 = vadd.f32 0.0, %v881
        %883 = vmatprep.mubr.bf16.mxu0 0
        %884 = vmatmul.mubr.bf16.gmra.mrb[0].mxu0 %v693
        %v885 = vpop.f32.mrb[0].mxu0
        %v886 = vadd.f32 0.0, %v885
        %v887 = vpop.f32.mrb[0].mxu0
        %v888 = vadd.f32 0.0, %v887
        %v889 = vpop.f32.mrb[0].mxu0
        %v890 = vadd.f32 0.0, %v889
        %v891 = vpop.f32.mrb[0].mxu0
        %v892 = vadd.f32 0.0, %v891
        %893 = vmatprep.mubr.bf16.mxu0 0
        %894 = vmatmul.mubr.bf16.gmra.mrb[0].mxu0 %v694
        %v895 = vpop.f32.mrb[0].mxu0
        %v896 = vadd.f32 0.0, %v895
        %v897 = vpop.f32.mrb[0].mxu0
        %v898 = vadd.f32 0.0, %v897
        %v899 = vpop.f32.mrb[0].mxu0
        %v900 = vadd.f32 0.0, %v899
        %v901 = vpop.f32.mrb[0].mxu0
        %v902 = vadd.f32 0.0, %v901
        %903 = vdwg.mxu0
        %904 = vst [vmem:[#allocation2 + $0x8] sm:$0xff] %v826
        %905 = vst [vmem:[#allocation2 + $0x10] sm:$0xff] %v830
        %906 = vst [vmem:[#allocation2 + $0x18] sm:$0xff] %v836
        %907 = vst [vmem:[#allocation2 + $0x20] sm:$0xff] %v840
        %908 = vst [vmem:[#allocation2 + $0x28] sm:$0xff] %v846
        %909 = vst [vmem:[#allocation2 + $0x30] sm:$0xff] %v850
        %910 = vst [vmem:[#allocation2 + $0x38] sm:$0xff] %v856
        %911 = vst [vmem:[#allocation2 + $0x40] sm:$0xff] %v860
        %912 = vst [vmem:[#allocation2 + $0x48] sm:$0xff] %v866
        %913 = vst [vmem:[#allocation2 + $0x50] sm:$0xff] %v870
        %914 = vst [vmem:[#allocation2 + $0x58] sm:$0xff] %v876
        %915 = vst [vmem:[#allocation2 + $0x60] sm:$0xff] %v880
        %916 = vst [vmem:[#allocation2 + $0x68] sm:$0xff] %v886
        %917 = vst [vmem:[#allocation2 + $0x70] sm:$0xff] %v890
        %918 = vst [vmem:[#allocation2 + $0x78] sm:$0xff] %v896
        %919 = vst [vmem:[#allocation2 + $0x80] sm:$0xff] %v900
        %v920 = vld [vmem:[%s4] sm:$0xf]
        %v921 = vlaneseq
        %v922 = vshrl.u32 %v921, 7
        %v923 = vsub.s32 3, %v922
        %v924 = vrot.slane %v920, %v923
        %v925 = vmul.f32 %v924, %v826
        %v926 = vmul.f32 %v924, %v830
        %v927 = vmul.f32 %v924, %v836
        %v928 = vmul.f32 %v924, %v840
        %v929 = vmul.f32 %v924, %v846
        %v930 = vmul.f32 %v924, %v850
        %v931 = vmul.f32 %v924, %v856
        %v932 = vmul.f32 %v924, %v860
        %v933 = vmul.f32 %v924, %v866
        %v934 = vmul.f32 %v924, %v870
        %v935 = vmul.f32 %v924, %v876
        %v936 = vmul.f32 %v924, %v880
        %v937 = vmul.f32 %v924, %v886
        %v938 = vmul.f32 %v924, %v890
        %v939 = vmul.f32 %v924, %v896
        %v940 = vmul.f32 %v924, %v900
        %v941 = vld [vmem:[#allocation2 + $0x5] sm:$0xff]
        %v942 = vld [vmem:[#allocation2 + $0xd] sm:$0xff]
        %v943 = vld [vmem:[#allocation2 + $0x15] sm:$0xff]
        %v944 = vld [vmem:[#allocation2 + $0x1d] sm:$0xff]
        %v945 = vld [vmem:[#allocation2 + $0x25] sm:$0xff]
        %v946 = vld [vmem:[#allocation2 + $0x2d] sm:$0xff]
        %v947 = vld [vmem:[#allocation2 + $0x35] sm:$0xff]
        %v948 = vld [vmem:[#allocation2 + $0x3d] sm:$0xff]
        %v949 = vld [vmem:[#allocation2 + $0x45] sm:$0xff]
        %v950 = vld [vmem:[#allocation2 + $0x4d] sm:$0xff]
        %v951 = vld [vmem:[#allocation2 + $0x55] sm:$0xff]
        %v952 = vld [vmem:[#allocation2 + $0x5d] sm:$0xff]
        %v953 = vld [vmem:[#allocation2 + $0x65] sm:$0xff]
        %v954 = vld [vmem:[#allocation2 + $0x6d] sm:$0xff]
        %v955 = vld [vmem:[#allocation2 + $0x75] sm:$0xff]
        %v956 = vld [vmem:[#allocation2 + $0x7d] sm:$0xff]
        %v957 = vlaneseq
        %v958 = vshrl.u32 %v957, 7
        %v959 = vsub.s32 0, %v958
        %v960 = vrot.slane %v920, %v959
        %v961 = vmul.f32 %v960, %v941
        %v962 = vmul.f32 %v960, %v942
        %v963 = vmul.f32 %v960, %v943
        %v964 = vmul.f32 %v960, %v944
        %v965 = vmul.f32 %v960, %v945
        %v966 = vmul.f32 %v960, %v946
        %v967 = vmul.f32 %v960, %v947
        %v968 = vmul.f32 %v960, %v948
        %v969 = vmul.f32 %v960, %v949
        %v970 = vmul.f32 %v960, %v950
        %v971 = vmul.f32 %v960, %v951
        %v972 = vmul.f32 %v960, %v952
        %v973 = vmul.f32 %v960, %v953
        %v974 = vmul.f32 %v960, %v954
        %v975 = vmul.f32 %v960, %v955
        %v976 = vmul.f32 %v960, %v956
        %v977 = vadd.f32 %v925, %v961
        %v978 = vadd.f32 %v926, %v962
        %v979 = vadd.f32 %v927, %v963
        %v980 = vadd.f32 %v928, %v964
        %v981 = vadd.f32 %v929, %v965
        %v982 = vadd.f32 %v930, %v966
        %v983 = vadd.f32 %v931, %v967
        %v984 = vadd.f32 %v932, %v968
        %v985 = vadd.f32 %v933, %v969
        %v986 = vadd.f32 %v934, %v970
        %v987 = vadd.f32 %v935, %v971
        %v988 = vadd.f32 %v936, %v972
        %v989 = vadd.f32 %v937, %v973
        %v990 = vadd.f32 %v938, %v974
        %v991 = vadd.f32 %v939, %v975
        %v992 = vadd.f32 %v940, %v976
        %v993 = vld [vmem:[#allocation2 + $0x6] sm:$0xff]
        %v994 = vld [vmem:[#allocation2 + $0xe] sm:$0xff]
        %v995 = vld [vmem:[#allocation2 + $0x16] sm:$0xff]
        %v996 = vld [vmem:[#allocation2 + $0x1e] sm:$0xff]
        %v997 = vld [vmem:[#allocation2 + $0x26] sm:$0xff]
        %v998 = vld [vmem:[#allocation2 + $0x2e] sm:$0xff]
        %v999 = vld [vmem:[#allocation2 + $0x36] sm:$0xff]
        %v1000 = vld [vmem:[#allocation2 + $0x3e] sm:$0xff]
        %v1001 = vld [vmem:[#allocation2 + $0x46] sm:$0xff]
        %v1002 = vld [vmem:[#allocation2 + $0x4e] sm:$0xff]
        %v1003 = vld [vmem:[#allocation2 + $0x56] sm:$0xff]
        %v1004 = vld [vmem:[#allocation2 + $0x5e] sm:$0xff]
        %v1005 = vld [vmem:[#allocation2 + $0x66] sm:$0xff]
        %v1006 = vld [vmem:[#allocation2 + $0x6e] sm:$0xff]
        %v1007 = vld [vmem:[#allocation2 + $0x76] sm:$0xff]
        %v1008 = vld [vmem:[#allocation2 + $0x7e] sm:$0xff]
        %v1009 = vlaneseq
        %v1010 = vshrl.u32 %v1009, 7
        %v1011 = vsub.s32 1, %v1010
        %v1012 = vrot.slane %v920, %v1011
        %v1013 = vmul.f32 %v1012, %v993
        %v1014 = vmul.f32 %v1012, %v994
        %v1015 = vmul.f32 %v1012, %v995
        %v1016 = vmul.f32 %v1012, %v996
        %v1017 = vmul.f32 %v1012, %v997
        %v1018 = vmul.f32 %v1012, %v998
        %v1019 = vmul.f32 %v1012, %v999
        %v1020 = vmul.f32 %v1012, %v1000
        %v1021 = vmul.f32 %v1012, %v1001
        %v1022 = vmul.f32 %v1012, %v1002
        %v1023 = vmul.f32 %v1012, %v1003
        %v1024 = vmul.f32 %v1012, %v1004
        %v1025 = vmul.f32 %v1012, %v1005
        %v1026 = vmul.f32 %v1012, %v1006
        %v1027 = vmul.f32 %v1012, %v1007
        %v1028 = vmul.f32 %v1012, %v1008
        %v1029 = vadd.f32 %v977, %v1013
        %v1030 = vadd.f32 %v978, %v1014
        %v1031 = vadd.f32 %v979, %v1015
        %v1032 = vadd.f32 %v980, %v1016
        %v1033 = vadd.f32 %v981, %v1017
        %v1034 = vadd.f32 %v982, %v1018
        %v1035 = vadd.f32 %v983, %v1019
        %v1036 = vadd.f32 %v984, %v1020
        %v1037 = vadd.f32 %v985, %v1021
        %v1038 = vadd.f32 %v986, %v1022
        %v1039 = vadd.f32 %v987, %v1023
        %v1040 = vadd.f32 %v988, %v1024
        %v1041 = vadd.f32 %v989, %v1025
        %v1042 = vadd.f32 %v990, %v1026
        %v1043 = vadd.f32 %v991, %v1027
        %v1044 = vadd.f32 %v992, %v1028
        %v1045 = vld [vmem:[#allocation2 + $0x7] sm:$0xff]
        %v1046 = vld [vmem:[#allocation2 + $0xf] sm:$0xff]
        %v1047 = vld [vmem:[#allocation2 + $0x17] sm:$0xff]
        %v1048 = vld [vmem:[#allocation2 + $0x1f] sm:$0xff]
        %v1049 = vld [vmem:[#allocation2 + $0x27] sm:$0xff]
        %v1050 = vld [vmem:[#allocation2 + $0x2f] sm:$0xff]
        %v1051 = vld [vmem:[#allocation2 + $0x37] sm:$0xff]
        %v1052 = vld [vmem:[#allocation2 + $0x3f] sm:$0xff]
        %v1053 = vld [vmem:[#allocation2 + $0x47] sm:$0xff]
        %v1054 = vld [vmem:[#allocation2 + $0x4f] sm:$0xff]
        %v1055 = vld [vmem:[#allocation2 + $0x57] sm:$0xff]
        %v1056 = vld [vmem:[#allocation2 + $0x5f] sm:$0xff]
        %v1057 = vld [vmem:[#allocation2 + $0x67] sm:$0xff]
        %v1058 = vld [vmem:[#allocation2 + $0x6f] sm:$0xff]
        %v1059 = vld [vmem:[#allocation2 + $0x77] sm:$0xff]
        %v1060 = vld [vmem:[#allocation2 + $0x7f] sm:$0xff]
        %v1061 = vlaneseq
        %v1062 = vshrl.u32 %v1061, 7
        %v1063 = vsub.s32 2, %v1062
        %v1064 = vrot.slane %v920, %v1063
        %v1065 = vmul.f32 %v1064, %v1045
        %v1066 = vmul.f32 %v1064, %v1046
        %v1067 = vmul.f32 %v1064, %v1047
        %v1068 = vmul.f32 %v1064, %v1048
        %v1069 = vmul.f32 %v1064, %v1049
        %v1070 = vmul.f32 %v1064, %v1050
        %v1071 = vmul.f32 %v1064, %v1051
        %v1072 = vmul.f32 %v1064, %v1052
        %v1073 = vmul.f32 %v1064, %v1053
        %v1074 = vmul.f32 %v1064, %v1054
        %v1075 = vmul.f32 %v1064, %v1055
        %v1076 = vmul.f32 %v1064, %v1056
        %v1077 = vmul.f32 %v1064, %v1057
        %v1078 = vmul.f32 %v1064, %v1058
        %v1079 = vmul.f32 %v1064, %v1059
        %v1080 = vmul.f32 %v1064, %v1060
        %v1081 = vadd.f32 %v1029, %v1065
        %v1082 = vadd.f32 %v1030, %v1066
        %v1083 = vadd.f32 %v1031, %v1067
        %v1084 = vadd.f32 %v1032, %v1068
        %v1085 = vadd.f32 %v1033, %v1069
        %v1086 = vadd.f32 %v1034, %v1070
        %v1087 = vadd.f32 %v1035, %v1071
        %v1088 = vadd.f32 %v1036, %v1072
        %v1089 = vadd.f32 %v1037, %v1073
        %v1090 = vadd.f32 %v1038, %v1074
        %v1091 = vadd.f32 %v1039, %v1075
        %v1092 = vadd.f32 %v1040, %v1076
        %v1093 = vadd.f32 %v1041, %v1077
        %v1094 = vadd.f32 %v1042, %v1078
        %v1095 = vadd.f32 %v1043, %v1079
        %v1096 = vadd.f32 %v1044, %v1080
        %v1097 = vld [vmem:[%s5] sm:$0x1]
        %v1099 = vlaneseq
        %v1100 = vshrl.u32 %v1099, 7
        %v1101 = vsub.s32 0, %v1100
        %v1102 = vrot.slane %v1097, %v1101
        %v1104 = vadd.f32 %v1081, %v1102
        %v1105 = vadd.f32 %v1082, %v1102
        %v1106 = vadd.f32 %v1083, %v1102
        %v1107 = vadd.f32 %v1084, %v1102
        %v1108 = vadd.f32 %v1085, %v1102
        %v1109 = vadd.f32 %v1086, %v1102
        %v1110 = vadd.f32 %v1087, %v1102
        %v1111 = vadd.f32 %v1088, %v1102
        %v1112 = vadd.f32 %v1089, %v1102
        %v1113 = vadd.f32 %v1090, %v1102
        %v1114 = vadd.f32 %v1091, %v1102
        %v1115 = vadd.f32 %v1092, %v1102
        %v1116 = vadd.f32 %v1093, %v1102
        %v1117 = vadd.f32 %v1094, %v1102
        %v1118 = vadd.f32 %v1095, %v1102
        %v1119 = vadd.f32 %v1096, %v1102
        %v1120 = vxor.u32 %v1104, 2147483648
        %v1121 = vxor.u32 %v1105, 2147483648
        %v1122 = vxor.u32 %v1106, 2147483648
        %v1123 = vxor.u32 %v1107, 2147483648
        %v1124 = vxor.u32 %v1108, 2147483648
        %v1125 = vxor.u32 %v1109, 2147483648
        %v1126 = vxor.u32 %v1110, 2147483648
        %v1127 = vxor.u32 %v1111, 2147483648
        %v1128 = vxor.u32 %v1112, 2147483648
        %v1129 = vxor.u32 %v1113, 2147483648
        %v1130 = vxor.u32 %v1114, 2147483648
        %v1131 = vxor.u32 %v1115, 2147483648
        %v1132 = vxor.u32 %v1116, 2147483648
        %v1133 = vxor.u32 %v1117, 2147483648
        %v1134 = vxor.u32 %v1118, 2147483648
        %v1135 = vxor.u32 %v1119, 2147483648
        %v1136 = vmul.f32 %v1120, 1.442695
        %v1137 = vpow.pop %v1136
        %v1138 = vmul.f32 %v1121, 1.442695
        %v1139 = vpow.pop %v1138
        %v1140 = vmul.f32 %v1122, 1.442695
        %v1141 = vpow.pop %v1140
        %v1142 = vmul.f32 %v1123, 1.442695
        %v1143 = vpow.pop %v1142
        %v1144 = vmul.f32 %v1124, 1.442695
        %v1145 = vpow.pop %v1144
        %v1146 = vmul.f32 %v1125, 1.442695
        %v1147 = vpow.pop %v1146
        %v1148 = vmul.f32 %v1126, 1.442695
        %v1149 = vpow.pop %v1148
        %v1150 = vmul.f32 %v1127, 1.442695
        %v1151 = vpow.pop %v1150
        %v1152 = vmul.f32 %v1128, 1.442695
        %v1153 = vpow.pop %v1152
        %v1154 = vmul.f32 %v1129, 1.442695
        %v1155 = vpow.pop %v1154
        %v1156 = vmul.f32 %v1130, 1.442695
        %v1157 = vpow.pop %v1156
        %v1158 = vmul.f32 %v1131, 1.442695
        %v1159 = vpow.pop %v1158
        %v1160 = vmul.f32 %v1132, 1.442695
        %v1161 = vpow.pop %v1160
        %v1162 = vmul.f32 %v1133, 1.442695
        %v1163 = vpow.pop %v1162
        %v1164 = vmul.f32 %v1134, 1.442695
        %v1165 = vpow.pop %v1164
        %v1166 = vmul.f32 %v1135, 1.442695
        %v1167 = vpow.pop %v1166
        %v1168 = vadd.f32 %v1137, 1.0
        %v1169 = vadd.f32 %v1139, 1.0
        %v1170 = vadd.f32 %v1141, 1.0
        %v1171 = vadd.f32 %v1143, 1.0
        %v1172 = vadd.f32 %v1145, 1.0
        %v1173 = vadd.f32 %v1147, 1.0
        %v1174 = vadd.f32 %v1149, 1.0
        %v1175 = vadd.f32 %v1151, 1.0
        %v1176 = vadd.f32 %v1153, 1.0
        %v1177 = vadd.f32 %v1155, 1.0
        %v1178 = vadd.f32 %v1157, 1.0
        %v1179 = vadd.f32 %v1159, 1.0
        %v1180 = vadd.f32 %v1161, 1.0
        %v1181 = vadd.f32 %v1163, 1.0
        %v1182 = vadd.f32 %v1165, 1.0
        %v1183 = vadd.f32 %v1167, 1.0
        %v1184 = vrcp.pop %v1168
        %v1185 = vmul.f32 1.0, %v1184
        %v1186 = vrcp.pop %v1169
        %v1187 = vmul.f32 1.0, %v1186
        %v1188 = vrcp.pop %v1170
        %v1189 = vmul.f32 1.0, %v1188
        %v1190 = vrcp.pop %v1171
        %v1191 = vmul.f32 1.0, %v1190
        %v1192 = vrcp.pop %v1172
        %v1193 = vmul.f32 1.0, %v1192
        %v1194 = vrcp.pop %v1173
        %v1195 = vmul.f32 1.0, %v1194
        %v1196 = vrcp.pop %v1174
        %v1197 = vmul.f32 1.0, %v1196
        %v1198 = vrcp.pop %v1175
        %v1199 = vmul.f32 1.0, %v1198
        %v1200 = vrcp.pop %v1176
        %v1201 = vmul.f32 1.0, %v1200
        %v1202 = vrcp.pop %v1177
        %v1203 = vmul.f32 1.0, %v1202
        %v1204 = vrcp.pop %v1178
        %v1205 = vmul.f32 1.0, %v1204
        %v1206 = vrcp.pop %v1179
        %v1207 = vmul.f32 1.0, %v1206
        %v1208 = vrcp.pop %v1180
        %v1209 = vmul.f32 1.0, %v1208
        %v1210 = vrcp.pop %v1181
        %v1211 = vmul.f32 1.0, %v1210
        %v1212 = vrcp.pop %v1182
        %v1213 = vmul.f32 1.0, %v1212
        %v1214 = vrcp.pop %v1183
        %v1215 = vmul.f32 1.0, %v1214
        %v1216 = vmul.f32 %v1104, %v1185
        %v1217 = vmul.f32 %v1105, %v1187
        %v1218 = vmul.f32 %v1106, %v1189
        %v1219 = vmul.f32 %v1107, %v1191
        %v1220 = vmul.f32 %v1108, %v1193
        %v1221 = vmul.f32 %v1109, %v1195
        %v1222 = vmul.f32 %v1110, %v1197
        %v1223 = vmul.f32 %v1111, %v1199
        %v1224 = vmul.f32 %v1112, %v1201
        %v1225 = vmul.f32 %v1113, %v1203
        %v1226 = vmul.f32 %v1114, %v1205
        %v1227 = vmul.f32 %v1115, %v1207
        %v1228 = vmul.f32 %v1116, %v1209
        %v1229 = vmul.f32 %v1117, %v1211
        %v1230 = vmul.f32 %v1118, %v1213
        %v1231 = vmul.f32 %v1119, %v1215
        %v1232 = vpack.c.bf16 %v1217, %v1216
        %v1233 = vpack.c.bf16 %v1219, %v1218
        %v1234 = vpack.c.bf16 %v1221, %v1220
        %v1235 = vpack.c.bf16 %v1223, %v1222
        %v1236 = vpack.c.bf16 %v1225, %v1224
        %v1237 = vpack.c.bf16 %v1227, %v1226
        %v1238 = vpack.c.bf16 %v1229, %v1228
        %v1239 = vpack.c.bf16 %v1231, %v1230
        %v1240 = vld [vmem:[%s6] sm:$0xff]
        %v1241 = vld [vmem:[%s6 + $0x8] sm:$0xff]
        %v1242 = vld [vmem:[%s6 + $0x10] sm:$0xff]
        %v1243 = vld [vmem:[%s6 + $0x18] sm:$0xff]
        %v1244 = vld [vmem:[%s6 + $0x20] sm:$0xff]
        %v1245 = vld [vmem:[%s6 + $0x28] sm:$0xff]
        %v1246 = vld [vmem:[%s6 + $0x30] sm:$0xff]
        %v1247 = vld [vmem:[%s6 + $0x38] sm:$0xff]
        %v1248 = vld [vmem:[%s6 + $0x40] sm:$0xff]
        %v1249 = vld [vmem:[%s6 + $0x48] sm:$0xff]
        %v1250 = vld [vmem:[%s6 + $0x50] sm:$0xff]
        %v1251 = vld [vmem:[%s6 + $0x58] sm:$0xff]
        %v1252 = vld [vmem:[%s6 + $0x60] sm:$0xff]
        %v1253 = vld [vmem:[%s6 + $0x68] sm:$0xff]
        %v1254 = vld [vmem:[%s6 + $0x70] sm:$0xff]
        %v1255 = vld [vmem:[%s6 + $0x78] sm:$0xff]
        %v1272 = vunpack.c.l.b16 %v1240
        %v1273 = vunpack.c.h.b16 %v1240
        %v1274 = vunpack.c.l.b16 %v1241
        %v1275 = vunpack.c.h.b16 %v1241
        %v1276 = vunpack.c.l.b16 %v1242
        %v1277 = vunpack.c.h.b16 %v1242
        %v1278 = vunpack.c.l.b16 %v1243
        %v1279 = vunpack.c.h.b16 %v1243
        %v1280 = vunpack.c.l.b16 %v1244
        %v1281 = vunpack.c.h.b16 %v1244
        %v1282 = vunpack.c.l.b16 %v1245
        %v1283 = vunpack.c.h.b16 %v1245
        %v1284 = vunpack.c.l.b16 %v1246
        %v1285 = vunpack.c.h.b16 %v1246
        %v1286 = vunpack.c.l.b16 %v1247
        %v1287 = vunpack.c.h.b16 %v1247
        %v1288 = vunpack.c.l.b16 %v1248
        %v1289 = vunpack.c.h.b16 %v1248
        %v1290 = vunpack.c.l.b16 %v1249
        %v1291 = vunpack.c.h.b16 %v1249
        %v1292 = vunpack.c.l.b16 %v1250
        %v1293 = vunpack.c.h.b16 %v1250
        %v1294 = vunpack.c.l.b16 %v1251
        %v1295 = vunpack.c.h.b16 %v1251
        %v1296 = vunpack.c.l.b16 %v1252
        %v1297 = vunpack.c.h.b16 %v1252
        %v1298 = vunpack.c.l.b16 %v1253
        %v1299 = vunpack.c.h.b16 %v1253
        %v1300 = vunpack.c.l.b16 %v1254
        %v1301 = vunpack.c.h.b16 %v1254
        %v1302 = vunpack.c.l.b16 %v1255
        %v1303 = vunpack.c.h.b16 %v1255
        %v1304 = vpack.c.b16 %v1274, %v1272
        %v1305 = vpack.c.b16 %v1275, %v1273
        %v1306 = vpack.c.b16 %v1278, %v1276
        %v1307 = vpack.c.b16 %v1279, %v1277
        %v1308 = vpack.c.b16 %v1282, %v1280
        %v1309 = vpack.c.b16 %v1283, %v1281
        %v1310 = vpack.c.b16 %v1286, %v1284
        %v1311 = vpack.c.b16 %v1287, %v1285
        %v1312 = vpack.c.b16 %v1290, %v1288
        %v1313 = vpack.c.b16 %v1291, %v1289
        %v1314 = vpack.c.b16 %v1294, %v1292
        %v1315 = vpack.c.b16 %v1295, %v1293
        %v1316 = vpack.c.b16 %v1298, %v1296
        %v1317 = vpack.c.b16 %v1299, %v1297
        %v1318 = vpack.c.b16 %v1302, %v1300
        %v1319 = vpack.c.b16 %v1303, %v1301
        %1336 = vmatprep.subr.bf16.mxu0 %v1305
        %1337 = vmatpush1.bf16.msra.mxu0 %v1304
        %1338 = vmatprep.subr.bf16.mxu0 %v1307
        %1339 = vmatpush1.bf16.msra.mxu0 %v1306
        %1340 = vmatprep.subr.bf16.mxu0 %v1309
        %1341 = vmatpush1.bf16.msra.mxu0 %v1308
        %1342 = vmatprep.subr.bf16.mxu0 %v1311
        %1343 = vmatpush1.bf16.msra.mxu0 %v1310
        %1344 = vmatprep.subr.bf16.mxu0 %v1313
        %1345 = vmatpush1.bf16.msra.mxu0 %v1312
        %1346 = vmatprep.subr.bf16.mxu0 %v1315
        %1347 = vmatpush1.bf16.msra.mxu0 %v1314
        %1348 = vmatprep.subr.bf16.mxu0 %v1317
        %1349 = vmatpush1.bf16.msra.mxu0 %v1316
        %1350 = vmatprep.subr.bf16.mxu0 %v1319
        %1351 = vmatpush1.bf16.msra.mxu0 %v1318
        %1352 = vmatprep.subr.bf16.mxu0 0
        %1353 = vmatpush1.bf16.msra.mxu0 0
        %1354 = vmatprep.subr.bf16.mxu0 0
        %1355 = vmatpush1.bf16.msra.mxu0 0
        %1356 = vmatprep.subr.bf16.mxu0 0
        %1357 = vmatpush1.bf16.msra.mxu0 0
        %1358 = vmatprep.subr.bf16.mxu0 0
        %1359 = vmatpush1.bf16.msra.mxu0 0
        %1360 = vmatprep.subr.bf16.mxu0 0
        %1361 = vmatpush1.bf16.msra.mxu0 0
        %1362 = vmatprep.subr.bf16.mxu0 0
        %1363 = vmatpush1.bf16.msra.mxu0 0
        %1364 = vmatprep.subr.bf16.mxu0 0
        %1365 = vmatpush1.bf16.msra.mxu0 0
        %1366 = vmatprep.subr.bf16.mxu0 0
        %1367 = vmatpush1.bf16.msra.mxu0 0
        %1368 = vmatprep.mubr.bf16.mxu0 0
        %1369 = vmatmul.mubr.bf16.gmra.mrb[0].mxu0 %v1232
        %v1370 = vpop.f32.mrb[0].mxu0
        %v1371 = vadd.f32 0.0, %v1370
        %v1372 = vpop.f32.mrb[0].mxu0
        %v1373 = vadd.f32 0.0, %v1372
        %v1374 = vpop.f32.mrb[0].mxu0
        %v1375 = vadd.f32 0.0, %v1374
        %v1376 = vpop.f32.mrb[0].mxu0
        %v1377 = vadd.f32 0.0, %v1376
        %1378 = vmatprep.mubr.bf16.mxu0 0
        %1379 = vmatmul.mubr.bf16.gmra.mrb[0].mxu0 %v1233
        %v1380 = vpop.f32.mrb[0].mxu0
        %v1381 = vadd.f32 0.0, %v1380
        %v1382 = vpop.f32.mrb[0].mxu0
        %v1383 = vadd.f32 0.0, %v1382
        %v1384 = vpop.f32.mrb[0].mxu0
        %v1385 = vadd.f32 0.0, %v1384
        %v1386 = vpop.f32.mrb[0].mxu0
        %v1387 = vadd.f32 0.0, %v1386
        %1388 = vmatprep.mubr.bf16.mxu0 0
        %1389 = vmatmul.mubr.bf16.gmra.mrb[0].mxu0 %v1234
        %v1390 = vpop.f32.mrb[0].mxu0
        %v1391 = vadd.f32 0.0, %v1390
        %v1392 = vpop.f32.mrb[0].mxu0
        %v1393 = vadd.f32 0.0, %v1392
        %v1394 = vpop.f32.mrb[0].mxu0
        %v1395 = vadd.f32 0.0, %v1394
        %v1396 = vpop.f32.mrb[0].mxu0
        %v1397 = vadd.f32 0.0, %v1396
        %1398 = vmatprep.mubr.bf16.mxu0 0
        %1399 = vmatmul.mubr.bf16.gmra.mrb[0].mxu0 %v1235
        %v1400 = vpop.f32.mrb[0].mxu0
        %v1401 = vadd.f32 0.0, %v1400
        %v1402 = vpop.f32.mrb[0].mxu0
        %v1403 = vadd.f32 0.0, %v1402
        %v1404 = vpop.f32.mrb[0].mxu0
        %v1405 = vadd.f32 0.0, %v1404
        %v1406 = vpop.f32.mrb[0].mxu0
        %v1407 = vadd.f32 0.0, %v1406
        %1408 = vmatprep.mubr.bf16.mxu0 0
        %1409 = vmatmul.mubr.bf16.gmra.mrb[0].mxu0 %v1236
        %v1410 = vpop.f32.mrb[0].mxu0
        %v1411 = vadd.f32 0.0, %v1410
        %v1412 = vpop.f32.mrb[0].mxu0
        %v1413 = vadd.f32 0.0, %v1412
        %v1414 = vpop.f32.mrb[0].mxu0
        %v1415 = vadd.f32 0.0, %v1414
        %v1416 = vpop.f32.mrb[0].mxu0
        %v1417 = vadd.f32 0.0, %v1416
        %1418 = vmatprep.mubr.bf16.mxu0 0
        %1419 = vmatmul.mubr.bf16.gmra.mrb[0].mxu0 %v1237
        %v1420 = vpop.f32.mrb[0].mxu0
        %v1421 = vadd.f32 0.0, %v1420
        %v1422 = vpop.f32.mrb[0].mxu0
        %v1423 = vadd.f32 0.0, %v1422
        %v1424 = vpop.f32.mrb[0].mxu0
        %v1425 = vadd.f32 0.0, %v1424
        %v1426 = vpop.f32.mrb[0].mxu0
        %v1427 = vadd.f32 0.0, %v1426
        %1428 = vmatprep.mubr.bf16.mxu0 0
        %1429 = vmatmul.mubr.bf16.gmra.mrb[0].mxu0 %v1238
        %v1430 = vpop.f32.mrb[0].mxu0
        %v1431 = vadd.f32 0.0, %v1430
        %v1432 = vpop.f32.mrb[0].mxu0
        %v1433 = vadd.f32 0.0, %v1432
        %v1434 = vpop.f32.mrb[0].mxu0
        %v1435 = vadd.f32 0.0, %v1434
        %v1436 = vpop.f32.mrb[0].mxu0
        %v1437 = vadd.f32 0.0, %v1436
        %1438 = vmatprep.mubr.bf16.mxu0 0
        %1439 = vmatmul.mubr.bf16.gmra.mrb[0].mxu0 %v1239
        %v1440 = vpop.f32.mrb[0].mxu0
        %v1441 = vadd.f32 0.0, %v1440
        %v1442 = vpop.f32.mrb[0].mxu0
        %v1443 = vadd.f32 0.0, %v1442
        %v1444 = vpop.f32.mrb[0].mxu0
        %v1445 = vadd.f32 0.0, %v1444
        %v1446 = vpop.f32.mrb[0].mxu0
        %v1447 = vadd.f32 0.0, %v1446
        %1448 = vdwg.mxu0
        %v1449 = vld [vmem:[%s7] sm:$0x1]
        %v1451 = vlaneseq
        %v1452 = vshrl.u32 %v1451, 7
        %v1453 = vsub.s32 0, %v1452
        %v1454 = vrot.slane %v1449, %v1453
        %v1456 = vadd.f32 %v1371, %v1454
        %v1457 = vadd.f32 %v1375, %v1454
        %v1458 = vadd.f32 %v1381, %v1454
        %v1459 = vadd.f32 %v1385, %v1454
        %v1460 = vadd.f32 %v1391, %v1454
        %v1461 = vadd.f32 %v1395, %v1454
        %v1462 = vadd.f32 %v1401, %v1454
        %v1463 = vadd.f32 %v1405, %v1454
        %v1464 = vadd.f32 %v1411, %v1454
        %v1465 = vadd.f32 %v1415, %v1454
        %v1466 = vadd.f32 %v1421, %v1454
        %v1467 = vadd.f32 %v1425, %v1454
        %v1468 = vadd.f32 %v1431, %v1454
        %v1469 = vadd.f32 %v1435, %v1454
        %v1470 = vadd.f32 %v1441, %v1454
        %v1471 = vadd.f32 %v1445, %v1454
        %v1472 = vmax.f32 %v1456, 0.0
        %v1473 = vmax.f32 %v1457, 0.0
        %v1474 = vmax.f32 %v1458, 0.0
        %v1475 = vmax.f32 %v1459, 0.0
        %v1476 = vmax.f32 %v1460, 0.0
        %v1477 = vmax.f32 %v1461, 0.0
        %v1478 = vmax.f32 %v1462, 0.0
        %v1479 = vmax.f32 %v1463, 0.0
        %v1480 = vmax.f32 %v1464, 0.0
        %v1481 = vmax.f32 %v1465, 0.0
        %v1482 = vmax.f32 %v1466, 0.0
        %v1483 = vmax.f32 %v1467, 0.0
        %v1484 = vmax.f32 %v1468, 0.0
        %v1485 = vmax.f32 %v1469, 0.0
        %v1486 = vmax.f32 %v1470, 0.0
        %v1487 = vmax.f32 %v1471, 0.0
        %vm1488 = vcmp.ne.f32.partialorder %v1456, %v1456
        %vm1489 = vcmp.ne.f32.partialorder %v1457, %v1457
        %vm1490 = vcmp.ne.f32.partialorder %v1458, %v1458
        %vm1491 = vcmp.ne.f32.partialorder %v1459, %v1459
        %vm1492 = vcmp.ne.f32.partialorder %v1460, %v1460
        %vm1493 = vcmp.ne.f32.partialorder %v1461, %v1461
        %vm1494 = vcmp.ne.f32.partialorder %v1462, %v1462
        %vm1495 = vcmp.ne.f32.partialorder %v1463, %v1463
        %vm1496 = vcmp.ne.f32.partialorder %v1464, %v1464
        %vm1497 = vcmp.ne.f32.partialorder %v1465, %v1465
        %vm1498 = vcmp.ne.f32.partialorder %v1466, %v1466
        %vm1499 = vcmp.ne.f32.partialorder %v1467, %v1467
        %vm1500 = vcmp.ne.f32.partialorder %v1468, %v1468
        %vm1501 = vcmp.ne.f32.partialorder %v1469, %v1469
        %vm1502 = vcmp.ne.f32.partialorder %v1470, %v1470
        %vm1503 = vcmp.ne.f32.partialorder %v1471, %v1471
        %v1504 = vadd.f32 %v1456, 0.0
        %v1505 = vadd.f32 %v1457, 0.0
        %v1506 = vadd.f32 %v1458, 0.0
        %v1507 = vadd.f32 %v1459, 0.0
        %v1508 = vadd.f32 %v1460, 0.0
        %v1509 = vadd.f32 %v1461, 0.0
        %v1510 = vadd.f32 %v1462, 0.0
        %v1511 = vadd.f32 %v1463, 0.0
        %v1512 = vadd.f32 %v1464, 0.0
        %v1513 = vadd.f32 %v1465, 0.0
        %v1514 = vadd.f32 %v1466, 0.0
        %v1515 = vadd.f32 %v1467, 0.0
        %v1516 = vadd.f32 %v1468, 0.0
        %v1517 = vadd.f32 %v1469, 0.0
        %v1518 = vadd.f32 %v1470, 0.0
        %v1519 = vadd.f32 %v1471, 0.0
        %v1520 = vand.u32 2147483647, %v1456
        %v1521 = vand.u32 2147483647, %v1457
        %v1522 = vand.u32 2147483647, %v1458
        %v1523 = vand.u32 2147483647, %v1459
        %v1524 = vand.u32 2147483647, %v1460
        %v1525 = vand.u32 2147483647, %v1461
        %v1526 = vand.u32 2147483647, %v1462
        %v1527 = vand.u32 2147483647, %v1463
        %v1528 = vand.u32 2147483647, %v1464
        %v1529 = vand.u32 2147483647, %v1465
        %v1530 = vand.u32 2147483647, %v1466
        %v1531 = vand.u32 2147483647, %v1467
        %v1532 = vand.u32 2147483647, %v1468
        %v1533 = vand.u32 2147483647, %v1469
        %v1534 = vand.u32 2147483647, %v1470
        %v1535 = vand.u32 2147483647, %v1471
        %v1536 = vsub.f32 0.0, %v1520
        %v1537 = vsub.f32 0.0, %v1521
        %v1538 = vsub.f32 0.0, %v1522
        %v1539 = vsub.f32 0.0, %v1523
        %v1540 = vsub.f32 0.0, %v1524
        %v1541 = vsub.f32 0.0, %v1525
        %v1542 = vsub.f32 0.0, %v1526
        %v1543 = vsub.f32 0.0, %v1527
        %v1544 = vsub.f32 0.0, %v1528
        %v1545 = vsub.f32 0.0, %v1529
        %v1546 = vsub.f32 0.0, %v1530
        %v1547 = vsub.f32 0.0, %v1531
        %v1548 = vsub.f32 0.0, %v1532
        %v1549 = vsub.f32 0.0, %v1533
        %v1550 = vsub.f32 0.0, %v1534
        %v1551 = vsub.f32 0.0, %v1535
        %v1552 = vmul.f32 %v1536, 1.442695
        %v1553 = vpow.pop %v1552
        %v1554 = vmul.f32 %v1537, 1.442695
        %v1555 = vpow.pop %v1554
        %v1556 = vmul.f32 %v1538, 1.442695
        %v1557 = vpow.pop %v1556
        %v1558 = vmul.f32 %v1539, 1.442695
        %v1559 = vpow.pop %v1558
        %v1560 = vmul.f32 %v1540, 1.442695
        %v1561 = vpow.pop %v1560
        %v1562 = vmul.f32 %v1541, 1.442695
        %v1563 = vpow.pop %v1562
        %v1564 = vmul.f32 %v1542, 1.442695
        %v1565 = vpow.pop %v1564
        %v1566 = vmul.f32 %v1543, 1.442695
        %v1567 = vpow.pop %v1566
        %v1568 = vmul.f32 %v1544, 1.442695
        %v1569 = vpow.pop %v1568
        %v1570 = vmul.f32 %v1545, 1.442695
        %v1571 = vpow.pop %v1570
        %v1572 = vmul.f32 %v1546, 1.442695
        %v1573 = vpow.pop %v1572
        %v1574 = vmul.f32 %v1547, 1.442695
        %v1575 = vpow.pop %v1574
        %v1576 = vmul.f32 %v1548, 1.442695
        %v1577 = vpow.pop %v1576
        %v1578 = vmul.f32 %v1549, 1.442695
        %v1579 = vpow.pop %v1578
        %v1580 = vmul.f32 %v1550, 1.442695
        %v1581 = vpow.pop %v1580
        %v1582 = vmul.f32 %v1551, 1.442695
        %v1583 = vpow.pop %v1582
        %v1584 = vadd.f32 %v1553, 1.0
        %v1585 = vlog2.pop %v1584
        %v1586 = vmul.f32 %v1585, 0.6931472
        %v1587 = vmul.f32 -0.5, %v1553
        %v1588 = vadd.f32 %v1587, 1.0
        %v1589 = vmul.f32 %v1588, %v1553
        %v1590 = vand.u32 2147483647, %v1553
        %vm1591 = vcmp.lt.f32.partialorder %v1590, 0.0004427343
        %v1592 = vsel %vm1591, %v1589, %v1586
        %v1593 = vadd.f32 %v1555, 1.0
        %v1594 = vlog2.pop %v1593
        %v1595 = vmul.f32 %v1594, 0.6931472
        %v1596 = vmul.f32 -0.5, %v1555
        %v1597 = vadd.f32 %v1596, 1.0
        %v1598 = vmul.f32 %v1597, %v1555
        %v1599 = vand.u32 2147483647, %v1555
        %vm1600 = vcmp.lt.f32.partialorder %v1599, 0.0004427343
        %v1601 = vsel %vm1600, %v1598, %v1595
        %v1602 = vadd.f32 %v1557, 1.0
        %v1603 = vlog2.pop %v1602
        %v1604 = vmul.f32 %v1603, 0.6931472
        %v1605 = vmul.f32 -0.5, %v1557
        %v1606 = vadd.f32 %v1605, 1.0
        %v1607 = vmul.f32 %v1606, %v1557
        %v1608 = vand.u32 2147483647, %v1557
        %vm1609 = vcmp.lt.f32.partialorder %v1608, 0.0004427343
        %v1610 = vsel %vm1609, %v1607, %v1604
        %v1611 = vadd.f32 %v1559, 1.0
        %v1612 = vlog2.pop %v1611
        %v1613 = vmul.f32 %v1612, 0.6931472
        %v1614 = vmul.f32 -0.5, %v1559
        %v1615 = vadd.f32 %v1614, 1.0
        %v1616 = vmul.f32 %v1615, %v1559
        %v1617 = vand.u32 2147483647, %v1559
        %vm1618 = vcmp.lt.f32.partialorder %v1617, 0.0004427343
        %v1619 = vsel %vm1618, %v1616, %v1613
        %v1620 = vadd.f32 %v1561, 1.0
        %v1621 = vlog2.pop %v1620
        %v1622 = vmul.f32 %v1621, 0.6931472
        %v1623 = vmul.f32 -0.5, %v1561
        %v1624 = vadd.f32 %v1623, 1.0
        %v1625 = vmul.f32 %v1624, %v1561
        %v1626 = vand.u32 2147483647, %v1561
        %vm1627 = vcmp.lt.f32.partialorder %v1626, 0.0004427343
        %v1628 = vsel %vm1627, %v1625, %v1622
        %v1629 = vadd.f32 %v1563, 1.0
        %v1630 = vlog2.pop %v1629
        %v1631 = vmul.f32 %v1630, 0.6931472
        %v1632 = vmul.f32 -0.5, %v1563
        %v1633 = vadd.f32 %v1632, 1.0
        %v1634 = vmul.f32 %v1633, %v1563
        %v1635 = vand.u32 2147483647, %v1563
        %vm1636 = vcmp.lt.f32.partialorder %v1635, 0.0004427343
        %v1637 = vsel %vm1636, %v1634, %v1631
        %v1638 = vadd.f32 %v1565, 1.0
        %v1639 = vlog2.pop %v1638
        %v1640 = vmul.f32 %v1639, 0.6931472
        %v1641 = vmul.f32 -0.5, %v1565
        %v1642 = vadd.f32 %v1641, 1.0
        %v1643 = vmul.f32 %v1642, %v1565
        %v1644 = vand.u32 2147483647, %v1565
        %vm1645 = vcmp.lt.f32.partialorder %v1644, 0.0004427343
        %v1646 = vsel %vm1645, %v1643, %v1640
        %v1647 = vadd.f32 %v1567, 1.0
        %v1648 = vlog2.pop %v1647
        %v1649 = vmul.f32 %v1648, 0.6931472
        %v1650 = vmul.f32 -0.5, %v1567
        %v1651 = vadd.f32 %v1650, 1.0
        %v1652 = vmul.f32 %v1651, %v1567
        %v1653 = vand.u32 2147483647, %v1567
        %vm1654 = vcmp.lt.f32.partialorder %v1653, 0.0004427343
        %v1655 = vsel %vm1654, %v1652, %v1649
        %v1656 = vadd.f32 %v1569, 1.0
        %v1657 = vlog2.pop %v1656
        %v1658 = vmul.f32 %v1657, 0.6931472
        %v1659 = vmul.f32 -0.5, %v1569
        %v1660 = vadd.f32 %v1659, 1.0
        %v1661 = vmul.f32 %v1660, %v1569
        %v1662 = vand.u32 2147483647, %v1569
        %vm1663 = vcmp.lt.f32.partialorder %v1662, 0.0004427343
        %v1664 = vsel %vm1663, %v1661, %v1658
        %v1665 = vadd.f32 %v1571, 1.0
        %v1666 = vlog2.pop %v1665
        %v1667 = vmul.f32 %v1666, 0.6931472
        %v1668 = vmul.f32 -0.5, %v1571
        %v1669 = vadd.f32 %v1668, 1.0
        %v1670 = vmul.f32 %v1669, %v1571
        %v1671 = vand.u32 2147483647, %v1571
        %vm1672 = vcmp.lt.f32.partialorder %v1671, 0.0004427343
        %v1673 = vsel %vm1672, %v1670, %v1667
        %v1674 = vadd.f32 %v1573, 1.0
        %v1675 = vlog2.pop %v1674
        %v1676 = vmul.f32 %v1675, 0.6931472
        %v1677 = vmul.f32 -0.5, %v1573
        %v1678 = vadd.f32 %v1677, 1.0
        %v1679 = vmul.f32 %v1678, %v1573
        %v1680 = vand.u32 2147483647, %v1573
        %vm1681 = vcmp.lt.f32.partialorder %v1680, 0.0004427343
        %v1682 = vsel %vm1681, %v1679, %v1676
        %v1683 = vadd.f32 %v1575, 1.0
        %v1684 = vlog2.pop %v1683
        %v1685 = vmul.f32 %v1684, 0.6931472
        %v1686 = vmul.f32 -0.5, %v1575
        %v1687 = vadd.f32 %v1686, 1.0
        %v1688 = vmul.f32 %v1687, %v1575
        %v1689 = vand.u32 2147483647, %v1575
        %vm1690 = vcmp.lt.f32.partialorder %v1689, 0.0004427343
        %v1691 = vsel %vm1690, %v1688, %v1685
        %v1692 = vadd.f32 %v1577, 1.0
        %v1693 = vlog2.pop %v1692
        %v1694 = vmul.f32 %v1693, 0.6931472
        %v1695 = vmul.f32 -0.5, %v1577
        %v1696 = vadd.f32 %v1695, 1.0
        %v1697 = vmul.f32 %v1696, %v1577
        %v1698 = vand.u32 2147483647, %v1577
        %vm1699 = vcmp.lt.f32.partialorder %v1698, 0.0004427343
        %v1700 = vsel %vm1699, %v1697, %v1694
        %v1701 = vadd.f32 %v1579, 1.0
        %v1702 = vlog2.pop %v1701
        %v1703 = vmul.f32 %v1702, 0.6931472
        %v1704 = vmul.f32 -0.5, %v1579
        %v1705 = vadd.f32 %v1704, 1.0
        %v1706 = vmul.f32 %v1705, %v1579
        %v1707 = vand.u32 2147483647, %v1579
        %vm1708 = vcmp.lt.f32.partialorder %v1707, 0.0004427343
        %v1709 = vsel %vm1708, %v1706, %v1703
        %v1710 = vadd.f32 %v1581, 1.0
        %v1711 = vlog2.pop %v1710
        %v1712 = vmul.f32 %v1711, 0.6931472
        %v1713 = vmul.f32 -0.5, %v1581
        %v1714 = vadd.f32 %v1713, 1.0
        %v1715 = vmul.f32 %v1714, %v1581
        %v1716 = vand.u32 2147483647, %v1581
        %vm1717 = vcmp.lt.f32.partialorder %v1716, 0.0004427343
        %v1718 = vsel %vm1717, %v1715, %v1712
        %v1719 = vadd.f32 %v1583, 1.0
        %v1720 = vlog2.pop %v1719
        %v1721 = vmul.f32 %v1720, 0.6931472
        %v1722 = vmul.f32 -0.5, %v1583
        %v1723 = vadd.f32 %v1722, 1.0
        %v1724 = vmul.f32 %v1723, %v1583
        %v1725 = vand.u32 2147483647, %v1583
        %vm1726 = vcmp.lt.f32.partialorder %v1725, 0.0004427343
        %v1727 = vsel %vm1726, %v1724, %v1721
        %v1728 = vadd.f32 %v1472, %v1592
        %v1729 = vadd.f32 %v1473, %v1601
        %v1730 = vadd.f32 %v1474, %v1610
        %v1731 = vadd.f32 %v1475, %v1619
        %v1732 = vadd.f32 %v1476, %v1628
        %v1733 = vadd.f32 %v1477, %v1637
        %v1734 = vadd.f32 %v1478, %v1646
        %v1735 = vadd.f32 %v1479, %v1655
        %v1736 = vadd.f32 %v1480, %v1664
        %v1737 = vadd.f32 %v1481, %v1673
        %v1738 = vadd.f32 %v1482, %v1682
        %v1739 = vadd.f32 %v1483, %v1691
        %v1740 = vadd.f32 %v1484, %v1700
        %v1741 = vadd.f32 %v1485, %v1709
        %v1742 = vadd.f32 %v1486, %v1718
        %v1743 = vadd.f32 %v1487, %v1727
        %v1744 = vsel %vm1488, %v1504, %v1728
        %v1745 = vsel %vm1489, %v1505, %v1729
        %v1746 = vsel %vm1490, %v1506, %v1730
        %v1747 = vsel %vm1491, %v1507, %v1731
        %v1748 = vsel %vm1492, %v1508, %v1732
        %v1749 = vsel %vm1493, %v1509, %v1733
        %v1750 = vsel %vm1494, %v1510, %v1734
        %v1751 = vsel %vm1495, %v1511, %v1735
        %v1752 = vsel %vm1496, %v1512, %v1736
        %v1753 = vsel %vm1497, %v1513, %v1737
        %v1754 = vsel %vm1498, %v1514, %v1738
        %v1755 = vsel %vm1499, %v1515, %v1739
        %v1756 = vsel %vm1500, %v1516, %v1740
        %v1757 = vsel %vm1501, %v1517, %v1741
        %v1758 = vsel %vm1502, %v1518, %v1742
        %v1759 = vsel %vm1503, %v1519, %v1743
        %1760 = vst [vmem:[#allocation4] sm:$0xff] %v1744
        %1761 = vst [vmem:[#allocation4 + $0x8] sm:$0xff] %v1745
        %1762 = vst [vmem:[#allocation4 + $0x10] sm:$0xff] %v1746
        %1763 = vst [vmem:[#allocation4 + $0x18] sm:$0xff] %v1747
        %1764 = vst [vmem:[#allocation4 + $0x20] sm:$0xff] %v1748
        %1765 = vst [vmem:[#allocation4 + $0x28] sm:$0xff] %v1749
        %1766 = vst [vmem:[#allocation4 + $0x30] sm:$0xff] %v1750
        %1767 = vst [vmem:[#allocation4 + $0x38] sm:$0xff] %v1751
        %1768 = vst [vmem:[#allocation4 + $0x40] sm:$0xff] %v1752
        %1769 = vst [vmem:[#allocation4 + $0x48] sm:$0xff] %v1753
        %1770 = vst [vmem:[#allocation4 + $0x50] sm:$0xff] %v1754
        %1771 = vst [vmem:[#allocation4 + $0x58] sm:$0xff] %v1755
        %1772 = vst [vmem:[#allocation4 + $0x60] sm:$0xff] %v1756
        %1773 = vst [vmem:[#allocation4 + $0x68] sm:$0xff] %v1757
        %1774 = vst [vmem:[#allocation4 + $0x70] sm:$0xff] %v1758
        %1775 = vst [vmem:[#allocation4 + $0x78] sm:$0xff] %v1759
        %v1776 = vmul.f32 %v1744, %v1216
        %v1777 = vmul.f32 %v1745, %v1217
        %v1778 = vmul.f32 %v1746, %v1218
        %v1779 = vmul.f32 %v1747, %v1219
        %v1780 = vmul.f32 %v1748, %v1220
        %v1781 = vmul.f32 %v1749, %v1221
        %v1782 = vmul.f32 %v1750, %v1222
        %v1783 = vmul.f32 %v1751, %v1223
        %v1784 = vmul.f32 %v1752, %v1224
        %v1785 = vmul.f32 %v1753, %v1225
        %v1786 = vmul.f32 %v1754, %v1226
        %v1787 = vmul.f32 %v1755, %v1227
        %v1788 = vmul.f32 %v1756, %v1228
        %v1789 = vmul.f32 %v1757, %v1229
        %v1790 = vmul.f32 %v1758, %v1230
        %v1791 = vmul.f32 %v1759, %v1231
        %1792 = vst [vmem:[#allocation5] sm:$0xff] %v1776
        %1793 = vst [vmem:[#allocation5 + $0x8] sm:$0xff] %v1777
        %1794 = vst [vmem:[#allocation5 + $0x10] sm:$0xff] %v1778
        %1795 = vst [vmem:[#allocation5 + $0x18] sm:$0xff] %v1779
        %1796 = vst [vmem:[#allocation5 + $0x20] sm:$0xff] %v1780
        %1797 = vst [vmem:[#allocation5 + $0x28] sm:$0xff] %v1781
        %1798 = vst [vmem:[#allocation5 + $0x30] sm:$0xff] %v1782
        %1799 = vst [vmem:[#allocation5 + $0x38] sm:$0xff] %v1783
        %1800 = vst [vmem:[#allocation5 + $0x40] sm:$0xff] %v1784
        %1801 = vst [vmem:[#allocation5 + $0x48] sm:$0xff] %v1785
        %1802 = vst [vmem:[#allocation5 + $0x50] sm:$0xff] %v1786
        %1803 = vst [vmem:[#allocation5 + $0x58] sm:$0xff] %v1787
        %1804 = vst [vmem:[#allocation5 + $0x60] sm:$0xff] %v1788
        %1805 = vst [vmem:[#allocation5 + $0x68] sm:$0xff] %v1789
        %1806 = vst [vmem:[#allocation5 + $0x70] sm:$0xff] %v1790
        %1807 = vst [vmem:[#allocation5 + $0x78] sm:$0xff] %v1791
        %vm1808 = vcmask 261120
        %1809 = vst.msk [vmem:[#allocation6] sm:$0xff] %vm1808, %v1373
        %1810 = vst.msk [vmem:[#allocation6 + $0x8] sm:$0xff] %vm1808, %v1377
        %1811 = vst.msk [vmem:[#allocation6 + $0x10] sm:$0xff] %vm1808, %v1383
        %1812 = vst.msk [vmem:[#allocation6 + $0x18] sm:$0xff] %vm1808, %v1387
        %1813 = vst.msk [vmem:[#allocation6 + $0x20] sm:$0xff] %vm1808, %v1393
        %1814 = vst.msk [vmem:[#allocation6 + $0x28] sm:$0xff] %vm1808, %v1397
        %1815 = vst.msk [vmem:[#allocation6 + $0x30] sm:$0xff] %vm1808, %v1403
        %1816 = vst.msk [vmem:[#allocation6 + $0x38] sm:$0xff] %vm1808, %v1407
        %1817 = vst.msk [vmem:[#allocation6 + $0x40] sm:$0xff] %vm1808, %v1413
        %1818 = vst.msk [vmem:[#allocation6 + $0x48] sm:$0xff] %vm1808, %v1417
        %1819 = vst.msk [vmem:[#allocation6 + $0x50] sm:$0xff] %vm1808, %v1423
        %1820 = vst.msk [vmem:[#allocation6 + $0x58] sm:$0xff] %vm1808, %v1427
        %1821 = vst.msk [vmem:[#allocation6 + $0x60] sm:$0xff] %vm1808, %v1433
        %1822 = vst.msk [vmem:[#allocation6 + $0x68] sm:$0xff] %vm1808, %v1437
        %1823 = vst.msk [vmem:[#allocation6 + $0x70] sm:$0xff] %vm1808, %v1443
        %1824 = vst.msk [vmem:[#allocation6 + $0x78] sm:$0xff] %vm1808, %v1447
        %v1825 = vld [vmem:[%s8] sm:$0xff]
        %v1826 = vld [vmem:[%s8 + $0x8] sm:$0xff]
        %v1827 = vld [vmem:[#allocation3] sm:$0xff]
        %v1828 = vld [vmem:[#allocation3 + $0x8] sm:$0xff]
        loop: start=0, step=1, limit=16
        $region73: #{_lambda_.1} parent=63 // loop_pre_header
          _
        $region74: #{_lambda_.1} parent=63 // loop_header
          %s1830 = sphi 0, %s1834
          %p1831 = scmp.ge.s32.totalorder %s1830, 16
          %v1835 = vphi %v1827, %v2349
          %v1836 = vphi %v1828, %v2350
        $region75: #{_lambda_.1} parent=63 // loop_header_branch
          %1833 = sbr.rel (%p1831) target = $region79
        $region76: #{_lambda_.1} parent=63 // loop_body
          %s1837 = smul.u32 %s1830, 8
          %s1838 = scalar_lea.vmem [#allocation4], %s1837
          %v1839 = vld [vmem:[%s1838] sm:$0xff]
          %s1840 = scalar_lea.vmem [#allocation5], %s1837
          %v1841 = vld [vmem:[%s1840] sm:$0xff]
          %s1842 = scalar_lea.vmem [#allocation6], %s1837
          %v1843 = vld [vmem:[%s1842] sm:$0xff]
          %v1845 = vcombine.high %v1839, %v1839
          %v1847 = vunpack.c.l.s4 1966171168
          %v1848 = vunpack.c.0.s8 %v1847
          %v1849 = vlaneseq
          %v1850 = vshrl.u32 %v1849, 7
          %v1851 = vsub.s32 %v1848, %v1850
          %v1852 = vrot.slane %v1839, %v1851
          %v1854 = vunpack.c.l.s4 1966171168
          %v1855 = vunpack.c.0.s8 %v1854
          %v1856 = vlaneseq
          %v1857 = vshrl.u32 %v1856, 7
          %v1858 = vsub.s32 %v1855, %v1857
          %v1859 = vrot.slane %v1845, %v1858
          %v1860 = vcombine.high %v1852, %v1852
          %v1861 = vcombine.high %v1859, %v1859
          %v1863 = vunpack.c.l.s4 1966171168
          %v1864 = vunpack.c.0.s8 %v1863
          %v1865 = vlaneseq
          %v1866 = vshrl.u32 %v1865, 7
          %v1867 = vsub.s32 %v1864, %v1866
          %v1868 = vrot.slane %v1852, %v1867
          %v1870 = vunpack.c.l.s4 1966171168
          %v1871 = vunpack.c.0.s8 %v1870
          %v1872 = vlaneseq
          %v1873 = vshrl.u32 %v1872, 7
          %v1874 = vsub.s32 %v1871, %v1873
          %v1875 = vrot.slane %v1859, %v1874
          %v1877 = vunpack.c.l.s4 1966171168
          %v1878 = vunpack.c.0.s8 %v1877
          %v1879 = vlaneseq
          %v1880 = vshrl.u32 %v1879, 7
          %v1881 = vsub.s32 %v1878, %v1880
          %v1882 = vrot.slane %v1860, %v1881
          %v1884 = vunpack.c.l.s4 1966171168
          %v1885 = vunpack.c.0.s8 %v1884
          %v1886 = vlaneseq
          %v1887 = vshrl.u32 %v1886, 7
          %v1888 = vsub.s32 %v1885, %v1887
          %v1889 = vrot.slane %v1861, %v1888
          %v1890 = vcombine.high %v1868, %v1868
          %v1891 = vcombine.high %v1875, %v1875
          %v1892 = vcombine.high %v1882, %v1882
          %v1893 = vcombine.high %v1889, %v1889
          %v1894 = vlaneseq
          %v1895 = vshrl.u32 %v1894, 7
          %v1896 = vsub.s32 0, %v1895
          %v1897 = vrot.slane %v1868, %v1896
          %v1898 = vlaneseq
          %v1899 = vshrl.u32 %v1898, 7
          %v1900 = vsub.s32 0, %v1899
          %v1901 = vrot.slane %v1882, %v1900
          %v1902 = vlaneseq
          %v1903 = vshrl.u32 %v1902, 7
          %v1904 = vsub.s32 0, %v1903
          %v1905 = vrot.slane %v1890, %v1904
          %v1906 = vlaneseq
          %v1907 = vshrl.u32 %v1906, 7
          %v1908 = vsub.s32 0, %v1907
          %v1909 = vrot.slane %v1892, %v1908
          %v1910 = vlaneseq
          %v1911 = vshrl.u32 %v1910, 7
          %v1912 = vsub.s32 0, %v1911
          %v1913 = vrot.slane %v1875, %v1912
          %v1914 = vlaneseq
          %v1915 = vshrl.u32 %v1914, 7
          %v1916 = vsub.s32 0, %v1915
          %v1917 = vrot.slane %v1889, %v1916
          %v1918 = vlaneseq
          %v1919 = vshrl.u32 %v1918, 7
          %v1920 = vsub.s32 0, %v1919
          %v1921 = vrot.slane %v1891, %v1920
          %v1922 = vlaneseq
          %v1923 = vshrl.u32 %v1922, 7
          %v1924 = vsub.s32 0, %v1923
          %v1925 = vrot.slane %v1893, %v1924
          %v1934 = vmul.f32 %v1897, %v1825
          %v1935 = vmul.f32 %v1897, %v1826
          %v1936 = vmul.f32 %v1901, %v1825
          %v1937 = vmul.f32 %v1901, %v1826
          %v1938 = vmul.f32 %v1905, %v1825
          %v1939 = vmul.f32 %v1905, %v1826
          %v1940 = vmul.f32 %v1909, %v1825
          %v1941 = vmul.f32 %v1909, %v1826
          %v1942 = vmul.f32 %v1913, %v1825
          %v1943 = vmul.f32 %v1913, %v1826
          %v1944 = vmul.f32 %v1917, %v1825
          %v1945 = vmul.f32 %v1917, %v1826
          %v1946 = vmul.f32 %v1921, %v1825
          %v1947 = vmul.f32 %v1921, %v1826
          %v1948 = vmul.f32 %v1925, %v1825
          %v1949 = vmul.f32 %v1925, %v1826
          %v1950 = vpack.c.bf16 %v1935, %v1934
          %v1951 = vpack.c.bf16 %v1937, %v1936
          %v1952 = vpack.c.bf16 %v1939, %v1938
          %v1953 = vpack.c.bf16 %v1941, %v1940
          %v1954 = vpack.c.bf16 %v1943, %v1942
          %v1955 = vpack.c.bf16 %v1945, %v1944
          %v1956 = vpack.c.bf16 %v1947, %v1946
          %v1957 = vpack.c.bf16 %v1949, %v1948
          %v1959 = vmul.bf16 %v1950, 1069105081
          %v1960 = vpow.bf16.pop %v1959
          %v1962 = vmul.bf16 %v1951, 1069105081
          %v1963 = vpow.bf16.pop %v1962
          %v1965 = vmul.bf16 %v1952, 1069105081
          %v1966 = vpow.bf16.pop %v1965
          %v1968 = vmul.bf16 %v1953, 1069105081
          %v1969 = vpow.bf16.pop %v1968
          %v1971 = vmul.bf16 %v1954, 1069105081
          %v1972 = vpow.bf16.pop %v1971
          %v1974 = vmul.bf16 %v1955, 1069105081
          %v1975 = vpow.bf16.pop %v1974
          %v1977 = vmul.bf16 %v1956, 1069105081
          %v1978 = vpow.bf16.pop %v1977
          %v1980 = vmul.bf16 %v1957, 1069105081
          %v1981 = vpow.bf16.pop %v1980
          %v1982 = vlaneseq
          %v1983 = vshrl.u32 %v1982, 7
          %v1984 = vsub.s32 0, %v1983
          %v1985 = vrot.slane %v1843, %v1984
          %1987 = vbcast.lane.b32.xlu0 %v1985, 256
          %v1988 = vpop.permute.xlu0 %1987
          %s1990 = sor.u32 256, 8
          %1991 = vbcast.lane.b32.xlu0 %v1985, %s1990
          %v1992 = vpop.permute.xlu0 %1991
          %v1993 = vlaneseq
          %v1994 = vshrl.u32 %v1993, 7
          %v1995 = vsub.s32 1, %v1994
          %v1996 = vrot.slane %v1843, %v1995
          %1998 = vbcast.lane.b32.xlu0 %v1996, 256
          %v1999 = vpop.permute.xlu0 %1998
          %s2001 = sor.u32 256, 8
          %2002 = vbcast.lane.b32.xlu0 %v1996, %s2001
          %v2003 = vpop.permute.xlu0 %2002
          %v2004 = vlaneseq
          %v2005 = vshrl.u32 %v2004, 7
          %v2006 = vsub.s32 2, %v2005
          %v2007 = vrot.slane %v1843, %v2006
          %2009 = vbcast.lane.b32.xlu0 %v2007, 256
          %v2010 = vpop.permute.xlu0 %2009
          %s2012 = sor.u32 256, 8
          %2013 = vbcast.lane.b32.xlu0 %v2007, %s2012
          %v2014 = vpop.permute.xlu0 %2013
          %v2015 = vlaneseq
          %v2016 = vshrl.u32 %v2015, 7
          %v2017 = vsub.s32 3, %v2016
          %v2018 = vrot.slane %v1843, %v2017
          %2020 = vbcast.lane.b32.xlu0 %v2018, 256
          %v2021 = vpop.permute.xlu0 %2020
          %s2023 = sor.u32 256, 8
          %2024 = vbcast.lane.b32.xlu0 %v2018, %s2023
          %v2025 = vpop.permute.xlu0 %2024
          %v2026 = vlaneseq
          %v2027 = vshrl.u32 %v2026, 7
          %v2028 = vsub.s32 4, %v2027
          %v2029 = vrot.slane %v1843, %v2028
          %2031 = vbcast.lane.b32.xlu0 %v2029, 256
          %v2032 = vpop.permute.xlu0 %2031
          %s2034 = sor.u32 256, 8
          %2035 = vbcast.lane.b32.xlu0 %v2029, %s2034
          %v2036 = vpop.permute.xlu0 %2035
          %v2037 = vlaneseq
          %v2038 = vshrl.u32 %v2037, 7
          %v2039 = vsub.s32 5, %v2038
          %v2040 = vrot.slane %v1843, %v2039
          %2042 = vbcast.lane.b32.xlu0 %v2040, 256
          %v2043 = vpop.permute.xlu0 %2042
          %s2045 = sor.u32 256, 8
          %2046 = vbcast.lane.b32.xlu0 %v2040, %s2045
          %v2047 = vpop.permute.xlu0 %2046
          %v2048 = vlaneseq
          %v2049 = vshrl.u32 %v2048, 7
          %v2050 = vsub.s32 6, %v2049
          %v2051 = vrot.slane %v1843, %v2050
          %2053 = vbcast.lane.b32.xlu0 %v2051, 256
          %v2054 = vpop.permute.xlu0 %2053
          %s2056 = sor.u32 256, 8
          %2057 = vbcast.lane.b32.xlu0 %v2051, %s2056
          %v2058 = vpop.permute.xlu0 %2057
          %v2059 = vlaneseq
          %v2060 = vshrl.u32 %v2059, 7
          %v2061 = vsub.s32 7, %v2060
          %v2062 = vrot.slane %v1843, %v2061
          %2064 = vbcast.lane.b32.xlu0 %v2062, 256
          %v2065 = vpop.permute.xlu0 %2064
          %s2067 = sor.u32 256, 8
          %2068 = vbcast.lane.b32.xlu0 %v2062, %s2067
          %v2069 = vpop.permute.xlu0 %2068
          %s2071 = sor.u32 256, 16
          %2072 = vbcast.lane.b32.xlu0 %v1985, %s2071
          %v2073 = vpop.permute.xlu0 %2072
          %s2075 = sor.u32 256, 24
          %2076 = vbcast.lane.b32.xlu0 %v1985, %s2075
          %v2077 = vpop.permute.xlu0 %2076
          %s2079 = sor.u32 256, 16
          %2080 = vbcast.lane.b32.xlu0 %v1996, %s2079
          %v2081 = vpop.permute.xlu0 %2080
          %s2083 = sor.u32 256, 24
          %2084 = vbcast.lane.b32.xlu0 %v1996, %s2083
          %v2085 = vpop.permute.xlu0 %2084
          %s2087 = sor.u32 256, 16
          %2088 = vbcast.lane.b32.xlu0 %v2007, %s2087
          %v2089 = vpop.permute.xlu0 %2088
          %s2091 = sor.u32 256, 24
          %2092 = vbcast.lane.b32.xlu0 %v2007, %s2091
          %v2093 = vpop.permute.xlu0 %2092
          %s2095 = sor.u32 256, 16
          %2096 = vbcast.lane.b32.xlu0 %v2018, %s2095
          %v2097 = vpop.permute.xlu0 %2096
          %s2099 = sor.u32 256, 24
          %2100 = vbcast.lane.b32.xlu0 %v2018, %s2099
          %v2101 = vpop.permute.xlu0 %2100
          %s2103 = sor.u32 256, 16
          %2104 = vbcast.lane.b32.xlu0 %v2029, %s2103
          %v2105 = vpop.permute.xlu0 %2104
          %s2107 = sor.u32 256, 24
          %2108 = vbcast.lane.b32.xlu0 %v2029, %s2107
          %v2109 = vpop.permute.xlu0 %2108
          %s2111 = sor.u32 256, 16
          %2112 = vbcast.lane.b32.xlu0 %v2040, %s2111
          %v2113 = vpop.permute.xlu0 %2112
          %s2115 = sor.u32 256, 24
          %2116 = vbcast.lane.b32.xlu0 %v2040, %s2115
          %v2117 = vpop.permute.xlu0 %2116
          %s2119 = sor.u32 256, 16
          %2120 = vbcast.lane.b32.xlu0 %v2051, %s2119
          %v2121 = vpop.permute.xlu0 %2120
          %s2123 = sor.u32 256, 24
          %2124 = vbcast.lane.b32.xlu0 %v2051, %s2123
          %v2125 = vpop.permute.xlu0 %2124
          %s2127 = sor.u32 256, 16
          %2128 = vbcast.lane.b32.xlu0 %v2062, %s2127
          %v2129 = vpop.permute.xlu0 %2128
          %s2131 = sor.u32 256, 24
          %2132 = vbcast.lane.b32.xlu0 %v2062, %s2131
          %v2133 = vpop.permute.xlu0 %2132
          %v2135 = vcombine.high %v1841, %v1841
          %v2137 = vunpack.c.l.s4 1966171168
          %v2138 = vunpack.c.0.s8 %v2137
          %v2139 = vlaneseq
          %v2140 = vshrl.u32 %v2139, 7
          %v2141 = vsub.s32 %v2138, %v2140
          %v2142 = vrot.slane %v1841, %v2141
          %v2144 = vunpack.c.l.s4 1966171168
          %v2145 = vunpack.c.0.s8 %v2144
          %v2146 = vlaneseq
          %v2147 = vshrl.u32 %v2146, 7
          %v2148 = vsub.s32 %v2145, %v2147
          %v2149 = vrot.slane %v2135, %v2148
          %v2150 = vcombine.high %v2142, %v2142
          %v2151 = vcombine.high %v2149, %v2149
          %v2153 = vunpack.c.l.s4 1966171168
          %v2154 = vunpack.c.0.s8 %v2153
          %v2155 = vlaneseq
          %v2156 = vshrl.u32 %v2155, 7
          %v2157 = vsub.s32 %v2154, %v2156
          %v2158 = vrot.slane %v2142, %v2157
          %v2160 = vunpack.c.l.s4 1966171168
          %v2161 = vunpack.c.0.s8 %v2160
          %v2162 = vlaneseq
          %v2163 = vshrl.u32 %v2162, 7
          %v2164 = vsub.s32 %v2161, %v2163
          %v2165 = vrot.slane %v2149, %v2164
          %v2167 = vunpack.c.l.s4 1966171168
          %v2168 = vunpack.c.0.s8 %v2167
          %v2169 = vlaneseq
          %v2170 = vshrl.u32 %v2169, 7
          %v2171 = vsub.s32 %v2168, %v2170
          %v2172 = vrot.slane %v2150, %v2171
          %v2174 = vunpack.c.l.s4 1966171168
          %v2175 = vunpack.c.0.s8 %v2174
          %v2176 = vlaneseq
          %v2177 = vshrl.u32 %v2176, 7
          %v2178 = vsub.s32 %v2175, %v2177
          %v2179 = vrot.slane %v2151, %v2178
          %v2180 = vcombine.high %v2158, %v2158
          %v2181 = vcombine.high %v2165, %v2165
          %v2182 = vcombine.high %v2172, %v2172
          %v2183 = vcombine.high %v2179, %v2179
          %v2184 = vlaneseq
          %v2185 = vshrl.u32 %v2184, 7
          %v2186 = vsub.s32 0, %v2185
          %v2187 = vrot.slane %v2158, %v2186
          %v2188 = vlaneseq
          %v2189 = vshrl.u32 %v2188, 7
          %v2190 = vsub.s32 0, %v2189
          %v2191 = vrot.slane %v2172, %v2190
          %v2192 = vlaneseq
          %v2193 = vshrl.u32 %v2192, 7
          %v2194 = vsub.s32 0, %v2193
          %v2195 = vrot.slane %v2180, %v2194
          %v2196 = vlaneseq
          %v2197 = vshrl.u32 %v2196, 7
          %v2198 = vsub.s32 0, %v2197
          %v2199 = vrot.slane %v2182, %v2198
          %v2200 = vlaneseq
          %v2201 = vshrl.u32 %v2200, 7
          %v2202 = vsub.s32 0, %v2201
          %v2203 = vrot.slane %v2165, %v2202
          %v2204 = vlaneseq
          %v2205 = vshrl.u32 %v2204, 7
          %v2206 = vsub.s32 0, %v2205
          %v2207 = vrot.slane %v2179, %v2206
          %v2208 = vlaneseq
          %v2209 = vshrl.u32 %v2208, 7
          %v2210 = vsub.s32 0, %v2209
          %v2211 = vrot.slane %v2181, %v2210
          %v2212 = vlaneseq
          %v2213 = vshrl.u32 %v2212, 7
          %v2214 = vsub.s32 0, %v2213
          %v2215 = vrot.slane %v2183, %v2214
          %v2224 = vmul.f32 %v2187, %v1988
          %v2225 = vmul.f32 %v2187, %v1992
          %v2226 = vmul.f32 %v2191, %v1999
          %v2227 = vmul.f32 %v2191, %v2003
          %v2228 = vmul.f32 %v2195, %v2010
          %v2229 = vmul.f32 %v2195, %v2014
          %v2230 = vmul.f32 %v2199, %v2021
          %v2231 = vmul.f32 %v2199, %v2025
          %v2232 = vmul.f32 %v2203, %v2032
          %v2233 = vmul.f32 %v2203, %v2036
          %v2234 = vmul.f32 %v2207, %v2043
          %v2235 = vmul.f32 %v2207, %v2047
          %v2236 = vmul.f32 %v2211, %v2054
          %v2237 = vmul.f32 %v2211, %v2058
          %v2238 = vmul.f32 %v2215, %v2065
          %v2239 = vmul.f32 %v2215, %v2069
          %v2240 = vunpack.c.l.bf16 %v1960
          %v2241 = vunpack.c.h.bf16 %v1960
          %v2242 = vmul.f32 %v2240, %v1835
          %v2243 = vmul.f32 %v2241, %v1836
          %v2244 = vadd.f32 %v2242, %v2224
          %v2245 = vadd.f32 %v2243, %v2225
          %v2246 = vmul.f32 %v2244, %v2073
          %v2247 = vmul.f32 %v2245, %v2077
          %v2248 = vadd.f32 %v2246, %v2247
          %v2249 = vrot.slane %v2248, 4
          %v2250 = vadd.f32 %v2248, %v2249
          %v2251 = vrot.slane %v2250, 2
          %v2252 = vadd.f32 %v2250, %v2251
          %v2253 = vrot.slane %v2252, 1
          %v2254 = vadd.f32 %v2252, %v2253
          %v2255 = vunpack.c.l.bf16 %v1963
          %v2256 = vunpack.c.h.bf16 %v1963
          %v2257 = vmul.f32 %v2255, %v2244
          %v2258 = vmul.f32 %v2256, %v2245
          %v2259 = vadd.f32 %v2257, %v2226
          %v2260 = vadd.f32 %v2258, %v2227
          %v2261 = vmul.f32 %v2259, %v2081
          %v2262 = vmul.f32 %v2260, %v2085
          %v2263 = vadd.f32 %v2261, %v2262
          %v2264 = vrot.slane %v2263, 4
          %v2265 = vadd.f32 %v2263, %v2264
          %v2266 = vrot.slane %v2265, 2
          %v2267 = vadd.f32 %v2265, %v2266
          %v2268 = vrot.slane %v2267, 1
          %v2269 = vadd.f32 %v2267, %v2268
          %v2270 = vunpack.c.l.bf16 %v1966
          %v2271 = vunpack.c.h.bf16 %v1966
          %v2272 = vmul.f32 %v2270, %v2259
          %v2273 = vmul.f32 %v2271, %v2260
          %v2274 = vadd.f32 %v2272, %v2228
          %v2275 = vadd.f32 %v2273, %v2229
          %v2276 = vmul.f32 %v2274, %v2089
          %v2277 = vmul.f32 %v2275, %v2093
          %v2278 = vadd.f32 %v2276, %v2277
          %v2279 = vrot.slane %v2278, 4
          %v2280 = vadd.f32 %v2278, %v2279
          %v2281 = vrot.slane %v2280, 2
          %v2282 = vadd.f32 %v2280, %v2281
          %v2283 = vrot.slane %v2282, 1
          %v2284 = vadd.f32 %v2282, %v2283
          %v2285 = vunpack.c.l.bf16 %v1969
          %v2286 = vunpack.c.h.bf16 %v1969
          %v2287 = vmul.f32 %v2285, %v2274
          %v2288 = vmul.f32 %v2286, %v2275
          %v2289 = vadd.f32 %v2287, %v2230
          %v2290 = vadd.f32 %v2288, %v2231
          %v2291 = vmul.f32 %v2289, %v2097
          %v2292 = vmul.f32 %v2290, %v2101
          %v2293 = vadd.f32 %v2291, %v2292
          %v2294 = vrot.slane %v2293, 4
          %v2295 = vadd.f32 %v2293, %v2294
          %v2296 = vrot.slane %v2295, 2
          %v2297 = vadd.f32 %v2295, %v2296
          %v2298 = vrot.slane %v2297, 1
          %v2299 = vadd.f32 %v2297, %v2298
          %v2300 = vunpack.c.l.bf16 %v1972
          %v2301 = vunpack.c.h.bf16 %v1972
          %v2302 = vmul.f32 %v2300, %v2289
          %v2303 = vmul.f32 %v2301, %v2290
          %v2304 = vadd.f32 %v2302, %v2232
          %v2305 = vadd.f32 %v2303, %v2233
          %v2306 = vmul.f32 %v2304, %v2105
          %v2307 = vmul.f32 %v2305, %v2109
          %v2308 = vadd.f32 %v2306, %v2307
          %v2309 = vrot.slane %v2308, 4
          %v2310 = vadd.f32 %v2308, %v2309
          %v2311 = vrot.slane %v2310, 2
          %v2312 = vadd.f32 %v2310, %v2311
          %v2313 = vrot.slane %v2312, 1
          %v2314 = vadd.f32 %v2312, %v2313
          %v2315 = vunpack.c.l.bf16 %v1975
          %v2316 = vunpack.c.h.bf16 %v1975
          %v2317 = vmul.f32 %v2315, %v2304
          %v2318 = vmul.f32 %v2316, %v2305
          %v2319 = vadd.f32 %v2317, %v2234
          %v2320 = vadd.f32 %v2318, %v2235
          %v2321 = vmul.f32 %v2319, %v2113
          %v2322 = vmul.f32 %v2320, %v2117
          %v2323 = vadd.f32 %v2321, %v2322
          %v2324 = vrot.slane %v2323, 4
          %v2325 = vadd.f32 %v2323, %v2324
          %v2326 = vrot.slane %v2325, 2
          %v2327 = vadd.f32 %v2325, %v2326
          %v2328 = vrot.slane %v2327, 1
          %v2329 = vadd.f32 %v2327, %v2328
          %v2330 = vunpack.c.l.bf16 %v1978
          %v2331 = vunpack.c.h.bf16 %v1978
          %v2332 = vmul.f32 %v2330, %v2319
          %v2333 = vmul.f32 %v2331, %v2320
          %v2334 = vadd.f32 %v2332, %v2236
          %v2335 = vadd.f32 %v2333, %v2237
          %v2336 = vmul.f32 %v2334, %v2121
          %v2337 = vmul.f32 %v2335, %v2125
          %v2338 = vadd.f32 %v2336, %v2337
          %v2339 = vrot.slane %v2338, 4
          %v2340 = vadd.f32 %v2338, %v2339
          %v2341 = vrot.slane %v2340, 2
          %v2342 = vadd.f32 %v2340, %v2341
          %v2343 = vrot.slane %v2342, 1
          %v2344 = vadd.f32 %v2342, %v2343
          %v2345 = vunpack.c.l.bf16 %v1981
          %v2346 = vunpack.c.h.bf16 %v1981
          %v2347 = vmul.f32 %v2345, %v2334
          %v2348 = vmul.f32 %v2346, %v2335
          %v2349 = vadd.f32 %v2347, %v2238
          %v2350 = vadd.f32 %v2348, %v2239
          %v2351 = vmul.f32 %v2349, %v2129
          %v2352 = vmul.f32 %v2350, %v2133
          %v2353 = vadd.f32 %v2351, %v2352
          %v2354 = vrot.slane %v2353, 4
          %v2355 = vadd.f32 %v2353, %v2354
          %v2356 = vrot.slane %v2355, 2
          %v2357 = vadd.f32 %v2355, %v2356
          %v2358 = vrot.slane %v2357, 1
          %v2359 = vadd.f32 %v2357, %v2358
          %vm2360 = vcmask 1040384
          %v2361 = vsel %vm2360, %v2254, %v2269
          %vm2362 = vcmask 1041408
          %v2363 = vsel %vm2362, %v2361, %v2284
          %vm2364 = vcmask 1042432
          %v2365 = vsel %vm2364, %v2363, %v2299
          %vm2366 = vcmask 1043456
          %v2367 = vsel %vm2366, %v2365, %v2314
          %vm2368 = vcmask 1044480
          %v2369 = vsel %vm2368, %v2367, %v2329
          %vm2370 = vcmask 1045504
          %v2371 = vsel %vm2370, %v2369, %v2344
          %vm2372 = vcmask 1046528
          %v2373 = vsel %vm2372, %v2371, %v2359
          %s2374 = scalar_lea.vmem [#allocation7], %s1837
          %2375 = vst [vmem:[%s2374] sm:$0xff] %v2373
        $region77: #{_lambda_.1} parent=63 // loop_footer
          %s1834 = sadd.s32 1, %s1830
        $region78: #{_lambda_.1} parent=63 // loop_footer_branch
          %1829 = sbr.rel target = $region74
        $region79: #{_lambda_.1} parent=63 // loop_exit
          _
        %2376 = vst [vmem:[#allocation3] sm:$0xff] %v1835
        %2377 = vst [vmem:[#allocation3 + $0x8] sm:$0xff] %v1836
        %v2378 = vld [vmem:[#allocation7] sm:$0xff]
        %v2379 = vld [vmem:[#allocation7 + $0x8] sm:$0xff]
        %v2380 = vld [vmem:[#allocation7 + $0x10] sm:$0xff]
        %v2381 = vld [vmem:[#allocation7 + $0x18] sm:$0xff]
        %v2382 = vld [vmem:[#allocation7 + $0x20] sm:$0xff]
        %v2383 = vld [vmem:[#allocation7 + $0x28] sm:$0xff]
        %v2384 = vld [vmem:[#allocation7 + $0x30] sm:$0xff]
        %v2385 = vld [vmem:[#allocation7 + $0x38] sm:$0xff]
        %v2386 = vld [vmem:[#allocation7 + $0x40] sm:$0xff]
        %v2387 = vld [vmem:[#allocation7 + $0x48] sm:$0xff]
        %v2388 = vld [vmem:[#allocation7 + $0x50] sm:$0xff]
        %v2389 = vld [vmem:[#allocation7 + $0x58] sm:$0xff]
        %v2390 = vld [vmem:[#allocation7 + $0x60] sm:$0xff]
        %v2391 = vld [vmem:[#allocation7 + $0x68] sm:$0xff]
        %v2392 = vld [vmem:[#allocation7 + $0x70] sm:$0xff]
        %v2393 = vld [vmem:[#allocation7 + $0x78] sm:$0xff]
        %v2394 = vld [vmem:[%s9] sm:$0x1]
        %v2396 = vlaneseq
        %v2397 = vshrl.u32 %v2396, 7
        %v2398 = vsub.s32 0, %v2397
        %v2399 = vrot.slane %v2394, %v2398
        %v2401 = vmul.f32 %v1216, %v2399
        %v2402 = vmul.f32 %v1217, %v2399
        %v2403 = vmul.f32 %v1218, %v2399
        %v2404 = vmul.f32 %v1219, %v2399
        %v2405 = vmul.f32 %v1220, %v2399
        %v2406 = vmul.f32 %v1221, %v2399
        %v2407 = vmul.f32 %v1222, %v2399
        %v2408 = vmul.f32 %v1223, %v2399
        %v2409 = vmul.f32 %v1224, %v2399
        %v2410 = vmul.f32 %v1225, %v2399
        %v2411 = vmul.f32 %v1226, %v2399
        %v2412 = vmul.f32 %v1227, %v2399
        %v2413 = vmul.f32 %v1228, %v2399
        %v2414 = vmul.f32 %v1229, %v2399
        %v2415 = vmul.f32 %v1230, %v2399
        %v2416 = vmul.f32 %v1231, %v2399
        %v2417 = vadd.f32 %v2378, %v2401
        %v2418 = vadd.f32 %v2379, %v2402
        %v2419 = vadd.f32 %v2380, %v2403
        %v2420 = vadd.f32 %v2381, %v2404
        %v2421 = vadd.f32 %v2382, %v2405
        %v2422 = vadd.f32 %v2383, %v2406
        %v2423 = vadd.f32 %v2384, %v2407
        %v2424 = vadd.f32 %v2385, %v2408
        %v2425 = vadd.f32 %v2386, %v2409
        %v2426 = vadd.f32 %v2387, %v2410
        %v2427 = vadd.f32 %v2388, %v2411
        %v2428 = vadd.f32 %v2389, %v2412
        %v2429 = vadd.f32 %v2390, %v2413
        %v2430 = vadd.f32 %v2391, %v2414
        %v2431 = vadd.f32 %v2392, %v2415
        %v2432 = vadd.f32 %v2393, %v2416
        %v2433 = vxor.u32 %v828, 2147483648
        %v2434 = vxor.u32 %v832, 2147483648
        %v2435 = vxor.u32 %v838, 2147483648
        %v2436 = vxor.u32 %v842, 2147483648
        %v2437 = vxor.u32 %v848, 2147483648
        %v2438 = vxor.u32 %v852, 2147483648
        %v2439 = vxor.u32 %v858, 2147483648
        %v2440 = vxor.u32 %v862, 2147483648
        %v2441 = vxor.u32 %v868, 2147483648
        %v2442 = vxor.u32 %v872, 2147483648
        %v2443 = vxor.u32 %v878, 2147483648
        %v2444 = vxor.u32 %v882, 2147483648
        %v2445 = vxor.u32 %v888, 2147483648
        %v2446 = vxor.u32 %v892, 2147483648
        %v2447 = vxor.u32 %v898, 2147483648
        %v2448 = vxor.u32 %v902, 2147483648
        %v2449 = vmul.f32 %v2433, 1.442695
        %v2450 = vpow.pop %v2449
        %v2451 = vmul.f32 %v2434, 1.442695
        %v2452 = vpow.pop %v2451
        %v2453 = vmul.f32 %v2435, 1.442695
        %v2454 = vpow.pop %v2453
        %v2455 = vmul.f32 %v2436, 1.442695
        %v2456 = vpow.pop %v2455
        %v2457 = vmul.f32 %v2437, 1.442695
        %v2458 = vpow.pop %v2457
        %v2459 = vmul.f32 %v2438, 1.442695
        %v2460 = vpow.pop %v2459
        %v2461 = vmul.f32 %v2439, 1.442695
        %v2462 = vpow.pop %v2461
        %v2463 = vmul.f32 %v2440, 1.442695
        %v2464 = vpow.pop %v2463
        %v2465 = vmul.f32 %v2441, 1.442695
        %v2466 = vpow.pop %v2465
        %v2467 = vmul.f32 %v2442, 1.442695
        %v2468 = vpow.pop %v2467
        %v2469 = vmul.f32 %v2443, 1.442695
        %v2470 = vpow.pop %v2469
        %v2471 = vmul.f32 %v2444, 1.442695
        %v2472 = vpow.pop %v2471
        %v2473 = vmul.f32 %v2445, 1.442695
        %v2474 = vpow.pop %v2473
        %v2475 = vmul.f32 %v2446, 1.442695
        %v2476 = vpow.pop %v2475
        %v2477 = vmul.f32 %v2447, 1.442695
        %v2478 = vpow.pop %v2477
        %v2479 = vmul.f32 %v2448, 1.442695
        %v2480 = vpow.pop %v2479
        %v2481 = vadd.f32 %v2450, 1.0
        %v2482 = vadd.f32 %v2452, 1.0
        %v2483 = vadd.f32 %v2454, 1.0
        %v2484 = vadd.f32 %v2456, 1.0
        %v2485 = vadd.f32 %v2458, 1.0
        %v2486 = vadd.f32 %v2460, 1.0
        %v2487 = vadd.f32 %v2462, 1.0
        %v2488 = vadd.f32 %v2464, 1.0
        %v2489 = vadd.f32 %v2466, 1.0
        %v2490 = vadd.f32 %v2468, 1.0
        %v2491 = vadd.f32 %v2470, 1.0
        %v2492 = vadd.f32 %v2472, 1.0
        %v2493 = vadd.f32 %v2474, 1.0
        %v2494 = vadd.f32 %v2476, 1.0
        %v2495 = vadd.f32 %v2478, 1.0
        %v2496 = vadd.f32 %v2480, 1.0
        %v2497 = vrcp.pop %v2481
        %v2498 = vmul.f32 1.0, %v2497
        %v2499 = vrcp.pop %v2482
        %v2500 = vmul.f32 1.0, %v2499
        %v2501 = vrcp.pop %v2483
        %v2502 = vmul.f32 1.0, %v2501
        %v2503 = vrcp.pop %v2484
        %v2504 = vmul.f32 1.0, %v2503
        %v2505 = vrcp.pop %v2485
        %v2506 = vmul.f32 1.0, %v2505
        %v2507 = vrcp.pop %v2486
        %v2508 = vmul.f32 1.0, %v2507
        %v2509 = vrcp.pop %v2487
        %v2510 = vmul.f32 1.0, %v2509
        %v2511 = vrcp.pop %v2488
        %v2512 = vmul.f32 1.0, %v2511
        %v2513 = vrcp.pop %v2489
        %v2514 = vmul.f32 1.0, %v2513
        %v2515 = vrcp.pop %v2490
        %v2516 = vmul.f32 1.0, %v2515
        %v2517 = vrcp.pop %v2491
        %v2518 = vmul.f32 1.0, %v2517
        %v2519 = vrcp.pop %v2492
        %v2520 = vmul.f32 1.0, %v2519
        %v2521 = vrcp.pop %v2493
        %v2522 = vmul.f32 1.0, %v2521
        %v2523 = vrcp.pop %v2494
        %v2524 = vmul.f32 1.0, %v2523
        %v2525 = vrcp.pop %v2495
        %v2526 = vmul.f32 1.0, %v2525
        %v2527 = vrcp.pop %v2496
        %v2528 = vmul.f32 1.0, %v2527
        %v2529 = vmul.f32 %v828, %v2498
        %v2530 = vmul.f32 %v832, %v2500
        %v2531 = vmul.f32 %v838, %v2502
        %v2532 = vmul.f32 %v842, %v2504
        %v2533 = vmul.f32 %v848, %v2506
        %v2534 = vmul.f32 %v852, %v2508
        %v2535 = vmul.f32 %v858, %v2510
        %v2536 = vmul.f32 %v862, %v2512
        %v2537 = vmul.f32 %v868, %v2514
        %v2538 = vmul.f32 %v872, %v2516
        %v2539 = vmul.f32 %v878, %v2518
        %v2540 = vmul.f32 %v882, %v2520
        %v2541 = vmul.f32 %v888, %v2522
        %v2542 = vmul.f32 %v892, %v2524
        %v2543 = vmul.f32 %v898, %v2526
        %v2544 = vmul.f32 %v902, %v2528
        %v2545 = vmul.f32 %v2417, %v2529
        %v2546 = vmul.f32 %v2418, %v2530
        %v2547 = vmul.f32 %v2419, %v2531
        %v2548 = vmul.f32 %v2420, %v2532
        %v2549 = vmul.f32 %v2421, %v2533
        %v2550 = vmul.f32 %v2422, %v2534
        %v2551 = vmul.f32 %v2423, %v2535
        %v2552 = vmul.f32 %v2424, %v2536
        %v2553 = vmul.f32 %v2425, %v2537
        %v2554 = vmul.f32 %v2426, %v2538
        %v2555 = vmul.f32 %v2427, %v2539
        %v2556 = vmul.f32 %v2428, %v2540
        %v2557 = vmul.f32 %v2429, %v2541
        %v2558 = vmul.f32 %v2430, %v2542
        %v2559 = vmul.f32 %v2431, %v2543
        %v2560 = vmul.f32 %v2432, %v2544
        %v2561 = vpack.c.bf16 %v2546, %v2545
        %v2562 = vpack.c.bf16 %v2548, %v2547
        %v2563 = vpack.c.bf16 %v2550, %v2549
        %v2564 = vpack.c.bf16 %v2552, %v2551
        %v2565 = vpack.c.bf16 %v2554, %v2553
        %v2566 = vpack.c.bf16 %v2556, %v2555
        %v2567 = vpack.c.bf16 %v2558, %v2557
        %v2568 = vpack.c.bf16 %v2560, %v2559
        %v2569 = vld [vmem:[%s10] sm:$0xf]
        %v2570 = vld [vmem:[%s10 + $0x4] sm:$0xf]
        %v2571 = vld [vmem:[%s10 + $0x8] sm:$0xf]
        %v2572 = vld [vmem:[%s10 + $0xc] sm:$0xf]
        %v2573 = vld [vmem:[%s10 + $0x10] sm:$0xf]
        %v2574 = vld [vmem:[%s10 + $0x14] sm:$0xf]
        %v2575 = vld [vmem:[%s10 + $0x18] sm:$0xf]
        %v2576 = vld [vmem:[%s10 + $0x1c] sm:$0xf]
        %v2577 = vld [vmem:[%s10 + $0x20] sm:$0xf]
        %v2578 = vld [vmem:[%s10 + $0x24] sm:$0xf]
        %v2579 = vld [vmem:[%s10 + $0x28] sm:$0xf]
        %v2580 = vld [vmem:[%s10 + $0x2c] sm:$0xf]
        %v2581 = vld [vmem:[%s10 + $0x30] sm:$0xf]
        %v2582 = vld [vmem:[%s10 + $0x34] sm:$0xf]
        %v2583 = vld [vmem:[%s10 + $0x38] sm:$0xf]
        %v2584 = vld [vmem:[%s10 + $0x3c] sm:$0xf]
        %v2601 = vunpack.c.l.b16 %v2569
        %v2602 = vunpack.c.l.b16 %v2570
        %v2603 = vunpack.c.l.b16 %v2571
        %v2604 = vunpack.c.l.b16 %v2572
        %v2605 = vunpack.c.l.b16 %v2573
        %v2606 = vunpack.c.l.b16 %v2574
        %v2607 = vunpack.c.l.b16 %v2575
        %v2608 = vunpack.c.l.b16 %v2576
        %v2609 = vunpack.c.l.b16 %v2577
        %v2610 = vunpack.c.l.b16 %v2578
        %v2611 = vunpack.c.l.b16 %v2579
        %v2612 = vunpack.c.l.b16 %v2580
        %v2613 = vunpack.c.l.b16 %v2581
        %v2614 = vunpack.c.l.b16 %v2582
        %v2615 = vunpack.c.l.b16 %v2583
        %v2616 = vunpack.c.l.b16 %v2584
        %v2617 = vpack.c.b16 %v2602, %v2601
        %v2618 = vpack.c.b16 %v2604, %v2603
        %v2619 = vpack.c.b16 %v2606, %v2605
        %v2620 = vpack.c.b16 %v2608, %v2607
        %v2621 = vpack.c.b16 %v2610, %v2609
        %v2622 = vpack.c.b16 %v2612, %v2611
        %v2623 = vpack.c.b16 %v2614, %v2613
        %v2624 = vpack.c.b16 %v2616, %v2615
        %2633 = vmatprep.subr.bf16.mxu0 0
        %2634 = vmatpush1.bf16.msra.mxu0 %v2617
        %2635 = vmatprep.subr.bf16.mxu0 0
        %2636 = vmatpush1.bf16.msra.mxu0 %v2618
        %2637 = vmatprep.subr.bf16.mxu0 0
        %2638 = vmatpush1.bf16.msra.mxu0 %v2619
        %2639 = vmatprep.subr.bf16.mxu0 0
        %2640 = vmatpush1.bf16.msra.mxu0 %v2620
        %2641 = vmatprep.subr.bf16.mxu0 0
        %2642 = vmatpush1.bf16.msra.mxu0 %v2621
        %2643 = vmatprep.subr.bf16.mxu0 0
        %2644 = vmatpush1.bf16.msra.mxu0 %v2622
        %2645 = vmatprep.subr.bf16.mxu0 0
        %2646 = vmatpush1.bf16.msra.mxu0 %v2623
        %2647 = vmatprep.subr.bf16.mxu0 0
        %2648 = vmatpush1.bf16.msra.mxu0 %v2624
        %2649 = vmatprep.subr.bf16.mxu0 0
        %2650 = vmatpush1.bf16.msra.mxu0 0
        %2651 = vmatprep.subr.bf16.mxu0 0
        %2652 = vmatpush1.bf16.msra.mxu0 0
        %2653 = vmatprep.subr.bf16.mxu0 0
        %2654 = vmatpush1.bf16.msra.mxu0 0
        %2655 = vmatprep.subr.bf16.mxu0 0
        %2656 = vmatpush1.bf16.msra.mxu0 0
        %2657 = vmatprep.subr.bf16.mxu0 0
        %2658 = vmatpush1.bf16.msra.mxu0 0
        %2659 = vmatprep.subr.bf16.mxu0 0
        %2660 = vmatpush1.bf16.msra.mxu0 0
        %2661 = vmatprep.subr.bf16.mxu0 0
        %2662 = vmatpush1.bf16.msra.mxu0 0
        %2663 = vmatprep.subr.bf16.mxu0 0
        %2664 = vmatpush1.bf16.msra.mxu0 0
        %2665 = vmatprep.mubr.bf16.mxu0 0
        %2666 = vmatmul.mubr.bf16.gmra.mrb[0].mxu0 %v2561
        %v2667 = vpop.f32.mrb[0].mxu0
        %v2668 = vadd.f32 0.0, %v2667
        %v2669 = vpop.f32.mrb[0].mxu0
        %v2670 = vpop.f32.mrb[0].mxu0
        %v2671 = vadd.f32 0.0, %v2670
        %v2672 = vpop.f32.mrb[0].mxu0
        %2673 = vmatprep.mubr.bf16.mxu0 0
        %2674 = vmatmul.mubr.bf16.gmra.mrb[0].mxu0 %v2562
        %v2675 = vpop.f32.mrb[0].mxu0
        %v2676 = vadd.f32 0.0, %v2675
        %v2677 = vpop.f32.mrb[0].mxu0
        %v2678 = vpop.f32.mrb[0].mxu0
        %v2679 = vadd.f32 0.0, %v2678
        %v2680 = vpop.f32.mrb[0].mxu0
        %2681 = vmatprep.mubr.bf16.mxu0 0
        %2682 = vmatmul.mubr.bf16.gmra.mrb[0].mxu0 %v2563
        %v2683 = vpop.f32.mrb[0].mxu0
        %v2684 = vadd.f32 0.0, %v2683
        %v2685 = vpop.f32.mrb[0].mxu0
        %v2686 = vpop.f32.mrb[0].mxu0
        %v2687 = vadd.f32 0.0, %v2686
        %v2688 = vpop.f32.mrb[0].mxu0
        %2689 = vmatprep.mubr.bf16.mxu0 0
        %2690 = vmatmul.mubr.bf16.gmra.mrb[0].mxu0 %v2564
        %v2691 = vpop.f32.mrb[0].mxu0
        %v2692 = vadd.f32 0.0, %v2691
        %v2693 = vpop.f32.mrb[0].mxu0
        %v2694 = vpop.f32.mrb[0].mxu0
        %v2695 = vadd.f32 0.0, %v2694
        %v2696 = vpop.f32.mrb[0].mxu0
        %2697 = vmatprep.mubr.bf16.mxu0 0
        %2698 = vmatmul.mubr.bf16.gmra.mrb[0].mxu0 %v2565
        %v2699 = vpop.f32.mrb[0].mxu0
        %v2700 = vadd.f32 0.0, %v2699
        %v2701 = vpop.f32.mrb[0].mxu0
        %v2702 = vpop.f32.mrb[0].mxu0
        %v2703 = vadd.f32 0.0, %v2702
        %v2704 = vpop.f32.mrb[0].mxu0
        %2705 = vmatprep.mubr.bf16.mxu0 0
        %2706 = vmatmul.mubr.bf16.gmra.mrb[0].mxu0 %v2566
        %v2707 = vpop.f32.mrb[0].mxu0
        %v2708 = vadd.f32 0.0, %v2707
        %v2709 = vpop.f32.mrb[0].mxu0
        %v2710 = vpop.f32.mrb[0].mxu0
        %v2711 = vadd.f32 0.0, %v2710
        %v2712 = vpop.f32.mrb[0].mxu0
        %2713 = vmatprep.mubr.bf16.mxu0 0
        %2714 = vmatmul.mubr.bf16.gmra.mrb[0].mxu0 %v2567
        %v2715 = vpop.f32.mrb[0].mxu0
        %v2716 = vadd.f32 0.0, %v2715
        %v2717 = vpop.f32.mrb[0].mxu0
        %v2718 = vpop.f32.mrb[0].mxu0
        %v2719 = vadd.f32 0.0, %v2718
        %v2720 = vpop.f32.mrb[0].mxu0
        %2721 = vmatprep.mubr.bf16.mxu0 0
        %2722 = vmatmul.mubr.bf16.gmra.mrb[0].mxu0 %v2568
        %v2723 = vpop.f32.mrb[0].mxu0
        %v2724 = vadd.f32 0.0, %v2723
        %v2725 = vpop.f32.mrb[0].mxu0
        %v2726 = vpop.f32.mrb[0].mxu0
        %v2727 = vadd.f32 0.0, %v2726
        %v2728 = vpop.f32.mrb[0].mxu0
        %2729 = vdwg.mxu0
        %2730 = vst [vmem:[%s404] sm:$0xff] %v2668
        %2731 = vst [vmem:[%s404 + $0x8] sm:$0xff] %v2671
        %2732 = vst [vmem:[%s404 + $0x10] sm:$0xff] %v2676
        %2733 = vst [vmem:[%s404 + $0x18] sm:$0xff] %v2679
        %2734 = vst [vmem:[%s404 + $0x20] sm:$0xff] %v2684
        %2735 = vst [vmem:[%s404 + $0x28] sm:$0xff] %v2687
        %2736 = vst [vmem:[%s404 + $0x30] sm:$0xff] %v2692
        %2737 = vst [vmem:[%s404 + $0x38] sm:$0xff] %v2695
        %2738 = vst [vmem:[%s404 + $0x40] sm:$0xff] %v2700
        %2739 = vst [vmem:[%s404 + $0x48] sm:$0xff] %v2703
        %2740 = vst [vmem:[%s404 + $0x50] sm:$0xff] %v2708
        %2741 = vst [vmem:[%s404 + $0x58] sm:$0xff] %v2711
        %2742 = vst [vmem:[%s404 + $0x60] sm:$0xff] %v2716
        %2743 = vst [vmem:[%s404 + $0x68] sm:$0xff] %v2719
        %2744 = vst [vmem:[%s404 + $0x70] sm:$0xff] %v2724
        %2745 = vst [vmem:[%s404 + $0x78] sm:$0xff] %v2727
        %s2746 = sand.u32 %s285, 1
        %s2747 = scalar_lea.sflag [#allocation9], %s2746
        %s2748 = sand.u32 %s285, 1
        %s2749 = smul.addr %s2748, 128
        %s2750 = scalar_lea.vmem [#allocation8], %s2749
        // Predicated region
        $region80: #{_lambda_.1} parent=63 // pred_check
          %p2751 = pneg %p295
        $region81: #{_lambda_.1} parent=63 // pred_check_branch
          %2753 = sbr.rel (%p2751) target = $region83
        $region82: #{_lambda_.1} parent=63 // pred_region
          %s2754 = smul.u32 16, %s30
          %s2756 = ssub.s32 2048, 2048
          %2757 = vsyncadd %s2747, %s2756
          %s2758 = smul.addr %s29, 32
          %s2759 = sadd.s32 %s2754, %s2758
          %s2760 = smul.addr %s2759, 128
          %s2761 = scalar_lea.hbm %s11, %s2760
          %s2762 = sshll.u32 %s2750, 4
          %s2763 = int_to_ptr.vmem [resolvable:$true] %s2762
          %2768 = dma.vmem_to_hbm [thread:$0]  %s2763, 2048, %s2761, %s2747, 128, 128, 8
        $region83: #{_lambda_.1} parent=63 // pred_fallthru
          _
      $region64: #{_lambda_.1} parent=5 // pred_fallthru
        _
      %p2769 = scmp.le.s32.totalorder 2, %s20
      // Predicated region
      $region84: #{_lambda_.1} parent=5 // pred_check
        %p2770 = pneg %p2769
      $region85: #{_lambda_.1} parent=5 // pred_check_branch
        %2772 = sbr.rel (%p2770) target = $region87
      $region86: #{_lambda_.1} parent=5 // pred_region
        %s2773 = ssub.s32 %s20, 2
        // Predicated region
        $region88: #{_lambda_.1} parent=86 // pred_check
          %p2774 = pneg %p301
        $region89: #{_lambda_.1} parent=86 // pred_check_branch
          %2776 = sbr.rel (%p2774) target = $region91
        $region90: #{_lambda_.1} parent=86 // pred_region
          %s2777 = sand.u32 %s286, 1
          %s2778 = scalar_lea.sflag [#allocation9], %s2777
          %s2779 = sand.u32 %s286, 1
          %s2780 = smul.addr %s2779, 128
          %s2781 = scalar_lea.vmem [#allocation8], %s2780
          %2782 = dma.done %s2778, 2048
        $region91: #{_lambda_.1} parent=86 // pred_fallthru
          _
      $region87: #{_lambda_.1} parent=5 // pred_fallthru
        _
    $region6: #{_lambda_.1} parent=1 // loop_footer
      %s24 = sadd.s32 1, %s20
    $region7: #{_lambda_.1} parent=1 // loop_footer_branch
      %19 = sbr.rel target = $region3
    $region8: #{_lambda_.1} parent=1 // loop_exit
      _
    %2783 = vsyncpa [#allocation9], 1
    %s2784 = scalar_lea.sflag [#allocation9], 1
    %2785 = vsyncpa %s2784, 1

</llo_original>
